<compile_context>
chip_gen: v6e
topology: v6e:2x2x1
jax: 0.10.0
libtpu: 0.0.40
codegen_flags: <defaults>
</compile_context>

<pallas_src>
import functools
import math

import jax
import jax.numpy as jnp
from jax import lax
from jax.experimental import pallas as pl
from jax.experimental.pallas import tpu as pltpu


MXU_DTYPE = jnp.bfloat16   # matmul operand dtype; accumulation is always f32
LN_EPS = 1e-5


def _pick_tile(dim, cap, align):
    """Largest multiple of `align` that divides `dim` and is <= cap (else dim)."""
    if dim <= cap:
        return dim
    t = (cap // align) * align
    while t >= align:
        if dim % t == 0:
            return t
        t -= align
    return dim


# ----------------------------------------------------------------------------
# Tiled linear:  y = act(x @ w + b)
# ----------------------------------------------------------------------------
def _linear_kernel(x_ref, w_ref, b_ref, o_ref, acc_ref, *, activation):
    @pl.when(pl.program_id(2) == 0)
    def _():
        acc_ref[...] = jnp.zeros_like(acc_ref)

    acc_ref[...] += jnp.dot(
        x_ref[...].astype(MXU_DTYPE), w_ref[...],
        preferred_element_type=jnp.float32)

    @pl.when(pl.program_id(2) == pl.num_programs(2) - 1)
    def _():
        y = acc_ref[...] + b_ref[...].astype(jnp.float32)
        if activation == "relu":
            y = jnp.maximum(y, 0.0)
        o_ref[...] = y.astype(o_ref.dtype)


def linear(x, w, b, activation=None, out_dtype=None):
    m, k = x.shape
    n = w.shape[1]
    out_dtype = out_dtype or x.dtype
    tm = _pick_tile(m, 256, 8)
    tn = _pick_tile(n, 256, 128)
    tk = _pick_tile(k, 512, 128)
    grid = (m // tm, n // tn, k // tk)
    return pl.pallas_call(
        functools.partial(_linear_kernel, activation=activation),
        out_shape=jax.ShapeDtypeStruct((m, n), out_dtype),
        grid_spec=pltpu.PrefetchScalarGridSpec(
            num_scalar_prefetch=0,
            grid=grid,
            in_specs=[
                pl.BlockSpec((tm, tk), lambda i, j, kk: (i, kk)),
                pl.BlockSpec((tk, tn), lambda i, j, kk: (kk, j)),
                pl.BlockSpec((1, tn), lambda i, j, kk: (0, j)),
            ],
            out_specs=pl.BlockSpec((tm, tn), lambda i, j, kk: (i, j)),
            scratch_shapes=[pltpu.VMEM((tm, tn), jnp.float32)],
        ),
        compiler_params=pltpu.CompilerParams(
            dimension_semantics=("parallel", "parallel", "arbitrary")),
    )(x, w, b.reshape(1, n))


# ----------------------------------------------------------------------------
# Fused:  out = LayerNorm(residual + a @ w + b)      (attention out-projection)
# ----------------------------------------------------------------------------
def _matmul_res_ln_kernel(a_ref, w_ref, b_ref, res_ref, g_ref, bt_ref, o_ref,
                          *, eps):
    y = jnp.dot(a_ref[...].astype(MXU_DTYPE), w_ref[...],
                preferred_element_type=jnp.float32) + b_ref[...].astype(jnp.float32)
    x = res_ref[...].astype(jnp.float32) + y
    mu = jnp.mean(x, axis=-1, keepdims=True)
    var = jnp.mean(jnp.square(x - mu), axis=-1, keepdims=True)
    xn = (x - mu) * lax.rsqrt(var + eps)
    o_ref[...] = (xn * g_ref[...] + bt_ref[...]).astype(o_ref.dtype)


def matmul_residual_layernorm(a, w, b, residual, gamma, beta, eps=LN_EPS):
    m, k = a.shape
    n = w.shape[1]
    tm = _pick_tile(m, 256, 8)
    return pl.pallas_call(
        functools.partial(_matmul_res_ln_kernel, eps=eps),
        out_shape=jax.ShapeDtypeStruct((m, n), residual.dtype),
        grid=(m // tm,),
        in_specs=[
            pl.BlockSpec((tm, k), lambda i: (i, 0)),
            pl.BlockSpec((k, n), lambda i: (0, 0)),
            pl.BlockSpec((1, n), lambda i: (0, 0)),
            pl.BlockSpec((tm, n), lambda i: (i, 0)),
            pl.BlockSpec((1, n), lambda i: (0, 0)),
            pl.BlockSpec((1, n), lambda i: (0, 0)),
        ],
        out_specs=pl.BlockSpec((tm, n), lambda i: (i, 0)),
        compiler_params=pltpu.CompilerParams(dimension_semantics=("parallel",)),
    )(a, w, b.reshape(1, n), residual, gamma.reshape(1, n), beta.reshape(1, n))


# ----------------------------------------------------------------------------
# Fused FFN:  out = LayerNorm(x + relu(x @ w1 + b1) @ w2 + b2)
# The (tm, 4D) intermediate stays in VMEM.
# ----------------------------------------------------------------------------
def _ffn_res_ln_kernel(x_ref, w1_ref, b1_ref, w2_ref, b2_ref, g_ref, bt_ref,
                       o_ref, *, eps):
    x = x_ref[...]                                        # (tm, D) f32 residual
    h = jnp.dot(x.astype(MXU_DTYPE), w1_ref[...],
                preferred_element_type=jnp.float32) + b1_ref[...].astype(jnp.float32)
    h = jnp.maximum(h, 0.0)
    y = jnp.dot(h.astype(MXU_DTYPE), w2_ref[...],
                preferred_element_type=jnp.float32) + b2_ref[...].astype(jnp.float32)
    z = x.astype(jnp.float32) + y
    mu = jnp.mean(z, axis=-1, keepdims=True)
    var = jnp.mean(jnp.square(z - mu), axis=-1, keepdims=True)
    zn = (z - mu) * lax.rsqrt(var + eps)
    o_ref[...] = (zn * g_ref[...] + bt_ref[...]).astype(o_ref.dtype)


def ffn_residual_layernorm(x, w1, b1, w2, b2, gamma, beta, eps=LN_EPS):
    m, d = x.shape
    dff = w1.shape[1]
    tm = _pick_tile(m, 256, 8)
    return pl.pallas_call(
        functools.partial(_ffn_res_ln_kernel, eps=eps),
        out_shape=jax.ShapeDtypeStruct((m, d), x.dtype),
        grid=(m // tm,),
        in_specs=[
            pl.BlockSpec((tm, d), lambda i: (i, 0)),
            pl.BlockSpec((d, dff), lambda i: (0, 0)),
            pl.BlockSpec((1, dff), lambda i: (0, 0)),
            pl.BlockSpec((dff, d), lambda i: (0, 0)),
            pl.BlockSpec((1, d), lambda i: (0, 0)),
            pl.BlockSpec((1, d), lambda i: (0, 0)),
            pl.BlockSpec((1, d), lambda i: (0, 0)),
        ],
        out_specs=pl.BlockSpec((tm, d), lambda i: (i, 0)),
        compiler_params=pltpu.CompilerParams(dimension_semantics=("parallel",)),
    )(x, w1, b1.reshape(1, dff), w2, b2.reshape(1, d),
      gamma.reshape(1, d), beta.reshape(1, d))


# ----------------------------------------------------------------------------
# Length mask on the encoder:  zero positions >= len_list[b]
# ----------------------------------------------------------------------------
def _mask_kernel(len_ref, x_ref, o_ref):
    b = pl.program_id(0)
    pos = lax.broadcasted_iota(jnp.int32, x_ref.shape, 1)   # (1, S, D) position
    o_ref[...] = jnp.where(pos < len_ref[b], x_ref[...], 0.0).astype(o_ref.dtype)


def apply_mask(encoded, len_list):
    B, S, D = encoded.shape
    return pl.pallas_call(
        _mask_kernel,
        out_shape=jax.ShapeDtypeStruct((B, S, D), encoded.dtype),
        grid_spec=pltpu.PrefetchScalarGridSpec(
            num_scalar_prefetch=1,
            grid=(B,),
            in_specs=[pl.BlockSpec((1, S, D), lambda b, ln: (b, 0, 0))],
            out_specs=pl.BlockSpec((1, S, D), lambda b, ln: (b, 0, 0)),
        ),
        compiler_params=pltpu.CompilerParams(dimension_semantics=("parallel",)),
    )(jnp.asarray(len_list, jnp.int32), encoded)


# ----------------------------------------------------------------------------
# Multi-head attention.  One grid step per batch element over lane-dense
# (T, D) blocks; heads split in-register.  Scores / softmax stay f32.
# ----------------------------------------------------------------------------
def _mha_kernel(q_ref, k_ref, v_ref, o_ref, *, num_heads, causal, scale):
    t, d = q_ref.shape
    s = k_ref.shape[0]
    dh = d // num_heads
    q = q_ref[...] * scale                     # pre-scale q (cheaper than scores)
    k = k_ref[...]
    v = v_ref[...]
    if causal:
        qi = lax.broadcasted_iota(jnp.int32, (t, s), 0)
        ki = lax.broadcasted_iota(jnp.int32, (t, s), 1)
        keep = ki <= qi
    outs = []
    for h in range(num_heads):
        sl = slice(h * dh, (h + 1) * dh)
        sc = jnp.einsum("td,sd->ts", q[:, sl], k[:, sl],
                        preferred_element_type=jnp.float32)          # f32 scores
        if causal:
            sc = jnp.where(keep, sc, jnp.float32(-1e30))
        m = jnp.max(sc, axis=-1, keepdims=True)
        p = jnp.exp(sc - m)
        p = p * pl.reciprocal(jnp.sum(p, axis=-1, keepdims=True), approx=True)
        outs.append(jnp.dot(p.astype(v.dtype), v[:, sl],
                            preferred_element_type=jnp.float32))
    o_ref[...] = jnp.concatenate(outs, axis=-1).astype(o_ref.dtype)


def _mha_call(q_arr, k_arr, v_arr, specs, B, T, D, num_heads, causal):
    dh = D // num_heads
    return pl.pallas_call(
        functools.partial(_mha_kernel, num_heads=num_heads, causal=causal,
                          scale=1.0 / math.sqrt(dh)),
        out_shape=jax.ShapeDtypeStruct((B, T, D), MXU_DTYPE),
        grid=(B,),
        in_specs=specs,
        out_specs=pl.BlockSpec((pl.Squeezed(), T, D), lambda b: (b, 0, 0)),
        compiler_params=pltpu.CompilerParams(dimension_semantics=("parallel",)),
    )(q_arr, k_arr, v_arr)


def mha_self(qkv, num_heads):
    """qkv: (B, T, 3D) packed projections; q/k/v selected via BlockSpec."""
    B, T, D3 = qkv.shape
    D = D3 // 3
    sq = (pl.Squeezed(),)
    specs = [
        pl.BlockSpec(sq + (T, D), lambda b: (b, 0, 0)),   # q
        pl.BlockSpec(sq + (T, D), lambda b: (b, 0, 1)),   # k
        pl.BlockSpec(sq + (T, D), lambda b: (b, 0, 2)),   # v
    ]
    return _mha_call(qkv, qkv, qkv, specs, B, T, D, num_heads, causal=True)


def mha_cross(q, kv, num_heads):
    """q: (B, T, D);  kv: (B, S, 2D) packed encoder projections."""
    B, T, D = q.shape
    S = kv.shape[1]
    sq = (pl.Squeezed(),)
    specs = [
        pl.BlockSpec(sq + (T, D), lambda b: (b, 0, 0)),   # q
        pl.BlockSpec(sq + (S, D), lambda b: (b, 0, 0)),   # k
        pl.BlockSpec(sq + (S, D), lambda b: (b, 0, 1)),   # v
    ]
    return _mha_call(q, kv, kv, specs, B, T, D, num_heads, causal=False)


# ----------------------------------------------------------------------------
# Parameters (deterministic synthetic init; weights stored bf16, rest f32)
# ----------------------------------------------------------------------------
def _init_layer(keys, D):
    def w(shape, scale=0.02):
        return (scale * jax.random.normal(next(keys), shape, jnp.float32)
                ).astype(MXU_DTYPE)
    zf = lambda n: jnp.zeros((n,), jnp.float32)
    p = {
        "wqkv_s": w((D, 3 * D)), "bqkv_s": zf(3 * D),   # fused self-attn QKV
        "wo_s": w((D, D)), "bo_s": zf(D),
        "wq_c": w((D, D)), "bq_c": zf(D),
        "wkv_c": w((D, 2 * D)), "bkv_c": zf(2 * D),     # fused cross-attn KV
        "wo_c": w((D, D)), "bo_c": zf(D),
        "w1": w((D, 4 * D)), "bf1": zf(4 * D),
        "w2": w((4 * D, D)), "bf2": zf(D),
    }
    for i in (1, 2, 3):
        p[f"g{i}"] = jnp.ones((D,), jnp.float32)
        p[f"b{i}"] = jnp.zeros((D,), jnp.float32)
    return p


def init_params(key, model_dim, vocab_size):
    keys = iter(jax.random.split(key, 64))
    return {
        "embedding": 0.02 * jax.random.normal(
            next(keys), (vocab_size, model_dim), jnp.float32),
        "layer1": _init_layer(keys, model_dim),
        "layer2": _init_layer(keys, model_dim),
        "w_out": (0.02 * jax.random.normal(
            next(keys), (model_dim, vocab_size), jnp.float32)).astype(MXU_DTYPE),
        "b_out": jnp.zeros((vocab_size,), jnp.float32),
    }


# ----------------------------------------------------------------------------
# Forward pass
# ----------------------------------------------------------------------------
def decoding_layer(p, enc_masked, x, num_heads):
    B, T, D = x.shape
    S = enc_masked.shape[1]
    x2 = x.reshape(B * T, D)                               # f32 residual stream
    e2 = enc_masked.reshape(B * S, D)

    # masked (causal) self-attention: fused QKV matmul, then attn, then
    # fused out-projection + residual + LN.
    qkv = linear(x2, p["wqkv_s"], p["bqkv_s"], out_dtype=MXU_DTYPE)
    a = mha_self(qkv.reshape(B, T, 3 * D), num_heads).reshape(B * T, D)
    x2 = matmul_residual_layernorm(a, p["wo_s"], p["bo_s"], x2, p["g1"], p["b1"])

    # cross-attention over the (length-masked) encoder states.
    q = linear(x2, p["wq_c"], p["bq_c"], out_dtype=MXU_DTYPE).reshape(B, T, D)
    kv = linear(e2, p["wkv_c"], p["bkv_c"], out_dtype=MXU_DTYPE).reshape(B, S, 2 * D)
    a = mha_cross(q, kv, num_heads).reshape(B * T, D)
    x2 = matmul_residual_layernorm(a, p["wo_c"], p["bo_c"], x2, p["g2"], p["b2"])

    # feed-forward (w1 + relu + w2 + residual + LN fused, 4D stays in VMEM).
    x2 = ffn_residual_layernorm(x2, p["w1"], p["bf1"], p["w2"], p["bf2"],
                                p["g3"], p["b3"])
    return x2.reshape(B, T, D)


def decoder_forward(params, encoded, len_list, decoded_ids, num_heads):
    B, T = decoded_ids.shape
    D = params["embedding"].shape[1]
    V = params["w_out"].shape[1]

    # TODO(synk): token-id embedding gather kept in JAX glue (no clean small
    # Pallas gather path at this size).
    dec = jnp.take(params["embedding"], decoded_ids, axis=0)        # (B, T, D)

    # apply_mask is idempotent (zeroing twice == zeroing once), so the
    # reference's second call is deduplicated: compute once, reuse.
    enc = apply_mask(encoded, len_list)
    dec = decoding_layer(params["layer1"], enc, dec, num_heads)
    dec = decoding_layer(params["layer2"], enc, dec, num_heads)

    logits = linear(dec.reshape(B * T, D), params["w_out"], params["b_out"],
                    out_dtype=jnp.float32)
    return logits.reshape(B, T, V)


# ----------------------------------------------------------------------------
if __name__ == "__main__":
    # D chosen as a multiple of 128 so every activation / output block is
    # lane-dense; V a multiple of 128 for the tiled logits projection.
    B, S_ENC, S_DEC, D, H, V = 2, 8, 8, 128, 4, 256

    key = jax.random.PRNGKey(0)
    k_enc, k_dec, k_param = jax.random.split(key, 3)

    encoded = jax.random.normal(k_enc, (B, S_ENC, D), jnp.float32)
    decoded_ids = jax.random.randint(k_dec, (B, S_DEC), 0, V, dtype=jnp.int32)
    len_list = jnp.array([8, 5], jnp.int32)

    params = init_params(k_param, D, V)

    fwd = jax.jit(functools.partial(decoder_forward, num_heads=H))
    out = fwd(params, encoded, len_list, decoded_ids)
    out = jax.block_until_ready(out)

    assert out.shape == (B, S_DEC, V), out.shape
    assert out.dtype == jnp.float32
    assert bool(jnp.all(jnp.isfinite(out)))
    print("KERNEL_OK")
</pallas_src>

<mosaic_0001>
module attributes {stable_mosaic.version = 11 : i64} {
  func.func @_linear_kernel(%arg0: i32, %arg1: i32, %arg2: i32, %arg3: memref<16x128xf32, #tpu.memory_space<vmem>>, %arg4: memref<128x128xbf16, #tpu.memory_space<vmem>>, %arg5: memref<1x128xf32, #tpu.memory_space<vmem>>, %arg6: memref<16x128xbf16, #tpu.memory_space<vmem>>, %arg7: memref<16x128xf32, #tpu.memory_space<vmem>>) attributes {dimension_semantics = [#tpu.dimension_semantics<parallel>, #tpu.dimension_semantics<parallel>, #tpu.dimension_semantics<arbitrary>], iteration_bounds = array<i64: 1, 3, 1>, scalar_prefetch = 0 : i64, scratch_operands = 1 : i64, tpu.core_type = #tpu.core_type<tc>, window_params = [{transform_indices = @transform_0, window_bounds = array<i64: 16, 128>}, {transform_indices = @transform_1, window_bounds = array<i64: 128, 128>}, {transform_indices = @transform_2, window_bounds = array<i64: 1, 128>}, {transform_indices = @transform_3, window_bounds = array<i64: 16, 128>}]} {
    %c0_i32 = arith.constant 0 : i32
    %0 = arith.cmpi eq, %arg2, %c0_i32 : i32
    %1 = arith.extui %0 : i1 to i32
    %c0_i32_0 = arith.constant 0 : i32
    %2 = arith.cmpi ne, %1, %c0_i32_0 : i32
    scf.if %2 {
      %cst_10 = arith.constant 0.000000e+00 : f32
      %13 = vector.broadcast %cst_10 : f32 to vector<16x128xf32>
      %c0_11 = arith.constant 0 : index
      %c0_12 = arith.constant 0 : index
      %14 = vector.load %arg7[%c0_11, %c0_12] : memref<16x128xf32, #tpu.memory_space<vmem>>, vector<16x128xf32>
      tpu.vector_store %arg7[%c0_11, %c0_12], %13 {strides = array<i32>} : memref<16x128xf32, #tpu.memory_space<vmem>>, vector<16x128xf32>,
    } else {
    }
    %c0 = arith.constant 0 : index
    %c0_1 = arith.constant 0 : index
    %3 = vector.load %arg7[%c0, %c0_1] : memref<16x128xf32, #tpu.memory_space<vmem>>, vector<16x128xf32>
    %c0_2 = arith.constant 0 : index
    %c0_3 = arith.constant 0 : index
    %4 = vector.load %arg3[%c0_2, %c0_3] : memref<16x128xf32, #tpu.memory_space<vmem>>, vector<16x128xf32>
    %5 = arith.truncf %4 : vector<16x128xf32> to vector<16x128xbf16>
    %c0_4 = arith.constant 0 : index
    %c0_5 = arith.constant 0 : index
    %6 = vector.load %arg4[%c0_4, %c0_5] : memref<128x128xbf16, #tpu.memory_space<vmem>>, vector<128x128xbf16>
    %cst = arith.constant dense<0.000000e+00> : vector<16x128xf32>
    %7 = tpu.matmul %5, %6, %cst {dimension_numbers = #tpu.dot_dimension_numbers<[1], [0], [0], [1], [0, 0, 1, 1], [], []>} : vector<16x128xbf16>, vector<128x128xbf16>, vector<16x128xf32> -> vector<16x128xf32>
    %8 = arith.addf %3, %7 : vector<16x128xf32>
    %c0_6 = arith.constant 0 : index
    %c0_7 = arith.constant 0 : index
    %9 = vector.load %arg7[%c0_6, %c0_7] : memref<16x128xf32, #tpu.memory_space<vmem>>, vector<16x128xf32>
    tpu.vector_store %arg7[%c0_6, %c0_7], %8 {strides = array<i32>} : memref<16x128xf32, #tpu.memory_space<vmem>>, vector<16x128xf32>,
    %c0_i32_8 = arith.constant 0 : i32
    %10 = arith.cmpi eq, %arg2, %c0_i32_8 : i32
    %11 = arith.extui %10 : i1 to i32
    %c0_i32_9 = arith.constant 0 : i32
    %12 = arith.cmpi ne, %11, %c0_i32_9 : i32
    scf.if %12 {
      %c0_10 = arith.constant 0 : index
      %c0_11 = arith.constant 0 : index
      %13 = vector.load %arg7[%c0_10, %c0_11] : memref<16x128xf32, #tpu.memory_space<vmem>>, vector<16x128xf32>
      %c0_12 = arith.constant 0 : index
      %c0_13 = arith.constant 0 : index
      %14 = vector.load %arg5[%c0_12, %c0_13] : memref<1x128xf32, #tpu.memory_space<vmem>>, vector<1x128xf32>
      %15 = vector.broadcast %14 : vector<1x128xf32> to vector<16x128xf32>
      %16 = arith.addf %13, %15 : vector<16x128xf32>
      %17 = arith.truncf %16 : vector<16x128xf32> to vector<16x128xbf16>
      %c0_14 = arith.constant 0 : index
      %c0_15 = arith.constant 0 : index
      %18 = vector.load %arg6[%c0_14, %c0_15] : memref<16x128xbf16, #tpu.memory_space<vmem>>, vector<16x128xbf16>
      tpu.vector_store %arg6[%c0_14, %c0_15], %17 {strides = array<i32>} : memref<16x128xbf16, #tpu.memory_space<vmem>>, vector<16x128xbf16>,
    } else {
    }
    return
  }
  func.func @transform_0(%arg0: i32, %arg1: i32, %arg2: i32) -> (i32, i32) {
    %c0_i32 = arith.constant 0 : i32
    return %arg0, %arg2 : i32, i32
  }
  func.func @transform_1(%arg0: i32, %arg1: i32, %arg2: i32) -> (i32, i32) {
    %c0_i32 = arith.constant 0 : i32
    return %arg2, %arg1 : i32, i32
  }
  func.func @transform_2(%arg0: i32, %arg1: i32, %arg2: i32) -> (i32, i32) {
    %c0_i32 = arith.constant 0 : i32
    %c0_i32_0 = arith.constant 0 : i32
    return %c0_i32, %arg1 : i32, i32
  }
  func.func @transform_3(%arg0: i32, %arg1: i32, %arg2: i32) -> (i32, i32) {
    %c0_i32 = arith.constant 0 : i32
    return %arg0, %arg1 : i32, i32
  }
}

module attributes {stable_mosaic.version = 11 : i64} {
  func.func @_matmul_res_ln_kernel(%arg0: i32, %arg1: memref<16x128xbf16, #tpu.memory_space<vmem>>, %arg2: memref<128x128xbf16, #tpu.memory_space<vmem>>, %arg3: memref<1x128xf32, #tpu.memory_space<vmem>>, %arg4: memref<16x128xf32, #tpu.memory_space<vmem>>, %arg5: memref<1x128xf32, #tpu.memory_space<vmem>>, %arg6: memref<1x128xf32, #tpu.memory_space<vmem>>, %arg7: memref<16x128xf32, #tpu.memory_space<vmem>>) attributes {dimension_semantics = [#tpu.dimension_semantics<parallel>], iteration_bounds = array<i64: 1>, scalar_prefetch = 0 : i64, scratch_operands = 0 : i64, tpu.core_type = #tpu.core_type<tc>, window_params = [{transform_indices = @transform_0, window_bounds = array<i64: 16, 128>}, {pipeline_mode = #tpu.pipeline_mode<synchronous>, transform_indices = @transform_1, window_bounds = array<i64: 128, 128>}, {pipeline_mode = #tpu.pipeline_mode<synchronous>, transform_indices = @transform_2, window_bounds = array<i64: 1, 128>}, {transform_indices = @transform_3, window_bounds = array<i64: 16, 128>}, {pipeline_mode = #tpu.pipeline_mode<synchronous>, transform_indices = @transform_4, window_bounds = array<i64: 1, 128>}, {pipeline_mode = #tpu.pipeline_mode<synchronous>, transform_indices = @transform_5, window_bounds = array<i64: 1, 128>}, {transform_indices = @transform_6, window_bounds = array<i64: 16, 128>}]} {
    %c0 = arith.constant 0 : index
    %c0_0 = arith.constant 0 : index
    %0 = vector.load %arg1[%c0, %c0_0] : memref<16x128xbf16, #tpu.memory_space<vmem>>, vector<16x128xbf16>
    %c0_1 = arith.constant 0 : index
    %c0_2 = arith.constant 0 : index
    %1 = vector.load %arg2[%c0_1, %c0_2] : memref<128x128xbf16, #tpu.memory_space<vmem>>, vector<128x128xbf16>
    %cst = arith.constant dense<0.000000e+00> : vector<16x128xf32>
    %2 = tpu.matmul %0, %1, %cst {dimension_numbers = #tpu.dot_dimension_numbers<[1], [0], [0], [1], [0, 0, 1, 1], [], []>} : vector<16x128xbf16>, vector<128x128xbf16>, vector<16x128xf32> -> vector<16x128xf32>
    %c0_3 = arith.constant 0 : index
    %c0_4 = arith.constant 0 : index
    %3 = vector.load %arg3[%c0_3, %c0_4] : memref<1x128xf32, #tpu.memory_space<vmem>>, vector<1x128xf32>
    %4 = vector.broadcast %3 : vector<1x128xf32> to vector<16x128xf32>
    %5 = arith.addf %2, %4 : vector<16x128xf32>
    %c0_5 = arith.constant 0 : index
    %c0_6 = arith.constant 0 : index
    %6 = vector.load %arg4[%c0_5, %c0_6] : memref<16x128xf32, #tpu.memory_space<vmem>>, vector<16x128xf32>
    %7 = arith.addf %6, %5 : vector<16x128xf32>
    %cst_7 = arith.constant dense<0.000000e+00> : vector<16xf32>
    %8 = vector.multi_reduction <add>, %7, %cst_7 [1] : vector<16x128xf32> to vector<16xf32>
    %9 = vector.shape_cast %8 : vector<16xf32> to vector<16x1xf32>
    %cst_8 = arith.constant 1.280000e+02 : f32
    %10 = vector.broadcast %cst_8 : f32 to vector<16x1xf32>
    %11 = arith.divf %9, %10 : vector<16x1xf32>
    %12 = vector.broadcast %11 : vector<16x1xf32> to vector<16x128xf32>
    %13 = arith.subf %7, %12 : vector<16x128xf32>
    %14 = arith.mulf %13, %13 : vector<16x128xf32>
    %cst_9 = arith.constant dense<0.000000e+00> : vector<16xf32>
    %15 = vector.multi_reduction <add>, %14, %cst_9 [1] : vector<16x128xf32> to vector<16xf32>
    %16 = vector.shape_cast %15 : vector<16xf32> to vector<16x1xf32>
    %cst_10 = arith.constant 1.280000e+02 : f32
    %17 = vector.broadcast %cst_10 : f32 to vector<16x1xf32>
    %18 = arith.divf %16, %17 : vector<16x1xf32>
    %19 = vector.broadcast %11 : vector<16x1xf32> to vector<16x128xf32>
    %20 = arith.subf %7, %19 : vector<16x128xf32>
    %cst_11 = arith.constant 9.99999974E-6 : f32
    %21 = vector.broadcast %cst_11 : f32 to vector<16x1xf32>
    %22 = arith.addf %18, %21 : vector<16x1xf32>
    %23 = math.rsqrt %22 : vector<16x1xf32>
    %24 = vector.broadcast %23 : vector<16x1xf32> to vector<16x128xf32>
    %25 = arith.mulf %20, %24 : vector<16x128xf32>
    %c0_12 = arith.constant 0 : index
    %c0_13 = arith.constant 0 : index
    %26 = vector.load %arg5[%c0_12, %c0_13] : memref<1x128xf32, #tpu.memory_space<vmem>>, vector<1x128xf32>
    %27 = vector.broadcast %26 : vector<1x128xf32> to vector<16x128xf32>
    %28 = arith.mulf %25, %27 : vector<16x128xf32>
    %c0_14 = arith.constant 0 : index
    %c0_15 = arith.constant 0 : index
    %29 = vector.load %arg6[%c0_14, %c0_15] : memref<1x128xf32, #tpu.memory_space<vmem>>, vector<1x128xf32>
    %30 = vector.broadcast %29 : vector<1x128xf32> to vector<16x128xf32>
    %31 = arith.addf %28, %30 : vector<16x128xf32>
    %c0_16 = arith.constant 0 : index
    %c0_17 = arith.constant 0 : index
    %32 = vector.load %arg7[%c0_16, %c0_17] : memref<16x128xf32, #tpu.memory_space<vmem>>, vector<16x128xf32>
    tpu.vector_store %arg7[%c0_16, %c0_17], %31 {strides = array<i32>} : memref<16x128xf32, #tpu.memory_space<vmem>>, vector<16x128xf32>,
    return
  }
  func.func @transform_0(%arg0: i32) -> (i32, i32) {
    %c0_i32 = arith.constant 0 : i32
    %c0_i32_0 = arith.constant 0 : i32
    return %arg0, %c0_i32 : i32, i32
  }
  func.func @transform_1(%arg0: i32) -> (i32, i32) {
    %c0_i32 = arith.constant 0 : i32
    %c0_i32_0 = arith.constant 0 : i32
    %c0_i32_1 = arith.constant 0 : i32
    return %c0_i32, %c0_i32_0 : i32, i32
  }
  func.func @transform_2(%arg0: i32) -> (i32, i32) {
    %c0_i32 = arith.constant 0 : i32
    %c0_i32_0 = arith.constant 0 : i32
    %c0_i32_1 = arith.constant 0 : i32
    return %c0_i32, %c0_i32_0 : i32, i32
  }
  func.func @transform_3(%arg0: i32) -> (i32, i32) {
    %c0_i32 = arith.constant 0 : i32
    %c0_i32_0 = arith.constant 0 : i32
    return %arg0, %c0_i32 : i32, i32
  }
  func.func @transform_4(%arg0: i32) -> (i32, i32) {
    %c0_i32 = arith.constant 0 : i32
    %c0_i32_0 = arith.constant 0 : i32
    %c0_i32_1 = arith.constant 0 : i32
    return %c0_i32, %c0_i32_0 : i32, i32
  }
  func.func @transform_5(%arg0: i32) -> (i32, i32) {
    %c0_i32 = arith.constant 0 : i32
    %c0_i32_0 = arith.constant 0 : i32
    %c0_i32_1 = arith.constant 0 : i32
    return %c0_i32, %c0_i32_0 : i32, i32
  }
  func.func @transform_6(%arg0: i32) -> (i32, i32) {
    %c0_i32 = arith.constant 0 : i32
    %c0_i32_0 = arith.constant 0 : i32
    return %arg0, %c0_i32 : i32, i32
  }
}

module attributes {stable_mosaic.version = 11 : i64} {
  func.func @_mha_kernel(%arg0: i32, %arg1: memref<1x8x128xbf16, #tpu.memory_space<vmem>>, %arg2: memref<1x8x128xbf16, #tpu.memory_space<vmem>>, %arg3: memref<1x8x128xbf16, #tpu.memory_space<vmem>>, %arg4: memref<1x8x128xbf16, #tpu.memory_space<vmem>>) attributes {dimension_semantics = [#tpu.dimension_semantics<parallel>], iteration_bounds = array<i64: 2>, scalar_prefetch = 0 : i64, scratch_operands = 0 : i64, tpu.core_type = #tpu.core_type<tc>, window_params = [{transform_indices = @transform_0, window_bounds = array<i64: 1, 8, 128>}, {transform_indices = @transform_1, window_bounds = array<i64: 1, 8, 128>}, {transform_indices = @transform_2, window_bounds = array<i64: 1, 8, 128>}, {transform_indices = @transform_3, window_bounds = array<i64: 1, 8, 128>}]} {
    %c0 = arith.constant 0 : index
    %c0_0 = arith.constant 0 : index
    %c0_1 = arith.constant 0 : index
    %0 = vector.load %arg1[%c0, %c0_0, %c0_1] : memref<1x8x128xbf16, #tpu.memory_space<vmem>>, vector<1x8x128xbf16>
    %1 = vector.shape_cast %0 : vector<1x8x128xbf16> to vector<8x128xbf16>
    %cst = arith.constant 1.767580e-01 : bf16
    %2 = vector.broadcast %cst : bf16 to vector<8x128xbf16>
    %3 = arith.mulf %1, %2 : vector<8x128xbf16>
    %c0_2 = arith.constant 0 : index
    %c0_3 = arith.constant 0 : index
    %c0_4 = arith.constant 0 : index
    %4 = vector.load %arg2[%c0_2, %c0_3, %c0_4] : memref<1x8x128xbf16, #tpu.memory_space<vmem>>, vector<1x8x128xbf16>
    %5 = vector.shape_cast %4 : vector<1x8x128xbf16> to vector<8x128xbf16>
    %c0_5 = arith.constant 0 : index
    %c0_6 = arith.constant 0 : index
    %c0_7 = arith.constant 0 : index
    %6 = vector.load %arg3[%c0_5, %c0_6, %c0_7] : memref<1x8x128xbf16, #tpu.memory_space<vmem>>, vector<1x8x128xbf16>
    %7 = vector.shape_cast %6 : vector<1x8x128xbf16> to vector<8x128xbf16>
    %8 = tpu.iota {dimensions = array<i32: 0>} : vector<8x8xi32>
    %9 = tpu.iota {dimensions = array<i32: 1>} : vector<8x8xi32>
    %10 = arith.cmpi sle, %9, %8 : vector<8x8xi32>
    %11 = vector.extract_strided_slice %3 {offsets = [0, 0], sizes = [8, 32], strides = [1, 1]} : vector<8x128xbf16> to vector<8x32xbf16>
    %12 = vector.extract_strided_slice %5 {offsets = [0, 0], sizes = [8, 32], strides = [1, 1]} : vector<8x128xbf16> to vector<8x32xbf16>
    "tpu.trace_start"() <{level = 10 : i32, message = "td,sd->ts"}> : () -> ()
    %cst_8 = arith.constant dense<0.000000e+00> : vector<8x8xf32>
    %13 = tpu.matmul %11, %12, %cst_8 {dimension_numbers = #tpu.dot_dimension_numbers<[1], [1], [0], [0], [0, 0, 1, 0], [], []>} : vector<8x32xbf16>, vector<8x32xbf16>, vector<8x8xf32> -> vector<8x8xf32>
    %cst_9 = arith.constant -1.000000e+30 : f32
    "tpu.trace_stop"() : () -> ()
    %14 = vector.broadcast %cst_9 : f32 to vector<8x8xf32>
    %15 = arith.select %10, %13, %14 : vector<8x8xi1>, vector<8x8xf32>
    %cst_10 = arith.constant dense<0xFF800000> : vector<8xf32>
    %16 = vector.multi_reduction <maximumf>, %15, %cst_10 [1] : vector<8x8xf32> to vector<8xf32>
    %17 = vector.shape_cast %16 : vector<8xf32> to vector<8x1xf32>
    %18 = vector.broadcast %17 : vector<8x1xf32> to vector<8x8xf32>
    %19 = arith.subf %15, %18 : vector<8x8xf32>
    %20 = math.exp %19 : vector<8x8xf32>
    %cst_11 = arith.constant dense<0.000000e+00> : vector<8xf32>
    %21 = vector.multi_reduction <add>, %20, %cst_11 [1] : vector<8x8xf32> to vector<8xf32>
    %22 = vector.shape_cast %21 : vector<8xf32> to vector<8x1xf32>
    %23 = tpu.reciprocal %22 {approx = true} : vector<8x1xf32> -> vector<8x1xf32>
    %24 = vector.broadcast %23 : vector<8x1xf32> to vector<8x8xf32>
    %25 = arith.mulf %20, %24 : vector<8x8xf32>
    %26 = arith.truncf %25 : vector<8x8xf32> to vector<8x8xbf16>
    %27 = vector.extract_strided_slice %7 {offsets = [0, 0], sizes = [8, 32], strides = [1, 1]} : vector<8x128xbf16> to vector<8x32xbf16>
    %cst_12 = arith.constant dense<0.000000e+00> : vector<8x32xf32>
    %28 = tpu.matmul %26, %27, %cst_12 {dimension_numbers = #tpu.dot_dimension_numbers<[1], [0], [0], [1], [0, 0, 1, 1], [], []>} : vector<8x8xbf16>, vector<8x32xbf16>, vector<8x32xf32> -> vector<8x32xf32>
    %29 = vector.extract_strided_slice %3 {offsets = [0, 32], sizes = [8, 32], strides = [1, 1]} : vector<8x128xbf16> to vector<8x32xbf16>
    %30 = vector.extract_strided_slice %5 {offsets = [0, 32], sizes = [8, 32], strides = [1, 1]} : vector<8x128xbf16> to vector<8x32xbf16>
    "tpu.trace_start"() <{level = 10 : i32, message = "td,sd->ts"}> : () -> ()
    %cst_13 = arith.constant dense<0.000000e+00> : vector<8x8xf32>
    %31 = tpu.matmul %29, %30, %cst_13 {dimension_numbers = #tpu.dot_dimension_numbers<[1], [1], [0], [0], [0, 0, 1, 0], [], []>} : vector<8x32xbf16>, vector<8x32xbf16>, vector<8x8xf32> -> vector<8x8xf32>
    %cst_14 = arith.constant -1.000000e+30 : f32
    "tpu.trace_stop"() : () -> ()
    %32 = vector.broadcast %cst_14 : f32 to vector<8x8xf32>
    %33 = arith.select %10, %31, %32 : vector<8x8xi1>, vector<8x8xf32>
    %cst_15 = arith.constant dense<0xFF800000> : vector<8xf32>
    %34 = vector.multi_reduction <maximumf>, %33, %cst_15 [1] : vector<8x8xf32> to vector<8xf32>
    %35 = vector.shape_cast %34 : vector<8xf32> to vector<8x1xf32>
    %36 = vector.broadcast %35 : vector<8x1xf32> to vector<8x8xf32>
    %37 = arith.subf %33, %36 : vector<8x8xf32>
    %38 = math.exp %37 : vector<8x8xf32>
    %cst_16 = arith.constant dense<0.000000e+00> : vector<8xf32>
    %39 = vector.multi_reduction <add>, %38, %cst_16 [1] : vector<8x8xf32> to vector<8xf32>
    %40 = vector.shape_cast %39 : vector<8xf32> to vector<8x1xf32>
    %41 = tpu.reciprocal %40 {approx = true} : vector<8x1xf32> -> vector<8x1xf32>
    %42 = vector.broadcast %41 : vector<8x1xf32> to vector<8x8xf32>
    %43 = arith.mulf %38, %42 : vector<8x8xf32>
    %44 = arith.truncf %43 : vector<8x8xf32> to vector<8x8xbf16>
    %45 = vector.extract_strided_slice %7 {offsets = [0, 32], sizes = [8, 32], strides = [1, 1]} : vector<8x128xbf16> to vector<8x32xbf16>
    %cst_17 = arith.constant dense<0.000000e+00> : vector<8x32xf32>
    %46 = tpu.matmul %44, %45, %cst_17 {dimension_numbers = #tpu.dot_dimension_numbers<[1], [0], [0], [1], [0, 0, 1, 1], [], []>} : vector<8x8xbf16>, vector<8x32xbf16>, vector<8x32xf32> -> vector<8x32xf32>
    %47 = vector.extract_strided_slice %3 {offsets = [0, 64], sizes = [8, 32], strides = [1, 1]} : vector<8x128xbf16> to vector<8x32xbf16>
    %48 = vector.extract_strided_slice %5 {offsets = [0, 64], sizes = [8, 32], strides = [1, 1]} : vector<8x128xbf16> to vector<8x32xbf16>
    "tpu.trace_start"() <{level = 10 : i32, message = "td,sd->ts"}> : () -> ()
    %cst_18 = arith.constant dense<0.000000e+00> : vector<8x8xf32>
    %49 = tpu.matmul %47, %48, %cst_18 {dimension_numbers = #tpu.dot_dimension_numbers<[1], [1], [0], [0], [0, 0, 1, 0], [], []>} : vector<8x32xbf16>, vector<8x32xbf16>, vector<8x8xf32> -> vector<8x8xf32>
    %cst_19 = arith.constant -1.000000e+30 : f32
    "tpu.trace_stop"() : () -> ()
    %50 = vector.broadcast %cst_19 : f32 to vector<8x8xf32>
    %51 = arith.select %10, %49, %50 : vector<8x8xi1>, vector<8x8xf32>
    %cst_20 = arith.constant dense<0xFF800000> : vector<8xf32>
    %52 = vector.multi_reduction <maximumf>, %51, %cst_20 [1] : vector<8x8xf32> to vector<8xf32>
    %53 = vector.shape_cast %52 : vector<8xf32> to vector<8x1xf32>
    %54 = vector.broadcast %53 : vector<8x1xf32> to vector<8x8xf32>
    %55 = arith.subf %51, %54 : vector<8x8xf32>
    %56 = math.exp %55 : vector<8x8xf32>
    %cst_21 = arith.constant dense<0.000000e+00> : vector<8xf32>
    %57 = vector.multi_reduction <add>, %56, %cst_21 [1] : vector<8x8xf32> to vector<8xf32>
    %58 = vector.shape_cast %57 : vector<8xf32> to vector<8x1xf32>
    %59 = tpu.reciprocal %58 {approx = true} : vector<8x1xf32> -> vector<8x1xf32>
    %60 = vector.broadcast %59 : vector<8x1xf32> to vector<8x8xf32>
    %61 = arith.mulf %56, %60 : vector<8x8xf32>
    %62 = arith.truncf %61 : vector<8x8xf32> to vector<8x8xbf16>
    %63 = vector.extract_strided_slice %7 {offsets = [0, 64], sizes = [8, 32], strides = [1, 1]} : vector<8x128xbf16> to vector<8x32xbf16>
    %cst_22 = arith.constant dense<0.000000e+00> : vector<8x32xf32>
    %64 = tpu.matmul %62, %63, %cst_22 {dimension_numbers = #tpu.dot_dimension_numbers<[1], [0], [0], [1], [0, 0, 1, 1], [], []>} : vector<8x8xbf16>, vector<8x32xbf16>, vector<8x32xf32> -> vector<8x32xf32>
    %65 = vector.extract_strided_slice %3 {offsets = [0, 96], sizes = [8, 32], strides = [1, 1]} : vector<8x128xbf16> to vector<8x32xbf16>
    %66 = vector.extract_strided_slice %5 {offsets = [0, 96], sizes = [8, 32], strides = [1, 1]} : vector<8x128xbf16> to vector<8x32xbf16>
    "tpu.trace_start"() <{level = 10 : i32, message = "td,sd->ts"}> : () -> ()
    %cst_23 = arith.constant dense<0.000000e+00> : vector<8x8xf32>
    %67 = tpu.matmul %65, %66, %cst_23 {dimension_numbers = #tpu.dot_dimension_numbers<[1], [1], [0], [0], [0, 0, 1, 0], [], []>} : vector<8x32xbf16>, vector<8x32xbf16>, vector<8x8xf32> -> vector<8x8xf32>
    %cst_24 = arith.constant -1.000000e+30 : f32
    "tpu.trace_stop"() : () -> ()
    %68 = vector.broadcast %cst_24 : f32 to vector<8x8xf32>
    %69 = arith.select %10, %67, %68 : vector<8x8xi1>, vector<8x8xf32>
    %cst_25 = arith.constant dense<0xFF800000> : vector<8xf32>
    %70 = vector.multi_reduction <maximumf>, %69, %cst_25 [1] : vector<8x8xf32> to vector<8xf32>
    %71 = vector.shape_cast %70 : vector<8xf32> to vector<8x1xf32>
    %72 = vector.broadcast %71 : vector<8x1xf32> to vector<8x8xf32>
    %73 = arith.subf %69, %72 : vector<8x8xf32>
    %74 = math.exp %73 : vector<8x8xf32>
    %cst_26 = arith.constant dense<0.000000e+00> : vector<8xf32>
    %75 = vector.multi_reduction <add>, %74, %cst_26 [1] : vector<8x8xf32> to vector<8xf32>
    %76 = vector.shape_cast %75 : vector<8xf32> to vector<8x1xf32>
    %77 = tpu.reciprocal %76 {approx = true} : vector<8x1xf32> -> vector<8x1xf32>
    %78 = vector.broadcast %77 : vector<8x1xf32> to vector<8x8xf32>
    %79 = arith.mulf %74, %78 : vector<8x8xf32>
    %80 = arith.truncf %79 : vector<8x8xf32> to vector<8x8xbf16>
    %81 = vector.extract_strided_slice %7 {offsets = [0, 96], sizes = [8, 32], strides = [1, 1]} : vector<8x128xbf16> to vector<8x32xbf16>
    %cst_27 = arith.constant dense<0.000000e+00> : vector<8x32xf32>
    %82 = tpu.matmul %80, %81, %cst_27 {dimension_numbers = #tpu.dot_dimension_numbers<[1], [0], [0], [1], [0, 0, 1, 1], [], []>} : vector<8x8xbf16>, vector<8x32xbf16>, vector<8x32xf32> -> vector<8x32xf32>
    %83 = tpu.concatenate %28, %46, %64, %82 in 1 : vector<8x32xf32>, vector<8x32xf32>, vector<8x32xf32>, vector<8x32xf32> -> vector<8x128xf32>
    %84 = arith.truncf %83 : vector<8x128xf32> to vector<8x128xbf16>
    %c0_28 = arith.constant 0 : index
    %c0_29 = arith.constant 0 : index
    %c0_30 = arith.constant 0 : index
    %85 = vector.load %arg4[%c0_28, %c0_29, %c0_30] : memref<1x8x128xbf16, #tpu.memory_space<vmem>>, vector<1x8x128xbf16>
    %86 = vector.shape_cast %85 : vector<1x8x128xbf16> to vector<8x128xbf16>
    %87 = vector.shape_cast %84 : vector<8x128xbf16> to vector<1x8x128xbf16>
    tpu.vector_store %arg4[%c0_28, %c0_29, %c0_30], %87 {strides = array<i32>} : memref<1x8x128xbf16, #tpu.memory_space<vmem>>, vector<1x8x128xbf16>,
    return
  }
  func.func @transform_0(%arg0: i32) -> (i32, i32, i32) {
    %c0_i32 = arith.constant 0 : i32
    %c0_i32_0 = arith.constant 0 : i32
    %c0_i32_1 = arith.constant 0 : i32
    return %arg0, %c0_i32, %c0_i32_0 : i32, i32, i32
  }
  func.func @transform_1(%arg0: i32) -> (i32, i32, i32) {
    %c0_i32 = arith.constant 0 : i32
    %c1_i32 = arith.constant 1 : i32
    %c0_i32_0 = arith.constant 0 : i32
    return %arg0, %c0_i32, %c1_i32 : i32, i32, i32
  }
  func.func @transform_2(%arg0: i32) -> (i32, i32, i32) {
    %c0_i32 = arith.constant 0 : i32
    %c2_i32 = arith.constant 2 : i32
    %c0_i32_0 = arith.constant 0 : i32
    return %arg0, %c0_i32, %c2_i32 : i32, i32, i32
  }
  func.func @transform_3(%arg0: i32) -> (i32, i32, i32) {
    %c0_i32 = arith.constant 0 : i32
    %c0_i32_0 = arith.constant 0 : i32
    %c0_i32_1 = arith.constant 0 : i32
    return %arg0, %c0_i32, %c0_i32_0 : i32, i32, i32
  }
}

module attributes {stable_mosaic.version = 11 : i64} {
  func.func @_linear_kernel(%arg0: i32, %arg1: i32, %arg2: i32, %arg3: memref<16x128xf32, #tpu.memory_space<vmem>>, %arg4: memref<128x128xbf16, #tpu.memory_space<vmem>>, %arg5: memref<1x128xf32, #tpu.memory_space<vmem>>, %arg6: memref<16x128xbf16, #tpu.memory_space<vmem>>, %arg7: memref<16x128xf32, #tpu.memory_space<vmem>>) attributes {dimension_semantics = [#tpu.dimension_semantics<parallel>, #tpu.dimension_semantics<parallel>, #tpu.dimension_semantics<arbitrary>], iteration_bounds = array<i64: 1, 1, 1>, scalar_prefetch = 0 : i64, scratch_operands = 1 : i64, tpu.core_type = #tpu.core_type<tc>, window_params = [{transform_indices = @transform_0, window_bounds = array<i64: 16, 128>}, {transform_indices = @transform_1, window_bounds = array<i64: 128, 128>}, {transform_indices = @transform_2, window_bounds = array<i64: 1, 128>}, {transform_indices = @transform_3, window_bounds = array<i64: 16, 128>}]} {
    %c0_i32 = arith.constant 0 : i32
    %0 = arith.cmpi eq, %arg2, %c0_i32 : i32
    %1 = arith.extui %0 : i1 to i32
    %c0_i32_0 = arith.constant 0 : i32
    %2 = arith.cmpi ne, %1, %c0_i32_0 : i32
    scf.if %2 {
      %cst_10 = arith.constant 0.000000e+00 : f32
      %13 = vector.broadcast %cst_10 : f32 to vector<16x128xf32>
      %c0_11 = arith.constant 0 : index
      %c0_12 = arith.constant 0 : index
      %14 = vector.load %arg7[%c0_11, %c0_12] : memref<16x128xf32, #tpu.memory_space<vmem>>, vector<16x128xf32>
      tpu.vector_store %arg7[%c0_11, %c0_12], %13 {strides = array<i32>} : memref<16x128xf32, #tpu.memory_space<vmem>>, vector<16x128xf32>,
    } else {
    }
    %c0 = arith.constant 0 : index
    %c0_1 = arith.constant 0 : index
    %3 = vector.load %arg7[%c0, %c0_1] : memref<16x128xf32, #tpu.memory_space<vmem>>, vector<16x128xf32>
    %c0_2 = arith.constant 0 : index
    %c0_3 = arith.constant 0 : index
    %4 = vector.load %arg3[%c0_2, %c0_3] : memref<16x128xf32, #tpu.memory_space<vmem>>, vector<16x128xf32>
    %5 = arith.truncf %4 : vector<16x128xf32> to vector<16x128xbf16>
    %c0_4 = arith.constant 0 : index
    %c0_5 = arith.constant 0 : index
    %6 = vector.load %arg4[%c0_4, %c0_5] : memref<128x128xbf16, #tpu.memory_space<vmem>>, vector<128x128xbf16>
    %cst = arith.constant dense<0.000000e+00> : vector<16x128xf32>
    %7 = tpu.matmul %5, %6, %cst {dimension_numbers = #tpu.dot_dimension_numbers<[1], [0], [0], [1], [0, 0, 1, 1], [], []>} : vector<16x128xbf16>, vector<128x128xbf16>, vector<16x128xf32> -> vector<16x128xf32>
    %8 = arith.addf %3, %7 : vector<16x128xf32>
    %c0_6 = arith.constant 0 : index
    %c0_7 = arith.constant 0 : index
    %9 = vector.load %arg7[%c0_6, %c0_7] : memref<16x128xf32, #tpu.memory_space<vmem>>, vector<16x128xf32>
    tpu.vector_store %arg7[%c0_6, %c0_7], %8 {strides = array<i32>} : memref<16x128xf32, #tpu.memory_space<vmem>>, vector<16x128xf32>,
    %c0_i32_8 = arith.constant 0 : i32
    %10 = arith.cmpi eq, %arg2, %c0_i32_8 : i32
    %11 = arith.extui %10 : i1 to i32
    %c0_i32_9 = arith.constant 0 : i32
    %12 = arith.cmpi ne, %11, %c0_i32_9 : i32
    scf.if %12 {
      %c0_10 = arith.constant 0 : index
      %c0_11 = arith.constant 0 : index
      %13 = vector.load %arg7[%c0_10, %c0_11] : memref<16x128xf32, #tpu.memory_space<vmem>>, vector<16x128xf32>
      %c0_12 = arith.constant 0 : index
      %c0_13 = arith.constant 0 : index
      %14 = vector.load %arg5[%c0_12, %c0_13] : memref<1x128xf32, #tpu.memory_space<vmem>>, vector<1x128xf32>
      %15 = vector.broadcast %14 : vector<1x128xf32> to vector<16x128xf32>
      %16 = arith.addf %13, %15 : vector<16x128xf32>
      %17 = arith.truncf %16 : vector<16x128xf32> to vector<16x128xbf16>
      %c0_14 = arith.constant 0 : index
      %c0_15 = arith.constant 0 : index
      %18 = vector.load %arg6[%c0_14, %c0_15] : memref<16x128xbf16, #tpu.memory_space<vmem>>, vector<16x128xbf16>
      tpu.vector_store %arg6[%c0_14, %c0_15], %17 {strides = array<i32>} : memref<16x128xbf16, #tpu.memory_space<vmem>>, vector<16x128xbf16>,
    } else {
    }
    return
  }
  func.func @transform_0(%arg0: i32, %arg1: i32, %arg2: i32) -> (i32, i32) {
    %c0_i32 = arith.constant 0 : i32
    return %arg0, %arg2 : i32, i32
  }
  func.func @transform_1(%arg0: i32, %arg1: i32, %arg2: i32) -> (i32, i32) {
    %c0_i32 = arith.constant 0 : i32
    return %arg2, %arg1 : i32, i32
  }
  func.func @transform_2(%arg0: i32, %arg1: i32, %arg2: i32) -> (i32, i32) {
    %c0_i32 = arith.constant 0 : i32
    %c0_i32_0 = arith.constant 0 : i32
    return %c0_i32, %arg1 : i32, i32
  }
  func.func @transform_3(%arg0: i32, %arg1: i32, %arg2: i32) -> (i32, i32) {
    %c0_i32 = arith.constant 0 : i32
    return %arg0, %arg1 : i32, i32
  }
}

module attributes {stable_mosaic.version = 11 : i64} {
  func.func @_mask_kernel(%arg0: i32, %arg1: memref<2xi32, #tpu.memory_space<smem>>, %arg2: memref<1x8x128xf32, #tpu.memory_space<vmem>>, %arg3: memref<1x8x128xf32, #tpu.memory_space<vmem>>) attributes {dimension_semantics = [#tpu.dimension_semantics<parallel>], iteration_bounds = array<i64: 2>, scalar_prefetch = 1 : i64, scratch_operands = 0 : i64, tpu.core_type = #tpu.core_type<tc>, window_params = [{transform_indices = @transform_0, window_bounds = array<i64: 1, 8, 128>}, {transform_indices = @transform_1, window_bounds = array<i64: 1, 8, 128>}]} {
    %0 = tpu.iota {dimensions = array<i32: 1>} : vector<1x8x128xi32>
    %1 = arith.index_cast %arg0 : i32 to index
    %2 = memref.load %arg1[%1] : memref<2xi32, #tpu.memory_space<smem>>
    %3 = vector.broadcast %2 : i32 to vector<1x8x128xi32>
    %4 = arith.cmpi slt, %0, %3 : vector<1x8x128xi32>
    %c0 = arith.constant 0 : index
    %c0_0 = arith.constant 0 : index
    %c0_1 = arith.constant 0 : index
    %5 = vector.load %arg2[%c0, %c0_0, %c0_1] : memref<1x8x128xf32, #tpu.memory_space<vmem>>, vector<1x8x128xf32>
    %cst = arith.constant 0.000000e+00 : f32
    %6 = vector.broadcast %cst : f32 to vector<1x8x128xf32>
    %7 = arith.select %4, %5, %6 : vector<1x8x128xi1>, vector<1x8x128xf32>
    %c0_2 = arith.constant 0 : index
    %c0_3 = arith.constant 0 : index
    %c0_4 = arith.constant 0 : index
    %8 = vector.load %arg3[%c0_2, %c0_3, %c0_4] : memref<1x8x128xf32, #tpu.memory_space<vmem>>, vector<1x8x128xf32>
    tpu.vector_store %arg3[%c0_2, %c0_3, %c0_4], %7 {strides = array<i32>} : memref<1x8x128xf32, #tpu.memory_space<vmem>>, vector<1x8x128xf32>,
    return
  }
  func.func @transform_0(%arg0: i32, %arg1: memref<2xi32, #tpu.memory_space<smem>>) -> (i32, i32, i32) {
    %c0_i32 = arith.constant 0 : i32
    %c0_i32_0 = arith.constant 0 : i32
    %c0_i32_1 = arith.constant 0 : i32
    return %arg0, %c0_i32, %c0_i32_0 : i32, i32, i32
  }
  func.func @transform_1(%arg0: i32, %arg1: memref<2xi32, #tpu.memory_space<smem>>) -> (i32, i32, i32) {
    %c0_i32 = arith.constant 0 : i32
    %c0_i32_0 = arith.constant 0 : i32
    %c0_i32_1 = arith.constant 0 : i32
    return %arg0, %c0_i32, %c0_i32_0 : i32, i32, i32
  }
}

module attributes {stable_mosaic.version = 11 : i64} {
  func.func @_linear_kernel(%arg0: i32, %arg1: i32, %arg2: i32, %arg3: memref<16x128xf32, #tpu.memory_space<vmem>>, %arg4: memref<128x256xbf16, #tpu.memory_space<vmem>>, %arg5: memref<1x256xf32, #tpu.memory_space<vmem>>, %arg6: memref<16x256xbf16, #tpu.memory_space<vmem>>, %arg7: memref<16x256xf32, #tpu.memory_space<vmem>>) attributes {dimension_semantics = [#tpu.dimension_semantics<parallel>, #tpu.dimension_semantics<parallel>, #tpu.dimension_semantics<arbitrary>], iteration_bounds = array<i64: 1, 1, 1>, scalar_prefetch = 0 : i64, scratch_operands = 1 : i64, tpu.core_type = #tpu.core_type<tc>, window_params = [{transform_indices = @transform_0, window_bounds = array<i64: 16, 128>}, {transform_indices = @transform_1, window_bounds = array<i64: 128, 256>}, {transform_indices = @transform_2, window_bounds = array<i64: 1, 256>}, {transform_indices = @transform_3, window_bounds = array<i64: 16, 256>}]} {
    %c0_i32 = arith.constant 0 : i32
    %0 = arith.cmpi eq, %arg2, %c0_i32 : i32
    %1 = arith.extui %0 : i1 to i32
    %c0_i32_0 = arith.constant 0 : i32
    %2 = arith.cmpi ne, %1, %c0_i32_0 : i32
    scf.if %2 {
      %cst_10 = arith.constant 0.000000e+00 : f32
      %13 = vector.broadcast %cst_10 : f32 to vector<16x256xf32>
      %c0_11 = arith.constant 0 : index
      %c0_12 = arith.constant 0 : index
      %14 = vector.load %arg7[%c0_11, %c0_12] : memref<16x256xf32, #tpu.memory_space<vmem>>, vector<16x256xf32>
      tpu.vector_store %arg7[%c0_11, %c0_12], %13 {strides = array<i32>} : memref<16x256xf32, #tpu.memory_space<vmem>>, vector<16x256xf32>,
    } else {
    }
    %c0 = arith.constant 0 : index
    %c0_1 = arith.constant 0 : index
    %3 = vector.load %arg7[%c0, %c0_1] : memref<16x256xf32, #tpu.memory_space<vmem>>, vector<16x256xf32>
    %c0_2 = arith.constant 0 : index
    %c0_3 = arith.constant 0 : index
    %4 = vector.load %arg3[%c0_2, %c0_3] : memref<16x128xf32, #tpu.memory_space<vmem>>, vector<16x128xf32>
    %5 = arith.truncf %4 : vector<16x128xf32> to vector<16x128xbf16>
    %c0_4 = arith.constant 0 : index
    %c0_5 = arith.constant 0 : index
    %6 = vector.load %arg4[%c0_4, %c0_5] : memref<128x256xbf16, #tpu.memory_space<vmem>>, vector<128x256xbf16>
    %cst = arith.constant dense<0.000000e+00> : vector<16x256xf32>
    %7 = tpu.matmul %5, %6, %cst {dimension_numbers = #tpu.dot_dimension_numbers<[1], [0], [0], [1], [0, 0, 1, 1], [], []>} : vector<16x128xbf16>, vector<128x256xbf16>, vector<16x256xf32> -> vector<16x256xf32>
    %8 = arith.addf %3, %7 : vector<16x256xf32>
    %c0_6 = arith.constant 0 : index
    %c0_7 = arith.constant 0 : index
    %9 = vector.load %arg7[%c0_6, %c0_7] : memref<16x256xf32, #tpu.memory_space<vmem>>, vector<16x256xf32>
    tpu.vector_store %arg7[%c0_6, %c0_7], %8 {strides = array<i32>} : memref<16x256xf32, #tpu.memory_space<vmem>>, vector<16x256xf32>,
    %c0_i32_8 = arith.constant 0 : i32
    %10 = arith.cmpi eq, %arg2, %c0_i32_8 : i32
    %11 = arith.extui %10 : i1 to i32
    %c0_i32_9 = arith.constant 0 : i32
    %12 = arith.cmpi ne, %11, %c0_i32_9 : i32
    scf.if %12 {
      %c0_10 = arith.constant 0 : index
      %c0_11 = arith.constant 0 : index
      %13 = vector.load %arg7[%c0_10, %c0_11] : memref<16x256xf32, #tpu.memory_space<vmem>>, vector<16x256xf32>
      %c0_12 = arith.constant 0 : index
      %c0_13 = arith.constant 0 : index
      %14 = vector.load %arg5[%c0_12, %c0_13] : memref<1x256xf32, #tpu.memory_space<vmem>>, vector<1x256xf32>
      %15 = vector.broadcast %14 : vector<1x256xf32> to vector<16x256xf32>
      %16 = arith.addf %13, %15 : vector<16x256xf32>
      %17 = arith.truncf %16 : vector<16x256xf32> to vector<16x256xbf16>
      %c0_14 = arith.constant 0 : index
      %c0_15 = arith.constant 0 : index
      %18 = vector.load %arg6[%c0_14, %c0_15] : memref<16x256xbf16, #tpu.memory_space<vmem>>, vector<16x256xbf16>
      tpu.vector_store %arg6[%c0_14, %c0_15], %17 {strides = array<i32>} : memref<16x256xbf16, #tpu.memory_space<vmem>>, vector<16x256xbf16>,
    } else {
    }
    return
  }
  func.func @transform_0(%arg0: i32, %arg1: i32, %arg2: i32) -> (i32, i32) {
    %c0_i32 = arith.constant 0 : i32
    return %arg0, %arg2 : i32, i32
  }
  func.func @transform_1(%arg0: i32, %arg1: i32, %arg2: i32) -> (i32, i32) {
    %c0_i32 = arith.constant 0 : i32
    return %arg2, %arg1 : i32, i32
  }
  func.func @transform_2(%arg0: i32, %arg1: i32, %arg2: i32) -> (i32, i32) {
    %c0_i32 = arith.constant 0 : i32
    %c0_i32_0 = arith.constant 0 : i32
    return %c0_i32, %arg1 : i32, i32
  }
  func.func @transform_3(%arg0: i32, %arg1: i32, %arg2: i32) -> (i32, i32) {
    %c0_i32 = arith.constant 0 : i32
    return %arg0, %arg1 : i32, i32
  }
}

module attributes {stable_mosaic.version = 11 : i64} {
  func.func @_mha_kernel(%arg0: i32, %arg1: memref<1x8x128xbf16, #tpu.memory_space<vmem>>, %arg2: memref<1x8x128xbf16, #tpu.memory_space<vmem>>, %arg3: memref<1x8x128xbf16, #tpu.memory_space<vmem>>, %arg4: memref<1x8x128xbf16, #tpu.memory_space<vmem>>) attributes {dimension_semantics = [#tpu.dimension_semantics<parallel>], iteration_bounds = array<i64: 2>, scalar_prefetch = 0 : i64, scratch_operands = 0 : i64, tpu.core_type = #tpu.core_type<tc>, window_params = [{transform_indices = @transform_0, window_bounds = array<i64: 1, 8, 128>}, {transform_indices = @transform_1, window_bounds = array<i64: 1, 8, 128>}, {transform_indices = @transform_2, window_bounds = array<i64: 1, 8, 128>}, {transform_indices = @transform_3, window_bounds = array<i64: 1, 8, 128>}]} {
    %c0 = arith.constant 0 : index
    %c0_0 = arith.constant 0 : index
    %c0_1 = arith.constant 0 : index
    %0 = vector.load %arg1[%c0, %c0_0, %c0_1] : memref<1x8x128xbf16, #tpu.memory_space<vmem>>, vector<1x8x128xbf16>
    %1 = vector.shape_cast %0 : vector<1x8x128xbf16> to vector<8x128xbf16>
    %cst = arith.constant 1.767580e-01 : bf16
    %2 = vector.broadcast %cst : bf16 to vector<8x128xbf16>
    %3 = arith.mulf %1, %2 : vector<8x128xbf16>
    %c0_2 = arith.constant 0 : index
    %c0_3 = arith.constant 0 : index
    %c0_4 = arith.constant 0 : index
    %4 = vector.load %arg2[%c0_2, %c0_3, %c0_4] : memref<1x8x128xbf16, #tpu.memory_space<vmem>>, vector<1x8x128xbf16>
    %5 = vector.shape_cast %4 : vector<1x8x128xbf16> to vector<8x128xbf16>
    %c0_5 = arith.constant 0 : index
    %c0_6 = arith.constant 0 : index
    %c0_7 = arith.constant 0 : index
    %6 = vector.load %arg3[%c0_5, %c0_6, %c0_7] : memref<1x8x128xbf16, #tpu.memory_space<vmem>>, vector<1x8x128xbf16>
    %7 = vector.shape_cast %6 : vector<1x8x128xbf16> to vector<8x128xbf16>
    %8 = vector.extract_strided_slice %3 {offsets = [0, 0], sizes = [8, 32], strides = [1, 1]} : vector<8x128xbf16> to vector<8x32xbf16>
    %9 = vector.extract_strided_slice %5 {offsets = [0, 0], sizes = [8, 32], strides = [1, 1]} : vector<8x128xbf16> to vector<8x32xbf16>
    "tpu.trace_start"() <{level = 10 : i32, message = "td,sd->ts"}> : () -> ()
    %cst_8 = arith.constant dense<0.000000e+00> : vector<8x8xf32>
    %10 = tpu.matmul %8, %9, %cst_8 {dimension_numbers = #tpu.dot_dimension_numbers<[1], [1], [0], [0], [0, 0, 1, 0], [], []>} : vector<8x32xbf16>, vector<8x32xbf16>, vector<8x8xf32> -> vector<8x8xf32>
    "tpu.trace_stop"() : () -> ()
    %cst_9 = arith.constant dense<0xFF800000> : vector<8xf32>
    %11 = vector.multi_reduction <maximumf>, %10, %cst_9 [1] : vector<8x8xf32> to vector<8xf32>
    %12 = vector.shape_cast %11 : vector<8xf32> to vector<8x1xf32>
    %13 = vector.broadcast %12 : vector<8x1xf32> to vector<8x8xf32>
    %14 = arith.subf %10, %13 : vector<8x8xf32>
    %15 = math.exp %14 : vector<8x8xf32>
    %cst_10 = arith.constant dense<0.000000e+00> : vector<8xf32>
    %16 = vector.multi_reduction <add>, %15, %cst_10 [1] : vector<8x8xf32> to vector<8xf32>
    %17 = vector.shape_cast %16 : vector<8xf32> to vector<8x1xf32>
    %18 = tpu.reciprocal %17 {approx = true} : vector<8x1xf32> -> vector<8x1xf32>
    %19 = vector.broadcast %18 : vector<8x1xf32> to vector<8x8xf32>
    %20 = arith.mulf %15, %19 : vector<8x8xf32>
    %21 = arith.truncf %20 : vector<8x8xf32> to vector<8x8xbf16>
    %22 = vector.extract_strided_slice %7 {offsets = [0, 0], sizes = [8, 32], strides = [1, 1]} : vector<8x128xbf16> to vector<8x32xbf16>
    %cst_11 = arith.constant dense<0.000000e+00> : vector<8x32xf32>
    %23 = tpu.matmul %21, %22, %cst_11 {dimension_numbers = #tpu.dot_dimension_numbers<[1], [0], [0], [1], [0, 0, 1, 1], [], []>} : vector<8x8xbf16>, vector<8x32xbf16>, vector<8x32xf32> -> vector<8x32xf32>
    %24 = vector.extract_strided_slice %3 {offsets = [0, 32], sizes = [8, 32], strides = [1, 1]} : vector<8x128xbf16> to vector<8x32xbf16>
    %25 = vector.extract_strided_slice %5 {offsets = [0, 32], sizes = [8, 32], strides = [1, 1]} : vector<8x128xbf16> to vector<8x32xbf16>
    "tpu.trace_start"() <{level = 10 : i32, message = "td,sd->ts"}> : () -> ()
    %cst_12 = arith.constant dense<0.000000e+00> : vector<8x8xf32>
    %26 = tpu.matmul %24, %25, %cst_12 {dimension_numbers = #tpu.dot_dimension_numbers<[1], [1], [0], [0], [0, 0, 1, 0], [], []>} : vector<8x32xbf16>, vector<8x32xbf16>, vector<8x8xf32> -> vector<8x8xf32>
    "tpu.trace_stop"() : () -> ()
    %cst_13 = arith.constant dense<0xFF800000> : vector<8xf32>
    %27 = vector.multi_reduction <maximumf>, %26, %cst_13 [1] : vector<8x8xf32> to vector<8xf32>
    %28 = vector.shape_cast %27 : vector<8xf32> to vector<8x1xf32>
    %29 = vector.broadcast %28 : vector<8x1xf32> to vector<8x8xf32>
    %30 = arith.subf %26, %29 : vector<8x8xf32>
    %31 = math.exp %30 : vector<8x8xf32>
    %cst_14 = arith.constant dense<0.000000e+00> : vector<8xf32>
    %32 = vector.multi_reduction <add>, %31, %cst_14 [1] : vector<8x8xf32> to vector<8xf32>
    %33 = vector.shape_cast %32 : vector<8xf32> to vector<8x1xf32>
    %34 = tpu.reciprocal %33 {approx = true} : vector<8x1xf32> -> vector<8x1xf32>
    %35 = vector.broadcast %34 : vector<8x1xf32> to vector<8x8xf32>
    %36 = arith.mulf %31, %35 : vector<8x8xf32>
    %37 = arith.truncf %36 : vector<8x8xf32> to vector<8x8xbf16>
    %38 = vector.extract_strided_slice %7 {offsets = [0, 32], sizes = [8, 32], strides = [1, 1]} : vector<8x128xbf16> to vector<8x32xbf16>
    %cst_15 = arith.constant dense<0.000000e+00> : vector<8x32xf32>
    %39 = tpu.matmul %37, %38, %cst_15 {dimension_numbers = #tpu.dot_dimension_numbers<[1], [0], [0], [1], [0, 0, 1, 1], [], []>} : vector<8x8xbf16>, vector<8x32xbf16>, vector<8x32xf32> -> vector<8x32xf32>
    %40 = vector.extract_strided_slice %3 {offsets = [0, 64], sizes = [8, 32], strides = [1, 1]} : vector<8x128xbf16> to vector<8x32xbf16>
    %41 = vector.extract_strided_slice %5 {offsets = [0, 64], sizes = [8, 32], strides = [1, 1]} : vector<8x128xbf16> to vector<8x32xbf16>
    "tpu.trace_start"() <{level = 10 : i32, message = "td,sd->ts"}> : () -> ()
    %cst_16 = arith.constant dense<0.000000e+00> : vector<8x8xf32>
    %42 = tpu.matmul %40, %41, %cst_16 {dimension_numbers = #tpu.dot_dimension_numbers<[1], [1], [0], [0], [0, 0, 1, 0], [], []>} : vector<8x32xbf16>, vector<8x32xbf16>, vector<8x8xf32> -> vector<8x8xf32>
    "tpu.trace_stop"() : () -> ()
    %cst_17 = arith.constant dense<0xFF800000> : vector<8xf32>
    %43 = vector.multi_reduction <maximumf>, %42, %cst_17 [1] : vector<8x8xf32> to vector<8xf32>
    %44 = vector.shape_cast %43 : vector<8xf32> to vector<8x1xf32>
    %45 = vector.broadcast %44 : vector<8x1xf32> to vector<8x8xf32>
    %46 = arith.subf %42, %45 : vector<8x8xf32>
    %47 = math.exp %46 : vector<8x8xf32>
    %cst_18 = arith.constant dense<0.000000e+00> : vector<8xf32>
    %48 = vector.multi_reduction <add>, %47, %cst_18 [1] : vector<8x8xf32> to vector<8xf32>
    %49 = vector.shape_cast %48 : vector<8xf32> to vector<8x1xf32>
    %50 = tpu.reciprocal %49 {approx = true} : vector<8x1xf32> -> vector<8x1xf32>
    %51 = vector.broadcast %50 : vector<8x1xf32> to vector<8x8xf32>
    %52 = arith.mulf %47, %51 : vector<8x8xf32>
    %53 = arith.truncf %52 : vector<8x8xf32> to vector<8x8xbf16>
    %54 = vector.extract_strided_slice %7 {offsets = [0, 64], sizes = [8, 32], strides = [1, 1]} : vector<8x128xbf16> to vector<8x32xbf16>
    %cst_19 = arith.constant dense<0.000000e+00> : vector<8x32xf32>
    %55 = tpu.matmul %53, %54, %cst_19 {dimension_numbers = #tpu.dot_dimension_numbers<[1], [0], [0], [1], [0, 0, 1, 1], [], []>} : vector<8x8xbf16>, vector<8x32xbf16>, vector<8x32xf32> -> vector<8x32xf32>
    %56 = vector.extract_strided_slice %3 {offsets = [0, 96], sizes = [8, 32], strides = [1, 1]} : vector<8x128xbf16> to vector<8x32xbf16>
    %57 = vector.extract_strided_slice %5 {offsets = [0, 96], sizes = [8, 32], strides = [1, 1]} : vector<8x128xbf16> to vector<8x32xbf16>
    "tpu.trace_start"() <{level = 10 : i32, message = "td,sd->ts"}> : () -> ()
    %cst_20 = arith.constant dense<0.000000e+00> : vector<8x8xf32>
    %58 = tpu.matmul %56, %57, %cst_20 {dimension_numbers = #tpu.dot_dimension_numbers<[1], [1], [0], [0], [0, 0, 1, 0], [], []>} : vector<8x32xbf16>, vector<8x32xbf16>, vector<8x8xf32> -> vector<8x8xf32>
    "tpu.trace_stop"() : () -> ()
    %cst_21 = arith.constant dense<0xFF800000> : vector<8xf32>
    %59 = vector.multi_reduction <maximumf>, %58, %cst_21 [1] : vector<8x8xf32> to vector<8xf32>
    %60 = vector.shape_cast %59 : vector<8xf32> to vector<8x1xf32>
    %61 = vector.broadcast %60 : vector<8x1xf32> to vector<8x8xf32>
    %62 = arith.subf %58, %61 : vector<8x8xf32>
    %63 = math.exp %62 : vector<8x8xf32>
    %cst_22 = arith.constant dense<0.000000e+00> : vector<8xf32>
    %64 = vector.multi_reduction <add>, %63, %cst_22 [1] : vector<8x8xf32> to vector<8xf32>
    %65 = vector.shape_cast %64 : vector<8xf32> to vector<8x1xf32>
    %66 = tpu.reciprocal %65 {approx = true} : vector<8x1xf32> -> vector<8x1xf32>
    %67 = vector.broadcast %66 : vector<8x1xf32> to vector<8x8xf32>
    %68 = arith.mulf %63, %67 : vector<8x8xf32>
    %69 = arith.truncf %68 : vector<8x8xf32> to vector<8x8xbf16>
    %70 = vector.extract_strided_slice %7 {offsets = [0, 96], sizes = [8, 32], strides = [1, 1]} : vector<8x128xbf16> to vector<8x32xbf16>
    %cst_23 = arith.constant dense<0.000000e+00> : vector<8x32xf32>
    %71 = tpu.matmul %69, %70, %cst_23 {dimension_numbers = #tpu.dot_dimension_numbers<[1], [0], [0], [1], [0, 0, 1, 1], [], []>} : vector<8x8xbf16>, vector<8x32xbf16>, vector<8x32xf32> -> vector<8x32xf32>
    %72 = tpu.concatenate %23, %39, %55, %71 in 1 : vector<8x32xf32>, vector<8x32xf32>, vector<8x32xf32>, vector<8x32xf32> -> vector<8x128xf32>
    %73 = arith.truncf %72 : vector<8x128xf32> to vector<8x128xbf16>
    %c0_24 = arith.constant 0 : index
    %c0_25 = arith.constant 0 : index
    %c0_26 = arith.constant 0 : index
    %74 = vector.load %arg4[%c0_24, %c0_25, %c0_26] : memref<1x8x128xbf16, #tpu.memory_space<vmem>>, vector<1x8x128xbf16>
    %75 = vector.shape_cast %74 : vector<1x8x128xbf16> to vector<8x128xbf16>
    %76 = vector.shape_cast %73 : vector<8x128xbf16> to vector<1x8x128xbf16>
    tpu.vector_store %arg4[%c0_24, %c0_25, %c0_26], %76 {strides = array<i32>} : memref<1x8x128xbf16, #tpu.memory_space<vmem>>, vector<1x8x128xbf16>,
    return
  }
  func.func @transform_0(%arg0: i32) -> (i32, i32, i32) {
    %c0_i32 = arith.constant 0 : i32
    %c0_i32_0 = arith.constant 0 : i32
    %c0_i32_1 = arith.constant 0 : i32
    return %arg0, %c0_i32, %c0_i32_0 : i32, i32, i32
  }
  func.func @transform_1(%arg0: i32) -> (i32, i32, i32) {
    %c0_i32 = arith.constant 0 : i32
    %c0_i32_0 = arith.constant 0 : i32
    %c0_i32_1 = arith.constant 0 : i32
    return %arg0, %c0_i32, %c0_i32_0 : i32, i32, i32
  }
  func.func @transform_2(%arg0: i32) -> (i32, i32, i32) {
    %c0_i32 = arith.constant 0 : i32
    %c1_i32 = arith.constant 1 : i32
    %c0_i32_0 = arith.constant 0 : i32
    return %arg0, %c0_i32, %c1_i32 : i32, i32, i32
  }
  func.func @transform_3(%arg0: i32) -> (i32, i32, i32) {
    %c0_i32 = arith.constant 0 : i32
    %c0_i32_0 = arith.constant 0 : i32
    %c0_i32_1 = arith.constant 0 : i32
    return %arg0, %c0_i32, %c0_i32_0 : i32, i32, i32
  }
}

module attributes {stable_mosaic.version = 11 : i64} {
  func.func @_ffn_res_ln_kernel(%arg0: i32, %arg1: memref<16x128xf32, #tpu.memory_space<vmem>>, %arg2: memref<128x512xbf16, #tpu.memory_space<vmem>>, %arg3: memref<1x512xf32, #tpu.memory_space<vmem>>, %arg4: memref<512x128xbf16, #tpu.memory_space<vmem>>, %arg5: memref<1x128xf32, #tpu.memory_space<vmem>>, %arg6: memref<1x128xf32, #tpu.memory_space<vmem>>, %arg7: memref<1x128xf32, #tpu.memory_space<vmem>>, %arg8: memref<16x128xf32, #tpu.memory_space<vmem>>) attributes {dimension_semantics = [#tpu.dimension_semantics<parallel>], iteration_bounds = array<i64: 1>, scalar_prefetch = 0 : i64, scratch_operands = 0 : i64, tpu.core_type = #tpu.core_type<tc>, window_params = [{transform_indices = @transform_0, window_bounds = array<i64: 16, 128>}, {pipeline_mode = #tpu.pipeline_mode<synchronous>, transform_indices = @transform_1, window_bounds = array<i64: 128, 512>}, {pipeline_mode = #tpu.pipeline_mode<synchronous>, transform_indices = @transform_2, window_bounds = array<i64: 1, 512>}, {pipeline_mode = #tpu.pipeline_mode<synchronous>, transform_indices = @transform_3, window_bounds = array<i64: 512, 128>}, {pipeline_mode = #tpu.pipeline_mode<synchronous>, transform_indices = @transform_4, window_bounds = array<i64: 1, 128>}, {pipeline_mode = #tpu.pipeline_mode<synchronous>, transform_indices = @transform_5, window_bounds = array<i64: 1, 128>}, {pipeline_mode = #tpu.pipeline_mode<synchronous>, transform_indices = @transform_6, window_bounds = array<i64: 1, 128>}, {transform_indices = @transform_7, window_bounds = array<i64: 16, 128>}]} {
    %c0 = arith.constant 0 : index
    %c0_0 = arith.constant 0 : index
    %0 = vector.load %arg1[%c0, %c0_0] : memref<16x128xf32, #tpu.memory_space<vmem>>, vector<16x128xf32>
    %1 = arith.truncf %0 : vector<16x128xf32> to vector<16x128xbf16>
    %c0_1 = arith.constant 0 : index
    %c0_2 = arith.constant 0 : index
    %2 = vector.load %arg2[%c0_1, %c0_2] : memref<128x512xbf16, #tpu.memory_space<vmem>>, vector<128x512xbf16>
    %cst = arith.constant dense<0.000000e+00> : vector<16x512xf32>
    %3 = tpu.matmul %1, %2, %cst {dimension_numbers = #tpu.dot_dimension_numbers<[1], [0], [0], [1], [0, 0, 1, 1], [], []>} : vector<16x128xbf16>, vector<128x512xbf16>, vector<16x512xf32> -> vector<16x512xf32>
    %c0_3 = arith.constant 0 : index
    %c0_4 = arith.constant 0 : index
    %4 = vector.load %arg3[%c0_3, %c0_4] : memref<1x512xf32, #tpu.memory_space<vmem>>, vector<1x512xf32>
    %5 = vector.broadcast %4 : vector<1x512xf32> to vector<16x512xf32>
    %6 = arith.addf %3, %5 : vector<16x512xf32>
    %cst_5 = arith.constant 0.000000e+00 : f32
    %7 = vector.broadcast %cst_5 : f32 to vector<16x512xf32>
    %8 = arith.maximumf %6, %7 : vector<16x512xf32>
    %9 = arith.truncf %8 : vector<16x512xf32> to vector<16x512xbf16>
    %c0_6 = arith.constant 0 : index
    %c0_7 = arith.constant 0 : index
    %10 = vector.load %arg4[%c0_6, %c0_7] : memref<512x128xbf16, #tpu.memory_space<vmem>>, vector<512x128xbf16>
    %cst_8 = arith.constant dense<0.000000e+00> : vector<16x128xf32>
    %11 = tpu.matmul %9, %10, %cst_8 {dimension_numbers = #tpu.dot_dimension_numbers<[1], [0], [0], [1], [0, 0, 1, 1], [], []>} : vector<16x512xbf16>, vector<512x128xbf16>, vector<16x128xf32> -> vector<16x128xf32>
    %c0_9 = arith.constant 0 : index
    %c0_10 = arith.constant 0 : index
    %12 = vector.load %arg5[%c0_9, %c0_10] : memref<1x128xf32, #tpu.memory_space<vmem>>, vector<1x128xf32>
    %13 = vector.broadcast %12 : vector<1x128xf32> to vector<16x128xf32>
    %14 = arith.addf %11, %13 : vector<16x128xf32>
    %15 = arith.addf %0, %14 : vector<16x128xf32>
    %cst_11 = arith.constant dense<0.000000e+00> : vector<16xf32>
    %16 = vector.multi_reduction <add>, %15, %cst_11 [1] : vector<16x128xf32> to vector<16xf32>
    %17 = vector.shape_cast %16 : vector<16xf32> to vector<16x1xf32>
    %cst_12 = arith.constant 1.280000e+02 : f32
    %18 = vector.broadcast %cst_12 : f32 to vector<16x1xf32>
    %19 = arith.divf %17, %18 : vector<16x1xf32>
    %20 = vector.broadcast %19 : vector<16x1xf32> to vector<16x128xf32>
    %21 = arith.subf %15, %20 : vector<16x128xf32>
    %22 = arith.mulf %21, %21 : vector<16x128xf32>
    %cst_13 = arith.constant dense<0.000000e+00> : vector<16xf32>
    %23 = vector.multi_reduction <add>, %22, %cst_13 [1] : vector<16x128xf32> to vector<16xf32>
    %24 = vector.shape_cast %23 : vector<16xf32> to vector<16x1xf32>
    %cst_14 = arith.constant 1.280000e+02 : f32
    %25 = vector.broadcast %cst_14 : f32 to vector<16x1xf32>
    %26 = arith.divf %24, %25 : vector<16x1xf32>
    %27 = vector.broadcast %19 : vector<16x1xf32> to vector<16x128xf32>
    %28 = arith.subf %15, %27 : vector<16x128xf32>
    %cst_15 = arith.constant 9.99999974E-6 : f32
    %29 = vector.broadcast %cst_15 : f32 to vector<16x1xf32>
    %30 = arith.addf %26, %29 : vector<16x1xf32>
    %31 = math.rsqrt %30 : vector<16x1xf32>
    %32 = vector.broadcast %31 : vector<16x1xf32> to vector<16x128xf32>
    %33 = arith.mulf %28, %32 : vector<16x128xf32>
    %c0_16 = arith.constant 0 : index
    %c0_17 = arith.constant 0 : index
    %34 = vector.load %arg6[%c0_16, %c0_17] : memref<1x128xf32, #tpu.memory_space<vmem>>, vector<1x128xf32>
    %35 = vector.broadcast %34 : vector<1x128xf32> to vector<16x128xf32>
    %36 = arith.mulf %33, %35 : vector<16x128xf32>
    %c0_18 = arith.constant 0 : index
    %c0_19 = arith.constant 0 : index
    %37 = vector.load %arg7[%c0_18, %c0_19] : memref<1x128xf32, #tpu.memory_space<vmem>>, vector<1x128xf32>
    %38 = vector.broadcast %37 : vector<1x128xf32> to vector<16x128xf32>
    %39 = arith.addf %36, %38 : vector<16x128xf32>
    %c0_20 = arith.constant 0 : index
    %c0_21 = arith.constant 0 : index
    %40 = vector.load %arg8[%c0_20, %c0_21] : memref<16x128xf32, #tpu.memory_space<vmem>>, vector<16x128xf32>
    tpu.vector_store %arg8[%c0_20, %c0_21], %39 {strides = array<i32>} : memref<16x128xf32, #tpu.memory_space<vmem>>, vector<16x128xf32>,
    return
  }
  func.func @transform_0(%arg0: i32) -> (i32, i32) {
    %c0_i32 = arith.constant 0 : i32
    %c0_i32_0 = arith.constant 0 : i32
    return %arg0, %c0_i32 : i32, i32
  }
  func.func @transform_1(%arg0: i32) -> (i32, i32) {
    %c0_i32 = arith.constant 0 : i32
    %c0_i32_0 = arith.constant 0 : i32
    %c0_i32_1 = arith.constant 0 : i32
    return %c0_i32, %c0_i32_0 : i32, i32
  }
  func.func @transform_2(%arg0: i32) -> (i32, i32) {
    %c0_i32 = arith.constant 0 : i32
    %c0_i32_0 = arith.constant 0 : i32
    %c0_i32_1 = arith.constant 0 : i32
    return %c0_i32, %c0_i32_0 : i32, i32
  }
  func.func @transform_3(%arg0: i32) -> (i32, i32) {
    %c0_i32 = arith.constant 0 : i32
    %c0_i32_0 = arith.constant 0 : i32
    %c0_i32_1 = arith.constant 0 : i32
    return %c0_i32, %c0_i32_0 : i32, i32
  }
  func.func @transform_4(%arg0: i32) -> (i32, i32) {
    %c0_i32 = arith.constant 0 : i32
    %c0_i32_0 = arith.constant 0 : i32
    %c0_i32_1 = arith.constant 0 : i32
    return %c0_i32, %c0_i32_0 : i32, i32
  }
  func.func @transform_5(%arg0: i32) -> (i32, i32) {
    %c0_i32 = arith.constant 0 : i32
    %c0_i32_0 = arith.constant 0 : i32
    %c0_i32_1 = arith.constant 0 : i32
    return %c0_i32, %c0_i32_0 : i32, i32
  }
  func.func @transform_6(%arg0: i32) -> (i32, i32) {
    %c0_i32 = arith.constant 0 : i32
    %c0_i32_0 = arith.constant 0 : i32
    %c0_i32_1 = arith.constant 0 : i32
    return %c0_i32, %c0_i32_0 : i32, i32
  }
  func.func @transform_7(%arg0: i32) -> (i32, i32) {
    %c0_i32 = arith.constant 0 : i32
    %c0_i32_0 = arith.constant 0 : i32
    return %arg0, %c0_i32 : i32, i32
  }
}

module attributes {stable_mosaic.version = 11 : i64} {
  func.func @_linear_kernel(%arg0: i32, %arg1: i32, %arg2: i32, %arg3: memref<16x128xf32, #tpu.memory_space<vmem>>, %arg4: memref<128x256xbf16, #tpu.memory_space<vmem>>, %arg5: memref<1x256xf32, #tpu.memory_space<vmem>>, %arg6: memref<16x256xf32, #tpu.memory_space<vmem>>, %arg7: memref<16x256xf32, #tpu.memory_space<vmem>>) attributes {dimension_semantics = [#tpu.dimension_semantics<parallel>, #tpu.dimension_semantics<parallel>, #tpu.dimension_semantics<arbitrary>], iteration_bounds = array<i64: 1, 1, 1>, scalar_prefetch = 0 : i64, scratch_operands = 1 : i64, tpu.core_type = #tpu.core_type<tc>, window_params = [{transform_indices = @transform_0, window_bounds = array<i64: 16, 128>}, {transform_indices = @transform_1, window_bounds = array<i64: 128, 256>}, {transform_indices = @transform_2, window_bounds = array<i64: 1, 256>}, {transform_indices = @transform_3, window_bounds = array<i64: 16, 256>}]} {
    %c0_i32 = arith.constant 0 : i32
    %0 = arith.cmpi eq, %arg2, %c0_i32 : i32
    %1 = arith.extui %0 : i1 to i32
    %c0_i32_0 = arith.constant 0 : i32
    %2 = arith.cmpi ne, %1, %c0_i32_0 : i32
    scf.if %2 {
      %cst_10 = arith.constant 0.000000e+00 : f32
      %13 = vector.broadcast %cst_10 : f32 to vector<16x256xf32>
      %c0_11 = arith.constant 0 : index
      %c0_12 = arith.constant 0 : index
      %14 = vector.load %arg7[%c0_11, %c0_12] : memref<16x256xf32, #tpu.memory_space<vmem>>, vector<16x256xf32>
      tpu.vector_store %arg7[%c0_11, %c0_12], %13 {strides = array<i32>} : memref<16x256xf32, #tpu.memory_space<vmem>>, vector<16x256xf32>,
    } else {
    }
    %c0 = arith.constant 0 : index
    %c0_1 = arith.constant 0 : index
    %3 = vector.load %arg7[%c0, %c0_1] : memref<16x256xf32, #tpu.memory_space<vmem>>, vector<16x256xf32>
    %c0_2 = arith.constant 0 : index
    %c0_3 = arith.constant 0 : index
    %4 = vector.load %arg3[%c0_2, %c0_3] : memref<16x128xf32, #tpu.memory_space<vmem>>, vector<16x128xf32>
    %5 = arith.truncf %4 : vector<16x128xf32> to vector<16x128xbf16>
    %c0_4 = arith.constant 0 : index
    %c0_5 = arith.constant 0 : index
    %6 = vector.load %arg4[%c0_4, %c0_5] : memref<128x256xbf16, #tpu.memory_space<vmem>>, vector<128x256xbf16>
    %cst = arith.constant dense<0.000000e+00> : vector<16x256xf32>
    %7 = tpu.matmul %5, %6, %cst {dimension_numbers = #tpu.dot_dimension_numbers<[1], [0], [0], [1], [0, 0, 1, 1], [], []>} : vector<16x128xbf16>, vector<128x256xbf16>, vector<16x256xf32> -> vector<16x256xf32>
    %8 = arith.addf %3, %7 : vector<16x256xf32>
    %c0_6 = arith.constant 0 : index
    %c0_7 = arith.constant 0 : index
    %9 = vector.load %arg7[%c0_6, %c0_7] : memref<16x256xf32, #tpu.memory_space<vmem>>, vector<16x256xf32>
    tpu.vector_store %arg7[%c0_6, %c0_7], %8 {strides = array<i32>} : memref<16x256xf32, #tpu.memory_space<vmem>>, vector<16x256xf32>,
    %c0_i32_8 = arith.constant 0 : i32
    %10 = arith.cmpi eq, %arg2, %c0_i32_8 : i32
    %11 = arith.extui %10 : i1 to i32
    %c0_i32_9 = arith.constant 0 : i32
    %12 = arith.cmpi ne, %11, %c0_i32_9 : i32
    scf.if %12 {
      %c0_10 = arith.constant 0 : index
      %c0_11 = arith.constant 0 : index
      %13 = vector.load %arg7[%c0_10, %c0_11] : memref<16x256xf32, #tpu.memory_space<vmem>>, vector<16x256xf32>
      %c0_12 = arith.constant 0 : index
      %c0_13 = arith.constant 0 : index
      %14 = vector.load %arg5[%c0_12, %c0_13] : memref<1x256xf32, #tpu.memory_space<vmem>>, vector<1x256xf32>
      %15 = vector.broadcast %14 : vector<1x256xf32> to vector<16x256xf32>
      %16 = arith.addf %13, %15 : vector<16x256xf32>
      %c0_14 = arith.constant 0 : index
      %c0_15 = arith.constant 0 : index
      %17 = vector.load %arg6[%c0_14, %c0_15] : memref<16x256xf32, #tpu.memory_space<vmem>>, vector<16x256xf32>
      tpu.vector_store %arg6[%c0_14, %c0_15], %16 {strides = array<i32>} : memref<16x256xf32, #tpu.memory_space<vmem>>, vector<16x256xf32>,
    } else {
    }
    return
  }
  func.func @transform_0(%arg0: i32, %arg1: i32, %arg2: i32) -> (i32, i32) {
    %c0_i32 = arith.constant 0 : i32
    return %arg0, %arg2 : i32, i32
  }
  func.func @transform_1(%arg0: i32, %arg1: i32, %arg2: i32) -> (i32, i32) {
    %c0_i32 = arith.constant 0 : i32
    return %arg2, %arg1 : i32, i32
  }
  func.func @transform_2(%arg0: i32, %arg1: i32, %arg2: i32) -> (i32, i32) {
    %c0_i32 = arith.constant 0 : i32
    %c0_i32_0 = arith.constant 0 : i32
    return %c0_i32, %arg1 : i32, i32
  }
  func.func @transform_3(%arg0: i32, %arg1: i32, %arg2: i32) -> (i32, i32) {
    %c0_i32 = arith.constant 0 : i32
    return %arg0, %arg1 : i32, i32
  }
}

</mosaic_0001>

<llo_original>
// kernel: decoder_forward.19
$region0: #{decoder_forward.19}
  #allocation0 [shape = 'u32[]', space=smem, size = 0x4, offset = 0x4, fixed_abs, tag = 'smem constant byte address 0x4 - core index']
  #allocation1 [shape = 'u32[144,128]{1,0:T(1,128)}', space=vmem, size = 0x12000, scoped, tag = 'internal scratch']
  #allocation2 [shape = 'f32[16,128]{1,0:T(8,128)}', space=vmem, size = 0x2000, scoped, tag = 'scratch operand']
  %s0 = inlined_call_operand.vmem [shape: f32[16,128], index: 0, kind: input, shape index: {}]
  %s1 = inlined_call_operand.vmem [shape: bf16[128,384], index: 1, kind: input, shape index: {}]
  %s2 = inlined_call_operand.vmem [shape: f32[1,384], index: 2, kind: input, shape index: {}]
  %s3 = inlined_call_operand.vmem [shape: bf16[16,384], index: 3, kind: output, shape index: {}]
  %s4 = sld [smem:[#allocation0]]
  $region131: #{decoder_forward.19} parent=0
    _
  %s6 = ssub.s32 1, %s4
  %s7 = scalar_select 0, %s6, %s4
  $region1: #{decoder_forward.19} parent=0
    #allocation3 [shape = 'u8[65536]{0}', space=vmem, size = 0x10000, scoped, tag = 'input window, operand 1']
    #allocation4 [shape = 'u8[8192]{0}', space=vmem, size = 0x2000, scoped, tag = 'output window, operand 0']
    loop: start=0, step=1, limit=5
    $region2: #{decoder_forward.19} parent=1 // loop_pre_header
      _
    $region3: #{decoder_forward.19} parent=1 // loop_header
      %s9 = sphi 0, %s13
      %p10 = scmp.ge.s32.totalorder %s9, 5
      %s16 = sphi 0, %s35
      %s17 = sphi 0, %s31
      %s18 = sphi 0, %s27
      %s19 = sphi 0, %s16
      %s20 = sphi 0, %s17
      %s21 = sphi 0, %s18
      %s22 = sphi 0, %s19
      %s23 = sphi 0, %s20
      %s24 = sphi 0, %s21
      %s40 = sphi 0, %s42
      %s43 = sphi 0, %s40
      %s44 = sphi 0, %s43
      %s60 = sphi 0, %s44
      %s68 = sphi 0, %s70
      %s71 = sphi 0, %s68
      %s72 = sphi 0, %s71
      %s88 = sphi 0, %s72
      %s94 = sphi 0, %s96
      %s97 = sphi 0, %s94
      %s98 = sphi 0, %s97
      %s114 = sphi 0, %s98
      %s122 = sphi 0, %s124
      %s125 = sphi 0, %s122
      %s126 = sphi 0, %s125
      %s142 = sphi 0, %s126
    $region4: #{decoder_forward.19} parent=1 // loop_header_branch
      %12 = sbr.rel (%p10) target = $region8
    $region5: #{decoder_forward.19} parent=1 // loop_body
      %s14 = ssub.s32 %s9, 1
      %s15 = ssub.s32 %s9, 2
      %s25 = sadd.s32 1, %s18
      %p26 = scmp.ge.s32.totalorder %s25, 1
      %s27 = scalar_select %p26, 0, %s25
      %s28 = sadd.s32 1, %s17
      %s29 = scalar_select %p26, %s28, %s17
      %p30 = scmp.ge.s32.totalorder %s29, 3
      %s31 = scalar_select %p30, 0, %s29
      %s32 = sadd.s32 1, %s16
      %s33 = scalar_select %p30, %s32, %s16
      %p34 = scmp.ge.s32.totalorder %s33, 1
      %s35 = scalar_select %p34, 0, %s33
      %s36 = ssub.s32 %s16, %s35
      %s37 = ssub.s32 %s18, %s27
      %s38 = sor.u32 %s36, %s37
      %p39 = scmp.eq.s32.totalorder %s38, 0
      %s41 = sadd.s32 %s40, 1
      %s42 = scalar_select %p39, %s40, %s41
      %p45 = pneg %p39
      %p46 = scmp.eq.s32.totalorder %s9, 2
      %p47 = por %p45, %p46
      %p48 = scmp.ne.s32.totalorder %s40, %s43
      %p49 = scmp.eq.s32.totalorder %s9, 0
      %p50 = por %p48, %p49
      %p51 = scmp.ne.s32.totalorder %s40, %s43
      %p52 = scmp.eq.s32.totalorder %s14, 2
      %p53 = por %p51, %p52
      %p54 = scmp.ne.s32.totalorder %s43, %s44
      %p55 = scmp.eq.s32.totalorder %s14, 0
      %p56 = por %p54, %p55
      %p57 = scmp.ne.s32.totalorder %s43, %s44
      %p58 = scmp.eq.s32.totalorder %s15, 2
      %p59 = por %p57, %p58
      %p61 = scmp.ne.s32.totalorder %s44, %s60
      %p62 = scmp.eq.s32.totalorder %s15, 0
      %p63 = por %p61, %p62
      %s64 = ssub.s32 %s18, %s27
      %s65 = ssub.s32 %s17, %s31
      %s66 = sor.u32 %s64, %s65
      %p67 = scmp.eq.s32.totalorder %s66, 0
      %s69 = sadd.s32 %s68, 1
      %s70 = scalar_select %p67, %s68, %s69
      %p73 = pneg %p67
      %p74 = scmp.eq.s32.totalorder %s9, 2
      %p75 = por %p73, %p74
      %p76 = scmp.ne.s32.totalorder %s68, %s71
      %p77 = scmp.eq.s32.totalorder %s9, 0
      %p78 = por %p76, %p77
      %p79 = scmp.ne.s32.totalorder %s68, %s71
      %p80 = scmp.eq.s32.totalorder %s14, 2
      %p81 = por %p79, %p80
      %p82 = scmp.ne.s32.totalorder %s71, %s72
      %p83 = scmp.eq.s32.totalorder %s14, 0
      %p84 = por %p82, %p83
      %p85 = scmp.ne.s32.totalorder %s71, %s72
      %p86 = scmp.eq.s32.totalorder %s15, 2
      %p87 = por %p85, %p86
      %p89 = scmp.ne.s32.totalorder %s72, %s88
      %p90 = scmp.eq.s32.totalorder %s15, 0
      %p91 = por %p89, %p90
      %s92 = ssub.s32 %s17, %s31
      %p93 = scmp.eq.s32.totalorder %s92, 0
      %s95 = sadd.s32 %s94, 1
      %s96 = scalar_select %p93, %s94, %s95
      %p99 = pneg %p93
      %p100 = scmp.eq.s32.totalorder %s9, 2
      %p101 = por %p99, %p100
      %p102 = scmp.ne.s32.totalorder %s94, %s97
      %p103 = scmp.eq.s32.totalorder %s9, 0
      %p104 = por %p102, %p103
      %p105 = scmp.ne.s32.totalorder %s94, %s97
      %p106 = scmp.eq.s32.totalorder %s14, 2
      %p107 = por %p105, %p106
      %p108 = scmp.ne.s32.totalorder %s97, %s98
      %p109 = scmp.eq.s32.totalorder %s14, 0
      %p110 = por %p108, %p109
      %p111 = scmp.ne.s32.totalorder %s97, %s98
      %p112 = scmp.eq.s32.totalorder %s15, 2
      %p113 = por %p111, %p112
      %p115 = scmp.ne.s32.totalorder %s98, %s114
      %p116 = scmp.eq.s32.totalorder %s15, 0
      %p117 = por %p115, %p116
      %s118 = ssub.s32 %s16, %s35
      %s119 = ssub.s32 %s17, %s31
      %s120 = sor.u32 %s118, %s119
      %p121 = scmp.eq.s32.totalorder %s120, 0
      %s123 = sadd.s32 %s122, 1
      %s124 = scalar_select %p121, %s122, %s123
      %p127 = pneg %p121
      %p128 = scmp.eq.s32.totalorder %s9, 2
      %p129 = por %p127, %p128
      %p130 = scmp.ne.s32.totalorder %s122, %s125
      %p131 = scmp.eq.s32.totalorder %s9, 0
      %p132 = por %p130, %p131
      %p133 = scmp.ne.s32.totalorder %s122, %s125
      %p134 = scmp.eq.s32.totalorder %s14, 2
      %p135 = por %p133, %p134
      %p136 = scmp.ne.s32.totalorder %s125, %s126
      %p137 = scmp.eq.s32.totalorder %s14, 0
      %p138 = por %p136, %p137
      %p139 = scmp.ne.s32.totalorder %s125, %s126
      %p140 = scmp.eq.s32.totalorder %s15, 2
      %p141 = por %p139, %p140
      %p143 = scmp.ne.s32.totalorder %s126, %s142
      %p144 = scmp.eq.s32.totalorder %s15, 0
      %p145 = por %p143, %p144
      %p146 = scmp.le.s32.totalorder 1, %s9
      %p147 = scmp.lt.s32.totalorder %s9, 4
      %p148 = pnand %p146, %p147
      %p149 = pneg %p148
      // Predicated region
      $region9: #{decoder_forward.19} parent=5 // pred_check
        _
      $region10: #{decoder_forward.19} parent=5 // pred_check_branch
        %151 = sbr.rel (%p148) target = $region12
      $region11: #{decoder_forward.19} parent=5 // pred_region
        %s152 = ssub.s32 %s9, 1
        // Predicated region
        $region13: #{decoder_forward.19} parent=11 // pred_check
          %p153 = pneg %p56
        $region14: #{decoder_forward.19} parent=11 // pred_check_branch
          %155 = sbr.rel (%p153) target = $region16
        $region15: #{decoder_forward.19} parent=11 // pred_region
          %s156 = smul.u32 2, %s19
          %p157 = scmp.lt.s32.totalorder %s156, 1
          %s158 = scalar_select %p157, %s156, 1
          %p159 = scmp.lt.s32.totalorder %s21, 0
          %s160 = scalar_select %p159, %s21, 0
          %s161 = sadd.s32 %s160, %s158
          %s162 = smul.addr %s161, 8
          %s163 = scalar_lea.vmem %s0, %s162
          %s164 = smul.u32 2, %s19
        $region16: #{decoder_forward.19} parent=11 // pred_fallthru
          _
      $region12: #{decoder_forward.19} parent=5 // pred_fallthru
        _
      %p165 = scmp.lt.s32.totalorder %s9, 3
      // Predicated region
      $region17: #{decoder_forward.19} parent=5 // pred_check
        %p166 = pneg %p165
      $region18: #{decoder_forward.19} parent=5 // pred_check_branch
        %168 = sbr.rel (%p166) target = $region20
      $region19: #{decoder_forward.19} parent=5 // pred_region
        // Predicated region
        $region21: #{decoder_forward.19} parent=19 // pred_check
          %p169 = pneg %p78
        $region22: #{decoder_forward.19} parent=19 // pred_check_branch
          %171 = sbr.rel (%p169) target = $region24
        $region23: #{decoder_forward.19} parent=19 // pred_region
          %s172 = sand.u32 %s68, 1
          %s173 = sand.u32 %s68, 1
          %s174 = smul.addr %s173, 64
          %s175 = scalar_lea.vmem [#allocation3], %s174
          %s176 = smul.u32 16, %s18
          %s177 = smul.addr %s176, 3
          %s178 = sadd.s32 %s17, %s177
          %s179 = smul.addr %s178, 4
          %s180 = scalar_lea.vmem %s1, %s179
          // Predicated region
          $region25: #{decoder_forward.19} parent=23 // pred_check
            _
          $region26: #{decoder_forward.19} parent=23 // pred_check_branch
            %182 = sbr.rel (0) target = $region28
          $region27: #{decoder_forward.19} parent=23 // pred_region
            // Predicated region
            $region29: #{decoder_forward.19} parent=27 // pred_check
              _
            $region30: #{decoder_forward.19} parent=27 // pred_check_branch
              %184 = sbr.rel target = $region32
            $region31: #{decoder_forward.19} parent=27 // pred_region
              // Predicated region
              $region44: #{decoder_forward.19} parent=31 // pred_check
                _
              $region45: #{decoder_forward.19} parent=31 // pred_check_branch
                %230 = sbr.rel (0) target = $region47
              $region46: #{decoder_forward.19} parent=31 // pred_region
                loop: start=0, step=1, limit=1
                $region48: #{decoder_forward.19} parent=46 // loop_pre_header
                  _
                $region49: #{decoder_forward.19} parent=46 // loop_header
                  %s232 = sphi 0, %s236
                  %p233 = scmp.ge.s32.totalorder %s232, 1
                  %s237 = sphi %s180, %s180
                  %s238 = sphi %s175, %s175
                $region50: #{decoder_forward.19} parent=46 // loop_header_branch
                  %235 = sbr.rel (%p233) target = $region54
                $region51: #{decoder_forward.19} parent=46 // loop_body
                  _
                $region52: #{decoder_forward.19} parent=46 // loop_footer
                  %s236 = sadd.s32 1, %s232
                $region53: #{decoder_forward.19} parent=46 // loop_footer_branch
                  %231 = sbr.rel target = $region49
                $region54: #{decoder_forward.19} parent=46 // loop_exit
                  _
                %s240 = ssub.s32 16, 1
                loop: start=0, step=1, limit=1
                $region55: #{decoder_forward.19} parent=46 // loop_pre_header
                  _
                $region56: #{decoder_forward.19} parent=46 // loop_header
                  %s242 = sphi 0, %s246
                  %p243 = scmp.ge.s32.totalorder %s242, 1
                  %s247 = sphi %s180, %s180
                  %s248 = sphi %s175, %s175
                $region57: #{decoder_forward.19} parent=46 // loop_header_branch
                  %245 = sbr.rel (%p243) target = $region61
                $region58: #{decoder_forward.19} parent=46 // loop_body
                  %v249 = vld [vmem:[%s247] sm:%s240]
                  %250 = vst [vmem:[%s248] sm:%s240] %v249
                  %v251 = vld [vmem:[%s247 + $0xc] sm:%s240]
                  %252 = vst [vmem:[%s248 + $0x4] sm:%s240] %v251
                  %v253 = vld [vmem:[%s247 + $0x18] sm:%s240]
                  %254 = vst [vmem:[%s248 + $0x8] sm:%s240] %v253
                  %v255 = vld [vmem:[%s247 + $0x24] sm:%s240]
                  %256 = vst [vmem:[%s248 + $0xc] sm:%s240] %v255
                  %v257 = vld [vmem:[%s247 + $0x30] sm:%s240]
                  %258 = vst [vmem:[%s248 + $0x10] sm:%s240] %v257
                  %v259 = vld [vmem:[%s247 + $0x3c] sm:%s240]
                  %260 = vst [vmem:[%s248 + $0x14] sm:%s240] %v259
                  %v261 = vld [vmem:[%s247 + $0x48] sm:%s240]
                  %262 = vst [vmem:[%s248 + $0x18] sm:%s240] %v261
                  %v263 = vld [vmem:[%s247 + $0x54] sm:%s240]
                  %264 = vst [vmem:[%s248 + $0x1c] sm:%s240] %v263
                  %v265 = vld [vmem:[%s247 + $0x60] sm:%s240]
                  %266 = vst [vmem:[%s248 + $0x20] sm:%s240] %v265
                  %v267 = vld [vmem:[%s247 + $0x6c] sm:%s240]
                  %268 = vst [vmem:[%s248 + $0x24] sm:%s240] %v267
                  %v269 = vld [vmem:[%s247 + $0x78] sm:%s240]
                  %270 = vst [vmem:[%s248 + $0x28] sm:%s240] %v269
                  %v271 = vld [vmem:[%s247 + $0x84] sm:%s240]
                  %272 = vst [vmem:[%s248 + $0x2c] sm:%s240] %v271
                  %v273 = vld [vmem:[%s247 + $0x90] sm:%s240]
                  %274 = vst [vmem:[%s248 + $0x30] sm:%s240] %v273
                  %v275 = vld [vmem:[%s247 + $0x9c] sm:%s240]
                  %276 = vst [vmem:[%s248 + $0x34] sm:%s240] %v275
                  %v277 = vld [vmem:[%s247 + $0xa8] sm:%s240]
                  %278 = vst [vmem:[%s248 + $0x38] sm:%s240] %v277
                  %v279 = vld [vmem:[%s247 + $0xb4] sm:%s240]
                  %280 = vst [vmem:[%s248 + $0x3c] sm:%s240] %v279
                $region59: #{decoder_forward.19} parent=46 // loop_footer
                  %s246 = sadd.s32 1, %s242
                $region60: #{decoder_forward.19} parent=46 // loop_footer_branch
                  %241 = sbr.rel target = $region56
                $region61: #{decoder_forward.19} parent=46 // loop_exit
                  _
              $region47: #{decoder_forward.19} parent=31 // pred_fallthru
                _
            $region32: #{decoder_forward.19} parent=27 // pred_fallthru
              _
            // Predicated region
            $region33: #{decoder_forward.19} parent=27 // pred_check
              _
            $region34: #{decoder_forward.19} parent=27 // pred_check_branch
              %186 = sbr.rel (0) target = $region36
            $region35: #{decoder_forward.19} parent=27 // pred_region
              %s188 = ssub.s32 16, 1
              loop: start=0, step=1, limit=1
              $region37: #{decoder_forward.19} parent=35 // loop_pre_header
                _
              $region38: #{decoder_forward.19} parent=35 // loop_header
                %s190 = sphi 0, %s194
                %p191 = scmp.ge.s32.totalorder %s190, 1
                %s195 = sphi %s180, %s180
                %s196 = sphi %s175, %s175
              $region39: #{decoder_forward.19} parent=35 // loop_header_branch
                %193 = sbr.rel (%p191) target = $region43
              $region40: #{decoder_forward.19} parent=35 // loop_body
                %v197 = vld [vmem:[%s195] sm:%s188]
                %198 = vst [vmem:[%s196] sm:%s188] %v197
                %v199 = vld [vmem:[%s195 + $0xc] sm:%s188]
                %200 = vst [vmem:[%s196 + $0x4] sm:%s188] %v199
                %v201 = vld [vmem:[%s195 + $0x18] sm:%s188]
                %202 = vst [vmem:[%s196 + $0x8] sm:%s188] %v201
                %v203 = vld [vmem:[%s195 + $0x24] sm:%s188]
                %204 = vst [vmem:[%s196 + $0xc] sm:%s188] %v203
                %v205 = vld [vmem:[%s195 + $0x30] sm:%s188]
                %206 = vst [vmem:[%s196 + $0x10] sm:%s188] %v205
                %v207 = vld [vmem:[%s195 + $0x3c] sm:%s188]
                %208 = vst [vmem:[%s196 + $0x14] sm:%s188] %v207
                %v209 = vld [vmem:[%s195 + $0x48] sm:%s188]
                %210 = vst [vmem:[%s196 + $0x18] sm:%s188] %v209
                %v211 = vld [vmem:[%s195 + $0x54] sm:%s188]
                %212 = vst [vmem:[%s196 + $0x1c] sm:%s188] %v211
                %v213 = vld [vmem:[%s195 + $0x60] sm:%s188]
                %214 = vst [vmem:[%s196 + $0x20] sm:%s188] %v213
                %v215 = vld [vmem:[%s195 + $0x6c] sm:%s188]
                %216 = vst [vmem:[%s196 + $0x24] sm:%s188] %v215
                %v217 = vld [vmem:[%s195 + $0x78] sm:%s188]
                %218 = vst [vmem:[%s196 + $0x28] sm:%s188] %v217
                %v219 = vld [vmem:[%s195 + $0x84] sm:%s188]
                %220 = vst [vmem:[%s196 + $0x2c] sm:%s188] %v219
                %v221 = vld [vmem:[%s195 + $0x90] sm:%s188]
                %222 = vst [vmem:[%s196 + $0x30] sm:%s188] %v221
                %v223 = vld [vmem:[%s195 + $0x9c] sm:%s188]
                %224 = vst [vmem:[%s196 + $0x34] sm:%s188] %v223
                %v225 = vld [vmem:[%s195 + $0xa8] sm:%s188]
                %226 = vst [vmem:[%s196 + $0x38] sm:%s188] %v225
                %v227 = vld [vmem:[%s195 + $0xb4] sm:%s188]
                %228 = vst [vmem:[%s196 + $0x3c] sm:%s188] %v227
              $region41: #{decoder_forward.19} parent=35 // loop_footer
                %s194 = sadd.s32 1, %s190
              $region42: #{decoder_forward.19} parent=35 // loop_footer_branch
                %189 = sbr.rel target = $region38
              $region43: #{decoder_forward.19} parent=35 // loop_exit
                _
            $region36: #{decoder_forward.19} parent=27 // pred_fallthru
              _
          $region28: #{decoder_forward.19} parent=23 // pred_fallthru
            _
          %281 = vnop
        $region24: #{decoder_forward.19} parent=19 // pred_fallthru
          _
        // Predicated region
        $region62: #{decoder_forward.19} parent=19 // pred_check
          %p282 = pneg %p104
        $region63: #{decoder_forward.19} parent=19 // pred_check_branch
          %284 = sbr.rel (%p282) target = $region65
        $region64: #{decoder_forward.19} parent=19 // pred_region
          %p285 = scmp.lt.s32.totalorder %s17, 2
          %s286 = scalar_select %p285, %s17, 2
          %s287 = scalar_lea.vmem %s2, %s286
        $region65: #{decoder_forward.19} parent=19 // pred_fallthru
          _
      $region20: #{decoder_forward.19} parent=5 // pred_fallthru
        _
      %p288 = scmp.le.s32.totalorder 1, %s9
      %p289 = scmp.lt.s32.totalorder %s9, 4
      %p290 = pnand %p288, %p289
      %p291 = pneg %p290
      // Predicated region
      $region66: #{decoder_forward.19} parent=5 // pred_check
        _
      $region67: #{decoder_forward.19} parent=5 // pred_check_branch
        %293 = sbr.rel (%p290) target = $region69
      $region68: #{decoder_forward.19} parent=5 // pred_region
        %s294 = ssub.s32 %s9, 1
        %s295 = sand.u32 %s71, 1
        %s296 = sand.u32 %s71, 1
        %s297 = smul.addr %s296, 64
        %s298 = scalar_lea.vmem [#allocation3], %s297
        // Predicated region
        $region70: #{decoder_forward.19} parent=68 // pred_check
          %p299 = pneg %p84
        $region71: #{decoder_forward.19} parent=68 // pred_check_branch
          %301 = sbr.rel (%p299) target = $region73
        $region72: #{decoder_forward.19} parent=68 // pred_region
          _
        $region73: #{decoder_forward.19} parent=68 // pred_fallthru
          _
        %s302 = smul.u32 2, %s19
        %p303 = scmp.lt.s32.totalorder %s302, 1
        %s304 = scalar_select %p303, %s302, 1
        %p305 = scmp.lt.s32.totalorder %s21, 0
        %s306 = scalar_select %p305, %s21, 0
        %s307 = sadd.s32 %s306, %s304
        %s308 = smul.addr %s307, 8
        %s309 = scalar_lea.vmem %s0, %s308
        %p310 = pneg %p56
        %p311 = pneg %p53
        %s312 = sand.u32 %s71, 1
        %s313 = sand.u32 %s71, 1
        %s314 = smul.addr %s313, 64
        %s315 = scalar_lea.vmem [#allocation3], %s314
        %p316 = pneg %p84
        %p317 = pneg %p81
        %p318 = scmp.lt.s32.totalorder %s20, 2
        %s319 = scalar_select %p318, %s20, 2
        %s320 = scalar_lea.vmem %s2, %s319
        %p321 = pneg %p110
        %p322 = pneg %p107
        %p323 = pneg %p138
        %p324 = pneg %p135
        %s325 = sand.u32 %s125, 1
        %s326 = sand.u32 %s125, 1
        %s327 = smul.addr %s326, 8
        %s328 = scalar_lea.vmem [#allocation4], %s327
        %s329 = smul.u32 2, %s19
        %p330 = scmp.lt.s32.totalorder %s329, 1
        %s331 = scalar_select %p330, %s329, 1
        %p332 = scmp.lt.s32.totalorder %s21, 0
        %s333 = scalar_select %p332, %s21, 0
        %s334 = sadd.s32 %s333, %s331
        %s335 = smul.addr %s334, 8
        %s336 = scalar_lea.vmem %s0, %s335
        %s337 = smul.u32 2, %s19
        %s338 = smul.u32 16, %s21
        %p339 = scmp.lt.s32.totalorder %s20, 2
        %s340 = scalar_select %p339, %s20, 2
        %s341 = scalar_lea.vmem %s2, %s340
        %s342 = smul.u32 2, %s19
        %p344 = scmp.eq.s32.totalorder %s21, 0
        // Predicated region
        $region74: #{decoder_forward.19} parent=68 // pred_check
          %p345 = pneg %p344
        $region75: #{decoder_forward.19} parent=68 // pred_check_branch
          %347 = sbr.rel (%p345) target = $region77
        $region76: #{decoder_forward.19} parent=68 // pred_region
          %348 = vst [vmem:[#allocation2] sm:$0xff] 0.0
          %349 = vst [vmem:[#allocation2 + $0x8] sm:$0xff] 0.0
        $region77: #{decoder_forward.19} parent=68 // pred_fallthru
          _
        %v350 = vld [vmem:[#allocation2] sm:$0xff]
        %v351 = vld [vmem:[#allocation2 + $0x8] sm:$0xff]
        %v352 = vld [vmem:[%s336] sm:$0xff]
        %v353 = vld [vmem:[%s336 + $0x8] sm:$0xff]
        %v354 = vpack.c.bf16 %v353, %v352
        %v355 = vld [vmem:[%s298] sm:$0xf]
        %v356 = vld [vmem:[%s298 + $0x4] sm:$0xf]
        %v357 = vld [vmem:[%s298 + $0x8] sm:$0xf]
        %v358 = vld [vmem:[%s298 + $0xc] sm:$0xf]
        %v359 = vld [vmem:[%s298 + $0x10] sm:$0xf]
        %v360 = vld [vmem:[%s298 + $0x14] sm:$0xf]
        %v361 = vld [vmem:[%s298 + $0x18] sm:$0xf]
        %v362 = vld [vmem:[%s298 + $0x1c] sm:$0xf]
        %v363 = vld [vmem:[%s298 + $0x20] sm:$0xf]
        %v364 = vld [vmem:[%s298 + $0x24] sm:$0xf]
        %v365 = vld [vmem:[%s298 + $0x28] sm:$0xf]
        %v366 = vld [vmem:[%s298 + $0x2c] sm:$0xf]
        %v367 = vld [vmem:[%s298 + $0x30] sm:$0xf]
        %v368 = vld [vmem:[%s298 + $0x34] sm:$0xf]
        %v369 = vld [vmem:[%s298 + $0x38] sm:$0xf]
        %v370 = vld [vmem:[%s298 + $0x3c] sm:$0xf]
        %v387 = vunpack.c.l.b16 %v355
        %v388 = vunpack.c.l.b16 %v356
        %v389 = vunpack.c.l.b16 %v357
        %v390 = vunpack.c.l.b16 %v358
        %v391 = vunpack.c.l.b16 %v359
        %v392 = vunpack.c.l.b16 %v360
        %v393 = vunpack.c.l.b16 %v361
        %v394 = vunpack.c.l.b16 %v362
        %v395 = vunpack.c.l.b16 %v363
        %v396 = vunpack.c.l.b16 %v364
        %v397 = vunpack.c.l.b16 %v365
        %v398 = vunpack.c.l.b16 %v366
        %v399 = vunpack.c.l.b16 %v367
        %v400 = vunpack.c.l.b16 %v368
        %v401 = vunpack.c.l.b16 %v369
        %v402 = vunpack.c.l.b16 %v370
        %v403 = vpack.c.b16 %v388, %v387
        %v404 = vpack.c.b16 %v390, %v389
        %v405 = vpack.c.b16 %v392, %v391
        %v406 = vpack.c.b16 %v394, %v393
        %v407 = vpack.c.b16 %v396, %v395
        %v408 = vpack.c.b16 %v398, %v397
        %v409 = vpack.c.b16 %v400, %v399
        %v410 = vpack.c.b16 %v402, %v401
        %419 = vmatprep.subr.bf16.mxu0 0
        %420 = vmatpush1.bf16.msra.mxu0 %v410
        %421 = vmatprep.subr.bf16.mxu0 0
        %422 = vmatpush1.bf16.msra.mxu0 %v409
        %423 = vmatprep.subr.bf16.mxu0 0
        %424 = vmatpush1.bf16.msra.mxu0 %v408
        %425 = vmatprep.subr.bf16.mxu0 0
        %426 = vmatpush1.bf16.msra.mxu0 %v407
        %427 = vmatprep.subr.bf16.mxu0 0
        %428 = vmatpush1.bf16.msra.mxu0 %v406
        %429 = vmatprep.subr.bf16.mxu0 0
        %430 = vmatpush1.bf16.msra.mxu0 %v405
        %431 = vmatprep.subr.bf16.mxu0 0
        %432 = vmatpush1.bf16.msra.mxu0 %v404
        %433 = vmatprep.subr.bf16.mxu0 0
        %434 = vmatpush1.bf16.msra.mxu0 %v403
        %435 = vmatprep.subr.bf16.mxu0 0
        %436 = vmatpush2.bf16.msra.mxu0 0
        %437 = vmatprep.subr.bf16.mxu0 0
        %438 = vmatpush2.bf16.msra.mxu0 0
        %439 = vmatprep.subr.bf16.mxu0 0
        %440 = vmatpush2.bf16.msra.mxu0 0
        %441 = vmatprep.subr.bf16.mxu0 0
        %442 = vmatpush2.bf16.msra.mxu0 0
        %443 = vmatprep.subr.bf16.mxu0 0
        %444 = vmatpush2.bf16.msra.mxu0 0
        %445 = vmatprep.subr.bf16.mxu0 0
        %446 = vmatpush2.bf16.msra.mxu0 0
        %447 = vmatprep.subr.bf16.mxu0 0
        %448 = vmatpush2.bf16.msra.mxu0 0
        %449 = vmatprep.subr.bf16.mxu0 0
        %450 = vmatpush2.bf16.msra.mxu0 0
        %451 = vmatprep.mubr.bf16.mxu0 0
        %452 = vmatmul.mubr.bf16.gmra.mxu0 %v354
        %v453 = vpop.f32.mrf.mxu0
        %v454 = vadd.f32 0.0, %v453
        %v455 = vpop.f32.mrf.mxu0
        %v456 = vpop.f32.mrf.mxu0
        %v457 = vadd.f32 0.0, %v456
        %v458 = vpop.f32.mrf.mxu0
        %459 = vdwg.mxu0
        %v460 = vadd.f32 %v350, %v454
        %v461 = vadd.f32 %v351, %v457
        %462 = vst [vmem:[#allocation2] sm:$0xff] %v460
        %463 = vst [vmem:[#allocation2 + $0x8] sm:$0xff] %v461
        // Predicated region
        $region78: #{decoder_forward.19} parent=68 // pred_check
          %p464 = pneg %p344
        $region79: #{decoder_forward.19} parent=68 // pred_check_branch
          %466 = sbr.rel (%p464) target = $region81
        $region80: #{decoder_forward.19} parent=68 // pred_region
          %v467 = vld [vmem:[#allocation2] sm:$0xff]
          %v468 = vld [vmem:[#allocation2 + $0x8] sm:$0xff]
          %v469 = vld [vmem:[%s341] sm:$0x1]
          %v471 = vlaneseq
          %v472 = vshrl.u32 %v471, 7
          %v473 = vsub.s32 0, %v472
          %v474 = vrot.slane %v469, %v473
          %v476 = vadd.f32 %v467, %v474
          %v477 = vadd.f32 %v468, %v474
          %v478 = vpack.c.bf16 %v477, %v476
          %v480 = vunpack.c.l.b16 %v478
          %v481 = vunpack.c.h.b16 %v478
          %v482 = vpack.c.b16 %v480, %v480
          %v483 = vpack.c.b16 %v481, %v481
          %486 = vst [vmem:[%s328] sm:$0xf] %v482
          %487 = vst [vmem:[%s328 + $0x4] sm:$0xf] %v483
        $region81: #{decoder_forward.19} parent=68 // pred_fallthru
          _
        %s488 = sand.u32 %s125, 1
        %s489 = sand.u32 %s125, 1
        %s490 = smul.addr %s489, 8
        %s491 = scalar_lea.vmem [#allocation4], %s490
        // Predicated region
        $region82: #{decoder_forward.19} parent=68 // pred_check
          %p492 = pneg %p135
        $region83: #{decoder_forward.19} parent=68 // pred_check_branch
          %494 = sbr.rel (%p492) target = $region85
        $region84: #{decoder_forward.19} parent=68 // pred_region
          %s495 = smul.u32 2, %s19
          %s496 = smul.addr %s495, 3
          %s497 = sadd.s32 %s20, %s496
          %s498 = smul.addr %s497, 4
          %s499 = scalar_lea.vmem %s3, %s498
          // Predicated region
          $region86: #{decoder_forward.19} parent=84 // pred_check
            _
          $region87: #{decoder_forward.19} parent=84 // pred_check_branch
            %501 = sbr.rel (0) target = $region89
          $region88: #{decoder_forward.19} parent=84 // pred_region
            // Predicated region
            $region90: #{decoder_forward.19} parent=88 // pred_check
              _
            $region91: #{decoder_forward.19} parent=88 // pred_check_branch
              %503 = sbr.rel target = $region93
            $region92: #{decoder_forward.19} parent=88 // pred_region
              // Predicated region
              $region105: #{decoder_forward.19} parent=92 // pred_check
                _
              $region106: #{decoder_forward.19} parent=92 // pred_check_branch
                %521 = sbr.rel (0) target = $region108
              $region107: #{decoder_forward.19} parent=92 // pred_region
                loop: start=0, step=1, limit=1
                $region109: #{decoder_forward.19} parent=107 // loop_pre_header
                  _
                $region110: #{decoder_forward.19} parent=107 // loop_header
                  %s523 = sphi 0, %s527
                  %p524 = scmp.ge.s32.totalorder %s523, 1
                  %s528 = sphi %s491, %s491
                  %s529 = sphi %s499, %s499
                $region111: #{decoder_forward.19} parent=107 // loop_header_branch
                  %526 = sbr.rel (%p524) target = $region115
                $region112: #{decoder_forward.19} parent=107 // loop_body
                  _
                $region113: #{decoder_forward.19} parent=107 // loop_footer
                  %s527 = sadd.s32 1, %s523
                $region114: #{decoder_forward.19} parent=107 // loop_footer_branch
                  %522 = sbr.rel target = $region110
                $region115: #{decoder_forward.19} parent=107 // loop_exit
                  _
                %s531 = ssub.s32 16, 1
                loop: start=0, step=1, limit=1
                $region116: #{decoder_forward.19} parent=107 // loop_pre_header
                  _
                $region117: #{decoder_forward.19} parent=107 // loop_header
                  %s533 = sphi 0, %s537
                  %p534 = scmp.ge.s32.totalorder %s533, 1
                  %s538 = sphi %s491, %s491
                  %s539 = sphi %s499, %s499
                $region118: #{decoder_forward.19} parent=107 // loop_header_branch
                  %536 = sbr.rel (%p534) target = $region122
                $region119: #{decoder_forward.19} parent=107 // loop_body
                  %v540 = vld [vmem:[%s538] sm:%s531]
                  %541 = vst [vmem:[%s539] sm:%s531] %v540
                  %v542 = vld [vmem:[%s538 + $0x4] sm:%s531]
                  %543 = vst [vmem:[%s539 + $0xc] sm:%s531] %v542
                $region120: #{decoder_forward.19} parent=107 // loop_footer
                  %s537 = sadd.s32 1, %s533
                $region121: #{decoder_forward.19} parent=107 // loop_footer_branch
                  %532 = sbr.rel target = $region117
                $region122: #{decoder_forward.19} parent=107 // loop_exit
                  _
              $region108: #{decoder_forward.19} parent=92 // pred_fallthru
                _
            $region93: #{decoder_forward.19} parent=88 // pred_fallthru
              _
            // Predicated region
            $region94: #{decoder_forward.19} parent=88 // pred_check
              _
            $region95: #{decoder_forward.19} parent=88 // pred_check_branch
              %505 = sbr.rel (0) target = $region97
            $region96: #{decoder_forward.19} parent=88 // pred_region
              %s507 = ssub.s32 16, 1
              loop: start=0, step=1, limit=1
              $region98: #{decoder_forward.19} parent=96 // loop_pre_header
                _
              $region99: #{decoder_forward.19} parent=96 // loop_header
                %s509 = sphi 0, %s513
                %p510 = scmp.ge.s32.totalorder %s509, 1
                %s514 = sphi %s491, %s491
                %s515 = sphi %s499, %s499
              $region100: #{decoder_forward.19} parent=96 // loop_header_branch
                %512 = sbr.rel (%p510) target = $region104
              $region101: #{decoder_forward.19} parent=96 // loop_body
                %v516 = vld [vmem:[%s514] sm:%s507]
                %517 = vst [vmem:[%s515] sm:%s507] %v516
                %v518 = vld [vmem:[%s514 + $0x4] sm:%s507]
                %519 = vst [vmem:[%s515 + $0xc] sm:%s507] %v518
              $region102: #{decoder_forward.19} parent=96 // loop_footer
                %s513 = sadd.s32 1, %s509
              $region103: #{decoder_forward.19} parent=96 // loop_footer_branch
                %508 = sbr.rel target = $region99
              $region104: #{decoder_forward.19} parent=96 // loop_exit
                _
            $region97: #{decoder_forward.19} parent=88 // pred_fallthru
              _
          $region89: #{decoder_forward.19} parent=84 // pred_fallthru
            _
          %544 = vnop
        $region85: #{decoder_forward.19} parent=68 // pred_fallthru
          _
      $region69: #{decoder_forward.19} parent=5 // pred_fallthru
        _
      %p545 = scmp.le.s32.totalorder 2, %s9
      // Predicated region
      $region123: #{decoder_forward.19} parent=5 // pred_check
        %p546 = pneg %p545
      $region124: #{decoder_forward.19} parent=5 // pred_check_branch
        %548 = sbr.rel (%p546) target = $region126
      $region125: #{decoder_forward.19} parent=5 // pred_region
        %s549 = ssub.s32 %s9, 2
        // Predicated region
        $region127: #{decoder_forward.19} parent=125 // pred_check
          %p550 = pneg %p141
        $region128: #{decoder_forward.19} parent=125 // pred_check_branch
          %552 = sbr.rel (%p550) target = $region130
        $region129: #{decoder_forward.19} parent=125 // pred_region
          %s553 = sand.u32 %s126, 1
          %s554 = sand.u32 %s126, 1
          %s555 = smul.addr %s554, 8
          %s556 = scalar_lea.vmem [#allocation4], %s555
        $region130: #{decoder_forward.19} parent=125 // pred_fallthru
          _
      $region126: #{decoder_forward.19} parent=5 // pred_fallthru
        _
    $region6: #{decoder_forward.19} parent=1 // loop_footer
      %s13 = sadd.s32 1, %s9
    $region7: #{decoder_forward.19} parent=1 // loop_footer_branch
      %8 = sbr.rel target = $region3
    $region8: #{decoder_forward.19} parent=1 // loop_exit
      _

// kernel: decoder_forward.22
$region0: #{decoder_forward.22}
  #allocation0 [shape = 'u32[]', space=smem, size = 0x4, offset = 0x4, fixed_abs, tag = 'smem constant byte address 0x4 - core index']
  #allocation1 [shape = 'u32[144,128]{1,0:T(1,128)}', space=vmem, size = 0x12000, scoped, tag = 'internal scratch']
  #allocation2 [shape = 'f32[16,128]{1,0:T(8,128)}', space=vmem, size = 0x2000, scoped, tag = 'scratch operand']
  %s0 = inlined_call_operand.vmem [shape: f32[16,128], index: 0, kind: input, shape index: {}]
  %s1 = inlined_call_operand.vmem [shape: bf16[128,128], index: 1, kind: input, shape index: {}]
  %s2 = inlined_call_operand.vmem [shape: f32[1,128], index: 2, kind: input, shape index: {}]
  %s3 = inlined_call_operand.vmem [shape: bf16[16,128], index: 3, kind: output, shape index: {}]
  %s4 = sld [smem:[#allocation0]]
  $region30: #{decoder_forward.22} parent=0
    _
  %s6 = ssub.s32 1, %s4
  %s7 = scalar_select 0, %s6, %s4
  // Predicated region
  $region2: #{decoder_forward.22} parent=0 // pred_check
    _
  $region3: #{decoder_forward.22} parent=0 // pred_check_branch
    %9 = sbr.rel (0) target = $region5
  $region4: #{decoder_forward.22} parent=0 // pred_region
    _
  $region5: #{decoder_forward.22} parent=0 // pred_fallthru
    _
  // Predicated region
  $region6: #{decoder_forward.22} parent=0 // pred_check
    _
  $region7: #{decoder_forward.22} parent=0 // pred_check_branch
    %11 = sbr.rel (0) target = $region9
  $region8: #{decoder_forward.22} parent=0 // pred_region
    _
  $region9: #{decoder_forward.22} parent=0 // pred_fallthru
    _
  // Predicated region
  $region10: #{decoder_forward.22} parent=0 // pred_check
    _
  $region11: #{decoder_forward.22} parent=0 // pred_check_branch
    %13 = sbr.rel (0) target = $region13
  $region12: #{decoder_forward.22} parent=0 // pred_region
    _
  $region13: #{decoder_forward.22} parent=0 // pred_fallthru
    _
  %p15 = scmp.eq.s32.totalorder 0, 0
  // Predicated region
  $region14: #{decoder_forward.22} parent=0 // pred_check
    %p16 = pneg %p15
  $region15: #{decoder_forward.22} parent=0 // pred_check_branch
    %18 = sbr.rel (%p16) target = $region17
  $region16: #{decoder_forward.22} parent=0 // pred_region
    %19 = vst [vmem:[#allocation2] sm:$0xff] 0.0
    %20 = vst [vmem:[#allocation2 + $0x8] sm:$0xff] 0.0
  $region17: #{decoder_forward.22} parent=0 // pred_fallthru
    _
  %v21 = vld [vmem:[#allocation2] sm:$0xff]
  %v22 = vld [vmem:[#allocation2 + $0x8] sm:$0xff]
  %v23 = vld [vmem:[%s0] sm:$0xff]
  %v24 = vld [vmem:[%s0 + $0x8] sm:$0xff]
  %v25 = vpack.c.bf16 %v24, %v23
  %v26 = vld [vmem:[%s1] sm:$0xf]
  %v27 = vld [vmem:[%s1 + $0x4] sm:$0xf]
  %v28 = vld [vmem:[%s1 + $0x8] sm:$0xf]
  %v29 = vld [vmem:[%s1 + $0xc] sm:$0xf]
  %v30 = vld [vmem:[%s1 + $0x10] sm:$0xf]
  %v31 = vld [vmem:[%s1 + $0x14] sm:$0xf]
  %v32 = vld [vmem:[%s1 + $0x18] sm:$0xf]
  %v33 = vld [vmem:[%s1 + $0x1c] sm:$0xf]
  %v34 = vld [vmem:[%s1 + $0x20] sm:$0xf]
  %v35 = vld [vmem:[%s1 + $0x24] sm:$0xf]
  %v36 = vld [vmem:[%s1 + $0x28] sm:$0xf]
  %v37 = vld [vmem:[%s1 + $0x2c] sm:$0xf]
  %v38 = vld [vmem:[%s1 + $0x30] sm:$0xf]
  %v39 = vld [vmem:[%s1 + $0x34] sm:$0xf]
  %v40 = vld [vmem:[%s1 + $0x38] sm:$0xf]
  %v41 = vld [vmem:[%s1 + $0x3c] sm:$0xf]
  %v58 = vunpack.c.l.b16 %v26
  %v59 = vunpack.c.l.b16 %v27
  %v60 = vunpack.c.l.b16 %v28
  %v61 = vunpack.c.l.b16 %v29
  %v62 = vunpack.c.l.b16 %v30
  %v63 = vunpack.c.l.b16 %v31
  %v64 = vunpack.c.l.b16 %v32
  %v65 = vunpack.c.l.b16 %v33
  %v66 = vunpack.c.l.b16 %v34
  %v67 = vunpack.c.l.b16 %v35
  %v68 = vunpack.c.l.b16 %v36
  %v69 = vunpack.c.l.b16 %v37
  %v70 = vunpack.c.l.b16 %v38
  %v71 = vunpack.c.l.b16 %v39
  %v72 = vunpack.c.l.b16 %v40
  %v73 = vunpack.c.l.b16 %v41
  %v74 = vpack.c.b16 %v59, %v58
  %v75 = vpack.c.b16 %v61, %v60
  %v76 = vpack.c.b16 %v63, %v62
  %v77 = vpack.c.b16 %v65, %v64
  %v78 = vpack.c.b16 %v67, %v66
  %v79 = vpack.c.b16 %v69, %v68
  %v80 = vpack.c.b16 %v71, %v70
  %v81 = vpack.c.b16 %v73, %v72
  %90 = vmatprep.subr.bf16.mxu0 0
  %91 = vmatpush1.bf16.msra.mxu0 %v81
  %92 = vmatprep.subr.bf16.mxu0 0
  %93 = vmatpush1.bf16.msra.mxu0 %v80
  %94 = vmatprep.subr.bf16.mxu0 0
  %95 = vmatpush1.bf16.msra.mxu0 %v79
  %96 = vmatprep.subr.bf16.mxu0 0
  %97 = vmatpush1.bf16.msra.mxu0 %v78
  %98 = vmatprep.subr.bf16.mxu0 0
  %99 = vmatpush1.bf16.msra.mxu0 %v77
  %100 = vmatprep.subr.bf16.mxu0 0
  %101 = vmatpush1.bf16.msra.mxu0 %v76
  %102 = vmatprep.subr.bf16.mxu0 0
  %103 = vmatpush1.bf16.msra.mxu0 %v75
  %104 = vmatprep.subr.bf16.mxu0 0
  %105 = vmatpush1.bf16.msra.mxu0 %v74
  %106 = vmatprep.subr.bf16.mxu0 0
  %107 = vmatpush2.bf16.msra.mxu0 0
  %108 = vmatprep.subr.bf16.mxu0 0
  %109 = vmatpush2.bf16.msra.mxu0 0
  %110 = vmatprep.subr.bf16.mxu0 0
  %111 = vmatpush2.bf16.msra.mxu0 0
  %112 = vmatprep.subr.bf16.mxu0 0
  %113 = vmatpush2.bf16.msra.mxu0 0
  %114 = vmatprep.subr.bf16.mxu0 0
  %115 = vmatpush2.bf16.msra.mxu0 0
  %116 = vmatprep.subr.bf16.mxu0 0
  %117 = vmatpush2.bf16.msra.mxu0 0
  %118 = vmatprep.subr.bf16.mxu0 0
  %119 = vmatpush2.bf16.msra.mxu0 0
  %120 = vmatprep.subr.bf16.mxu0 0
  %121 = vmatpush2.bf16.msra.mxu0 0
  %122 = vmatprep.mubr.bf16.mxu0 0
  %123 = vmatmul.mubr.bf16.gmra.mxu0 %v25
  %v124 = vpop.f32.mrf.mxu0
  %v125 = vadd.f32 0.0, %v124
  %v126 = vpop.f32.mrf.mxu0
  %v127 = vpop.f32.mrf.mxu0
  %v128 = vadd.f32 0.0, %v127
  %v129 = vpop.f32.mrf.mxu0
  %130 = vdwg.mxu0
  %v131 = vadd.f32 %v21, %v125
  %v132 = vadd.f32 %v22, %v128
  %133 = vst [vmem:[#allocation2] sm:$0xff] %v131
  %134 = vst [vmem:[#allocation2 + $0x8] sm:$0xff] %v132
  // Predicated region
  $region18: #{decoder_forward.22} parent=0 // pred_check
    %p135 = pneg %p15
  $region19: #{decoder_forward.22} parent=0 // pred_check_branch
    %137 = sbr.rel (%p135) target = $region21
  $region20: #{decoder_forward.22} parent=0 // pred_region
    %v138 = vld [vmem:[#allocation2] sm:$0xff]
    %v139 = vld [vmem:[#allocation2 + $0x8] sm:$0xff]
    %v140 = vld [vmem:[%s2] sm:$0x1]
    %v142 = vlaneseq
    %v143 = vshrl.u32 %v142, 7
    %v144 = vsub.s32 0, %v143
    %v145 = vrot.slane %v140, %v144
    %v147 = vadd.f32 %v138, %v145
    %v148 = vadd.f32 %v139, %v145
    %v149 = vpack.c.bf16 %v148, %v147
    %v151 = vunpack.c.l.b16 %v149
    %v152 = vunpack.c.h.b16 %v149
    %v153 = vpack.c.b16 %v151, %v151
    %v154 = vpack.c.b16 %v152, %v152
    %157 = vst [vmem:[%s3] sm:$0xf] %v153
    %158 = vst [vmem:[%s3 + $0x4] sm:$0xf] %v154
  $region21: #{decoder_forward.22} parent=0 // pred_fallthru
    _
  // Predicated region
  $region22: #{decoder_forward.22} parent=0 // pred_check
    _
  $region23: #{decoder_forward.22} parent=0 // pred_check_branch
    %160 = sbr.rel (0) target = $region25
  $region24: #{decoder_forward.22} parent=0 // pred_region
    _
  $region25: #{decoder_forward.22} parent=0 // pred_fallthru
    _
  // Predicated region
  $region26: #{decoder_forward.22} parent=0 // pred_check
    _
  $region27: #{decoder_forward.22} parent=0 // pred_check_branch
    %162 = sbr.rel (0) target = $region29
  $region28: #{decoder_forward.22} parent=0 // pred_region
    _
  $region29: #{decoder_forward.22} parent=0 // pred_fallthru
    _

// kernel: decoder_forward.21
$region0: #{decoder_forward.21}
  #allocation0 [shape = 'u32[]', space=smem, size = 0x4, offset = 0x4, fixed_abs, tag = 'smem constant byte address 0x4 - core index']
  #allocation1 [shape = 'u32[144,128]{1,0:T(1,128)}', space=vmem, size = 0x12000, scoped, tag = 'internal scratch']
  %s0 = inlined_call_operand.vmem [shape: bf16[16,128], index: 0, kind: input, shape index: {}]
  %s1 = inlined_call_operand.vmem [shape: bf16[128,128], index: 1, kind: input, shape index: {}]
  %s2 = inlined_call_operand.vmem [shape: f32[1,128], index: 2, kind: input, shape index: {}]
  %s3 = inlined_call_operand.vmem [shape: f32[16,128], index: 3, kind: input, shape index: {}]
  %s4 = inlined_call_operand.vmem [shape: f32[1,128], index: 4, kind: input, shape index: {}]
  %s5 = inlined_call_operand.vmem [shape: f32[1,128], index: 5, kind: input, shape index: {}]
  %s6 = inlined_call_operand.vmem [shape: f32[16,128], index: 6, kind: output, shape index: {}]
  %s7 = sld [smem:[#allocation0]]
  $region34: #{decoder_forward.21} parent=0
    _
  %s9 = ssub.s32 1, %s7
  %s10 = scalar_select 0, %s9, %s7
  // Predicated region
  $region2: #{decoder_forward.21} parent=0 // pred_check
    _
  $region3: #{decoder_forward.21} parent=0 // pred_check_branch
    %12 = sbr.rel (0) target = $region5
  $region4: #{decoder_forward.21} parent=0 // pred_region
    _
  $region5: #{decoder_forward.21} parent=0 // pred_fallthru
    _
  // Predicated region
  $region6: #{decoder_forward.21} parent=0 // pred_check
    _
  $region7: #{decoder_forward.21} parent=0 // pred_check_branch
    %14 = sbr.rel (0) target = $region9
  $region8: #{decoder_forward.21} parent=0 // pred_region
    _
  $region9: #{decoder_forward.21} parent=0 // pred_fallthru
    _
  // Predicated region
  $region10: #{decoder_forward.21} parent=0 // pred_check
    _
  $region11: #{decoder_forward.21} parent=0 // pred_check_branch
    %16 = sbr.rel (0) target = $region13
  $region12: #{decoder_forward.21} parent=0 // pred_region
    _
  $region13: #{decoder_forward.21} parent=0 // pred_fallthru
    _
  // Predicated region
  $region14: #{decoder_forward.21} parent=0 // pred_check
    _
  $region15: #{decoder_forward.21} parent=0 // pred_check_branch
    %18 = sbr.rel (0) target = $region17
  $region16: #{decoder_forward.21} parent=0 // pred_region
    _
  $region17: #{decoder_forward.21} parent=0 // pred_fallthru
    _
  // Predicated region
  $region18: #{decoder_forward.21} parent=0 // pred_check
    _
  $region19: #{decoder_forward.21} parent=0 // pred_check_branch
    %20 = sbr.rel (0) target = $region21
  $region20: #{decoder_forward.21} parent=0 // pred_region
    _
  $region21: #{decoder_forward.21} parent=0 // pred_fallthru
    _
  // Predicated region
  $region22: #{decoder_forward.21} parent=0 // pred_check
    _
  $region23: #{decoder_forward.21} parent=0 // pred_check_branch
    %22 = sbr.rel (0) target = $region25
  $region24: #{decoder_forward.21} parent=0 // pred_region
    _
  $region25: #{decoder_forward.21} parent=0 // pred_fallthru
    _
  %v24 = vld [vmem:[%s0] sm:$0xf]
  %v25 = vld [vmem:[%s0 + $0x4] sm:$0xf]
  %v26 = vld [vmem:[%s1] sm:$0xf]
  %v27 = vld [vmem:[%s1 + $0x4] sm:$0xf]
  %v28 = vld [vmem:[%s1 + $0x8] sm:$0xf]
  %v29 = vld [vmem:[%s1 + $0xc] sm:$0xf]
  %v30 = vld [vmem:[%s1 + $0x10] sm:$0xf]
  %v31 = vld [vmem:[%s1 + $0x14] sm:$0xf]
  %v32 = vld [vmem:[%s1 + $0x18] sm:$0xf]
  %v33 = vld [vmem:[%s1 + $0x1c] sm:$0xf]
  %v34 = vld [vmem:[%s1 + $0x20] sm:$0xf]
  %v35 = vld [vmem:[%s1 + $0x24] sm:$0xf]
  %v36 = vld [vmem:[%s1 + $0x28] sm:$0xf]
  %v37 = vld [vmem:[%s1 + $0x2c] sm:$0xf]
  %v38 = vld [vmem:[%s1 + $0x30] sm:$0xf]
  %v39 = vld [vmem:[%s1 + $0x34] sm:$0xf]
  %v40 = vld [vmem:[%s1 + $0x38] sm:$0xf]
  %v41 = vld [vmem:[%s1 + $0x3c] sm:$0xf]
  %v42 = vld [vmem:[%s2] sm:$0x1]
  %v44 = vlaneseq
  %v45 = vshrl.u32 %v44, 7
  %v46 = vsub.s32 0, %v45
  %v47 = vrot.slane %v42, %v46
  %v51 = vunpack.c.l.b16 %v24
  %v52 = vunpack.c.l.b16 %v25
  %v53 = vpack.c.b16 %v52, %v51
  %v71 = vunpack.c.l.b16 %v26
  %v72 = vunpack.c.l.b16 %v27
  %v73 = vunpack.c.l.b16 %v28
  %v74 = vunpack.c.l.b16 %v29
  %v75 = vunpack.c.l.b16 %v30
  %v76 = vunpack.c.l.b16 %v31
  %v77 = vunpack.c.l.b16 %v32
  %v78 = vunpack.c.l.b16 %v33
  %v79 = vunpack.c.l.b16 %v34
  %v80 = vunpack.c.l.b16 %v35
  %v81 = vunpack.c.l.b16 %v36
  %v82 = vunpack.c.l.b16 %v37
  %v83 = vunpack.c.l.b16 %v38
  %v84 = vunpack.c.l.b16 %v39
  %v85 = vunpack.c.l.b16 %v40
  %v86 = vunpack.c.l.b16 %v41
  %v87 = vpack.c.b16 %v72, %v71
  %v88 = vpack.c.b16 %v74, %v73
  %v89 = vpack.c.b16 %v76, %v75
  %v90 = vpack.c.b16 %v78, %v77
  %v91 = vpack.c.b16 %v80, %v79
  %v92 = vpack.c.b16 %v82, %v81
  %v93 = vpack.c.b16 %v84, %v83
  %v94 = vpack.c.b16 %v86, %v85
  %103 = vmatprep.subr.bf16.mxu0 0
  %104 = vmatpush1.bf16.msra.mxu0 %v94
  %105 = vmatprep.subr.bf16.mxu0 0
  %106 = vmatpush1.bf16.msra.mxu0 %v93
  %107 = vmatprep.subr.bf16.mxu0 0
  %108 = vmatpush1.bf16.msra.mxu0 %v92
  %109 = vmatprep.subr.bf16.mxu0 0
  %110 = vmatpush1.bf16.msra.mxu0 %v91
  %111 = vmatprep.subr.bf16.mxu0 0
  %112 = vmatpush1.bf16.msra.mxu0 %v90
  %113 = vmatprep.subr.bf16.mxu0 0
  %114 = vmatpush1.bf16.msra.mxu0 %v89
  %115 = vmatprep.subr.bf16.mxu0 0
  %116 = vmatpush1.bf16.msra.mxu0 %v88
  %117 = vmatprep.subr.bf16.mxu0 0
  %118 = vmatpush1.bf16.msra.mxu0 %v87
  %119 = vmatprep.subr.bf16.mxu0 0
  %120 = vmatpush2.bf16.msra.mxu0 0
  %121 = vmatprep.subr.bf16.mxu0 0
  %122 = vmatpush2.bf16.msra.mxu0 0
  %123 = vmatprep.subr.bf16.mxu0 0
  %124 = vmatpush2.bf16.msra.mxu0 0
  %125 = vmatprep.subr.bf16.mxu0 0
  %126 = vmatpush2.bf16.msra.mxu0 0
  %127 = vmatprep.subr.bf16.mxu0 0
  %128 = vmatpush2.bf16.msra.mxu0 0
  %129 = vmatprep.subr.bf16.mxu0 0
  %130 = vmatpush2.bf16.msra.mxu0 0
  %131 = vmatprep.subr.bf16.mxu0 0
  %132 = vmatpush2.bf16.msra.mxu0 0
  %133 = vmatprep.subr.bf16.mxu0 0
  %134 = vmatpush2.bf16.msra.mxu0 0
  %135 = vmatprep.mubr.bf16.mxu0 0
  %136 = vmatmul.mubr.bf16.gmra.mxu0 %v53
  %v137 = vpop.f32.mrf.mxu0
  %v138 = vadd.f32 %v47, %v137
  %v139 = vpop.f32.mrf.mxu0
  %v140 = vpop.f32.mrf.mxu0
  %v141 = vadd.f32 %v47, %v140
  %v142 = vpop.f32.mrf.mxu0
  %143 = vdwg.mxu0
  %v144 = vld [vmem:[%s3] sm:$0xff]
  %v145 = vld [vmem:[%s3 + $0x8] sm:$0xff]
  %v146 = vadd.f32 %v144, %v138
  %v147 = vadd.f32 %v145, %v141
  %148 = vadd.xlane.f32.xlu0 %v146
  %v149 = vpop.xlane.xlu0 %148
  %150 = vadd.xlane.f32.xlu0 %v147
  %v151 = vpop.xlane.xlu0 %150
  %v152 = vrcp.pop 128.0
  %v153 = vmul.f32 %v149, %v152
  %v154 = vmul.f32 %v151, %v152
  %v155 = vsub.f32 %v146, %v153
  %v156 = vsub.f32 %v147, %v154
  %v157 = vmul.f32 %v155, %v155
  %v158 = vmul.f32 %v156, %v156
  %159 = vadd.xlane.f32.xlu0 %v157
  %v160 = vpop.xlane.xlu0 %159
  %161 = vadd.xlane.f32.xlu0 %v158
  %v162 = vpop.xlane.xlu0 %161
  %v163 = vmul.f32 %v160, %v152
  %v164 = vmul.f32 %v162, %v152
  %v165 = vadd.f32 %v163, 1e-05
  %v166 = vadd.f32 %v164, 1e-05
  %v167 = vrsqrt.pop %v165
  %v168 = vrsqrt.pop %v166
  %v169 = vmul.f32 %v155, %v167
  %v170 = vmul.f32 %v156, %v168
  %v171 = vld [vmem:[%s4] sm:$0x1]
  %v173 = vlaneseq
  %v174 = vshrl.u32 %v173, 7
  %v175 = vsub.s32 0, %v174
  %v176 = vrot.slane %v171, %v175
  %v178 = vmul.f32 %v169, %v176
  %v179 = vmul.f32 %v170, %v176
  %v180 = vld [vmem:[%s5] sm:$0x1]
  %v182 = vlaneseq
  %v183 = vshrl.u32 %v182, 7
  %v184 = vsub.s32 0, %v183
  %v185 = vrot.slane %v180, %v184
  %v187 = vadd.f32 %v178, %v185
  %v188 = vadd.f32 %v179, %v185
  %189 = vst [vmem:[%s6] sm:$0xff] %v187
  %190 = vst [vmem:[%s6 + $0x8] sm:$0xff] %v188
  // Predicated region
  $region26: #{decoder_forward.21} parent=0 // pred_check
    _
  $region27: #{decoder_forward.21} parent=0 // pred_check_branch
    %192 = sbr.rel (0) target = $region29
  $region28: #{decoder_forward.21} parent=0 // pred_region
    _
  $region29: #{decoder_forward.21} parent=0 // pred_fallthru
    _
  // Predicated region
  $region30: #{decoder_forward.21} parent=0 // pred_check
    _
  $region31: #{decoder_forward.21} parent=0 // pred_check_branch
    %194 = sbr.rel (0) target = $region33
  $region32: #{decoder_forward.21} parent=0 // pred_region
    _
  $region33: #{decoder_forward.21} parent=0 // pred_fallthru
    _

// kernel: decoder_forward.20
$region0: #{decoder_forward.20}
  #allocation0 [shape = 'u32[]', space=smem, size = 0x4, offset = 0x4, fixed_abs, tag = 'smem constant byte address 0x4 - core index']
  #allocation1 [shape = 'u32[144,128]{1,0:T(1,128)}', space=vmem, size = 0x12000, scoped, tag = 'internal scratch']
  %s0 = inlined_call_operand.vmem [shape: bf16[2,8,384], index: 0, kind: input, shape index: {}, may-alias: {0,1,2}]
  %s1 = inlined_call_operand.vmem [shape: bf16[2,8,384], index: 1, kind: input, shape index: {}, may-alias: {0,1,2}]
  %s2 = inlined_call_operand.vmem [shape: bf16[2,8,384], index: 2, kind: input, shape index: {}, may-alias: {0,1,2}]
  %s3 = inlined_call_operand.vmem [shape: bf16[2,8,128], index: 3, kind: output, shape index: {}]
  %s4 = sld [smem:[#allocation0]]
  $region45: #{decoder_forward.20} parent=0
    _
  %s6 = ssub.s32 1, %s4
  %s7 = scalar_select 0, %s6, %s4
  loop: start=0, step=1, limit=4
  $region2: #{decoder_forward.20} parent=0 // loop_pre_header
    _
  $region3: #{decoder_forward.20} parent=0 // loop_header
    %s9 = sphi 0, %s13
    %p10 = scmp.ge.s32.totalorder %s9, 4
    %s19 = sphi 0, %s21
    %s22 = sphi 0, %s19
    %s23 = sphi 0, %s22
    %s39 = sphi 0, %s23
    %s45 = sphi 0, %s47
    %s48 = sphi 0, %s45
    %s49 = sphi 0, %s48
    %s65 = sphi 0, %s49
    %s71 = sphi 0, %s73
    %s74 = sphi 0, %s71
    %s75 = sphi 0, %s74
    %s91 = sphi 0, %s75
    %s97 = sphi 0, %s99
    %s100 = sphi 0, %s97
    %s101 = sphi 0, %s100
    %s117 = sphi 0, %s101
  $region4: #{decoder_forward.20} parent=0 // loop_header_branch
    %12 = sbr.rel (%p10) target = $region8
  $region5: #{decoder_forward.20} parent=0 // loop_body
    %s14 = ssub.s32 %s9, 1
    %s15 = ssub.s32 %s9, 2
    %s16 = sadd.s32 %s9, 1
    %s17 = ssub.s32 %s9, %s16
    %p18 = scmp.eq.s32.totalorder %s17, 0
    %s20 = sadd.s32 %s19, 1
    %s21 = scalar_select %p18, %s19, %s20
    %p24 = pneg %p18
    %p25 = scmp.eq.s32.totalorder %s9, 1
    %p26 = por %p24, %p25
    %p27 = scmp.ne.s32.totalorder %s19, %s22
    %p28 = scmp.eq.s32.totalorder %s9, 0
    %p29 = por %p27, %p28
    %p30 = scmp.ne.s32.totalorder %s19, %s22
    %p31 = scmp.eq.s32.totalorder %s14, 1
    %p32 = por %p30, %p31
    %p33 = scmp.ne.s32.totalorder %s22, %s23
    %p34 = scmp.eq.s32.totalorder %s14, 0
    %p35 = por %p33, %p34
    %p36 = scmp.ne.s32.totalorder %s22, %s23
    %p37 = scmp.eq.s32.totalorder %s15, 1
    %p38 = por %p36, %p37
    %p40 = scmp.ne.s32.totalorder %s23, %s39
    %p41 = scmp.eq.s32.totalorder %s15, 0
    %p42 = por %p40, %p41
    %s43 = ssub.s32 %s9, %s16
    %p44 = scmp.eq.s32.totalorder %s43, 0
    %s46 = sadd.s32 %s45, 1
    %s47 = scalar_select %p44, %s45, %s46
    %p50 = pneg %p44
    %p51 = scmp.eq.s32.totalorder %s9, 1
    %p52 = por %p50, %p51
    %p53 = scmp.ne.s32.totalorder %s45, %s48
    %p54 = scmp.eq.s32.totalorder %s9, 0
    %p55 = por %p53, %p54
    %p56 = scmp.ne.s32.totalorder %s45, %s48
    %p57 = scmp.eq.s32.totalorder %s14, 1
    %p58 = por %p56, %p57
    %p59 = scmp.ne.s32.totalorder %s48, %s49
    %p60 = scmp.eq.s32.totalorder %s14, 0
    %p61 = por %p59, %p60
    %p62 = scmp.ne.s32.totalorder %s48, %s49
    %p63 = scmp.eq.s32.totalorder %s15, 1
    %p64 = por %p62, %p63
    %p66 = scmp.ne.s32.totalorder %s49, %s65
    %p67 = scmp.eq.s32.totalorder %s15, 0
    %p68 = por %p66, %p67
    %s69 = ssub.s32 %s9, %s16
    %p70 = scmp.eq.s32.totalorder %s69, 0
    %s72 = sadd.s32 %s71, 1
    %s73 = scalar_select %p70, %s71, %s72
    %p76 = pneg %p70
    %p77 = scmp.eq.s32.totalorder %s9, 1
    %p78 = por %p76, %p77
    %p79 = scmp.ne.s32.totalorder %s71, %s74
    %p80 = scmp.eq.s32.totalorder %s9, 0
    %p81 = por %p79, %p80
    %p82 = scmp.ne.s32.totalorder %s71, %s74
    %p83 = scmp.eq.s32.totalorder %s14, 1
    %p84 = por %p82, %p83
    %p85 = scmp.ne.s32.totalorder %s74, %s75
    %p86 = scmp.eq.s32.totalorder %s14, 0
    %p87 = por %p85, %p86
    %p88 = scmp.ne.s32.totalorder %s74, %s75
    %p89 = scmp.eq.s32.totalorder %s15, 1
    %p90 = por %p88, %p89
    %p92 = scmp.ne.s32.totalorder %s75, %s91
    %p93 = scmp.eq.s32.totalorder %s15, 0
    %p94 = por %p92, %p93
    %s95 = ssub.s32 %s9, %s16
    %p96 = scmp.eq.s32.totalorder %s95, 0
    %s98 = sadd.s32 %s97, 1
    %s99 = scalar_select %p96, %s97, %s98
    %p102 = pneg %p96
    %p103 = scmp.eq.s32.totalorder %s9, 1
    %p104 = por %p102, %p103
    %p105 = scmp.ne.s32.totalorder %s97, %s100
    %p106 = scmp.eq.s32.totalorder %s9, 0
    %p107 = por %p105, %p106
    %p108 = scmp.ne.s32.totalorder %s97, %s100
    %p109 = scmp.eq.s32.totalorder %s14, 1
    %p110 = por %p108, %p109
    %p111 = scmp.ne.s32.totalorder %s100, %s101
    %p112 = scmp.eq.s32.totalorder %s14, 0
    %p113 = por %p111, %p112
    %p114 = scmp.ne.s32.totalorder %s100, %s101
    %p115 = scmp.eq.s32.totalorder %s15, 1
    %p116 = por %p114, %p115
    %p118 = scmp.ne.s32.totalorder %s101, %s117
    %p119 = scmp.eq.s32.totalorder %s15, 0
    %p120 = por %p118, %p119
    %p121 = scmp.le.s32.totalorder 1, %s9
    %p122 = scmp.lt.s32.totalorder %s9, 3
    %p123 = pnand %p121, %p122
    %p124 = pneg %p123
    // Predicated region
    $region9: #{decoder_forward.20} parent=5 // pred_check
      _
    $region10: #{decoder_forward.20} parent=5 // pred_check_branch
      %126 = sbr.rel (%p123) target = $region12
    $region11: #{decoder_forward.20} parent=5 // pred_region
      %s127 = ssub.s32 %s9, 1
    $region12: #{decoder_forward.20} parent=5 // pred_fallthru
      _
    %p128 = scmp.lt.s32.totalorder %s9, 2
    // Predicated region
    $region13: #{decoder_forward.20} parent=5 // pred_check
      %p129 = pneg %p128
    $region14: #{decoder_forward.20} parent=5 // pred_check_branch
      %131 = sbr.rel (%p129) target = $region16
    $region15: #{decoder_forward.20} parent=5 // pred_region
      // Predicated region
      $region17: #{decoder_forward.20} parent=15 // pred_check
        %p132 = pneg %p29
      $region18: #{decoder_forward.20} parent=15 // pred_check_branch
        %134 = sbr.rel (%p132) target = $region20
      $region19: #{decoder_forward.20} parent=15 // pred_region
        %p135 = scmp.lt.s32.totalorder %s9, 1
        %s136 = scalar_select %p135, %s9, 1
        %s137 = smul.addr %s136, 3
        %s138 = smul.addr %s137, 4
        %s139 = scalar_lea.vmem %s0, %s138
      $region20: #{decoder_forward.20} parent=15 // pred_fallthru
        _
      // Predicated region
      $region21: #{decoder_forward.20} parent=15 // pred_check
        %p140 = pneg %p55
      $region22: #{decoder_forward.20} parent=15 // pred_check_branch
        %142 = sbr.rel (%p140) target = $region24
      $region23: #{decoder_forward.20} parent=15 // pred_region
        %p143 = scmp.lt.s32.totalorder %s9, 1
        %s144 = scalar_select %p143, %s9, 1
        %s145 = smul.addr %s144, 3
        %s146 = sadd.s32 1, %s145
        %s147 = smul.addr %s146, 4
        %s148 = scalar_lea.vmem %s1, %s147
      $region24: #{decoder_forward.20} parent=15 // pred_fallthru
        _
      // Predicated region
      $region25: #{decoder_forward.20} parent=15 // pred_check
        %p149 = pneg %p81
      $region26: #{decoder_forward.20} parent=15 // pred_check_branch
        %151 = sbr.rel (%p149) target = $region28
      $region27: #{decoder_forward.20} parent=15 // pred_region
        %p152 = scmp.lt.s32.totalorder %s9, 1
        %s153 = scalar_select %p152, %s9, 1
        %s154 = smul.addr %s153, 3
        %s155 = sadd.s32 2, %s154
        %s156 = smul.addr %s155, 4
        %s157 = scalar_lea.vmem %s2, %s156
      $region28: #{decoder_forward.20} parent=15 // pred_fallthru
        _
    $region16: #{decoder_forward.20} parent=5 // pred_fallthru
      _
    %p158 = scmp.le.s32.totalorder 1, %s9
    %p159 = scmp.lt.s32.totalorder %s9, 3
    %p160 = pnand %p158, %p159
    %p161 = pneg %p160
    // Predicated region
    $region29: #{decoder_forward.20} parent=5 // pred_check
      _
    $region30: #{decoder_forward.20} parent=5 // pred_check_branch
      %163 = sbr.rel (%p160) target = $region32
    $region31: #{decoder_forward.20} parent=5 // pred_region
      %s164 = ssub.s32 %s9, 1
      %p165 = scmp.lt.s32.totalorder %s14, 1
      %s166 = scalar_select %p165, %s14, 1
      %s167 = smul.addr %s166, 3
      %s168 = smul.addr %s167, 4
      %s169 = scalar_lea.vmem %s0, %s168
      %p170 = pneg %p35
      %p171 = pneg %p32
      %p172 = scmp.lt.s32.totalorder %s14, 1
      %s173 = scalar_select %p172, %s14, 1
      %s174 = smul.addr %s173, 3
      %s175 = sadd.s32 1, %s174
      %s176 = smul.addr %s175, 4
      %s177 = scalar_lea.vmem %s1, %s176
      %p178 = pneg %p61
      %p179 = pneg %p58
      %p180 = scmp.lt.s32.totalorder %s14, 1
      %s181 = scalar_select %p180, %s14, 1
      %s182 = smul.addr %s181, 3
      %s183 = sadd.s32 2, %s182
      %s184 = smul.addr %s183, 4
      %s185 = scalar_lea.vmem %s2, %s184
      %p186 = pneg %p87
      %p187 = pneg %p84
      %p188 = pneg %p113
      %p189 = pneg %p110
      %p190 = scmp.lt.s32.totalorder %s14, 1
      %s191 = scalar_select %p190, %s14, 1
      %s192 = smul.addr %s191, 4
      %s193 = scalar_lea.vmem %s3, %s192
      %p194 = scmp.lt.s32.totalorder %s14, 1
      %s195 = scalar_select %p194, %s14, 1
      %s196 = smul.addr %s195, 3
      %s197 = smul.addr %s196, 4
      %s198 = scalar_lea.vmem %s0, %s197
      %p199 = scmp.lt.s32.totalorder %s14, 1
      %s200 = scalar_select %p199, %s14, 1
      %s201 = smul.addr %s200, 3
      %s202 = sadd.s32 1, %s201
      %s203 = smul.addr %s202, 4
      %s204 = scalar_lea.vmem %s1, %s203
      %p205 = scmp.lt.s32.totalorder %s14, 1
      %s206 = scalar_select %p205, %s14, 1
      %s207 = smul.addr %s206, 3
      %s208 = sadd.s32 2, %s207
      %s209 = smul.addr %s208, 4
      %s210 = scalar_lea.vmem %s2, %s209
      %p211 = scmp.lt.s32.totalorder %s14, 1
      %s212 = scalar_select %p211, %s14, 1
      %s213 = smul.addr %s212, 4
      %s214 = scalar_lea.vmem %s3, %s213
      %v217 = vld [vmem:[%s198] sm:$0xf]
      %v218 = vmul.bf16 %v217, 1043676725
      %v219 = vld [vmem:[%s204] sm:$0xf]
      %v220 = vld [vmem:[%s210] sm:$0xf]
      %v221 = vlaneseq
      %v222 = vshrl.u32 %v221, 7
      %v223 = vlaneseq
      %v224 = vand.u32 %v223, 127
      %vm225 = vcmp.le.s32.totalorder %v224, %v222
      %vm226 = vcmask 261120
      %v228 = vsel %vm226, %v218, 0
      %v231 = vsel %vm226, %v219, 0
      %233 = vmatprep.subr.bf16.mxu0 0
      %234 = vmatpush1.bf16.xpose.msra.mxu0 0
      %235 = vmatprep.subr.bf16.mxu0 0
      %236 = vmatpush1.bf16.xpose.msra.mxu0 0
      %237 = vmatprep.subr.bf16.mxu0 0
      %238 = vmatpush1.bf16.xpose.msra.mxu0 0
      %239 = vmatprep.subr.bf16.mxu0 0
      %240 = vmatpush1.bf16.xpose.msra.mxu0 0
      %241 = vmatprep.subr.bf16.mxu0 0
      %242 = vmatpush1.bf16.xpose.msra.mxu0 0
      %243 = vmatprep.subr.bf16.mxu0 0
      %244 = vmatpush1.bf16.xpose.msra.mxu0 0
      %245 = vmatprep.subr.bf16.mxu0 0
      %246 = vmatpush1.bf16.xpose.msra.mxu0 0
      %247 = vmatprep.subr.bf16.mxu0 0
      %248 = vmatpush1.bf16.xpose.msra.mxu0 %v231
      %249 = vmatprep.subr.bf16.mxu0 0
      %250 = vmatpush2.bf16.xpose.msra.mxu0 0
      %251 = vmatprep.subr.bf16.mxu0 0
      %252 = vmatpush2.bf16.xpose.msra.mxu0 0
      %253 = vmatprep.subr.bf16.mxu0 0
      %254 = vmatpush2.bf16.xpose.msra.mxu0 0
      %255 = vmatprep.subr.bf16.mxu0 0
      %256 = vmatpush2.bf16.xpose.msra.mxu0 0
      %257 = vmatprep.subr.bf16.mxu0 0
      %258 = vmatpush2.bf16.xpose.msra.mxu0 0
      %259 = vmatprep.subr.bf16.mxu0 0
      %260 = vmatpush2.bf16.xpose.msra.mxu0 0
      %261 = vmatprep.subr.bf16.mxu0 0
      %262 = vmatpush2.bf16.xpose.msra.mxu0 0
      %263 = vmatprep.subr.bf16.mxu0 0
      %264 = vmatpush2.bf16.xpose.msra.mxu0 0
      %265 = vmatprep.mubr.bf16.mxu0 0
      %266 = vmatmul.mubr.bf16.gmra.mxu0 %v228
      %v267 = vpop.f32.mrf.mxu0
      %v268 = vadd.f32 0.0, %v267
      %v269 = vpop.f32.mrf.mxu0
      %v270 = vpop.f32.mrf.mxu0
      %v271 = vpop.f32.mrf.mxu0
      %272 = vdwg.mxu0
      %v273 = vsel %vm225, %v268, -1e+30
      %vm274 = vcmask 64512
      %v275 = vsel %vm274, %v273, -inf
      %276 = vmax.xlane.f32.xlu0 %v275
      %v277 = vpop.xlane.xlu0 %276
      %v278 = vsub.f32 %v273, %v277
      %v279 = vmul.f32 %v278, 1.442695
      %v280 = vpow.pop %v279
      %v281 = vsel %vm274, %v280, 0.0
      %282 = vadd.xlane.f32.xlu0 %v281
      %v283 = vpop.xlane.xlu0 %282
      %v284 = vrcp.pop %v283
      %v285 = vmul.f32 %v280, %v284
      %v286 = vpack.c.bf16 %v285, %v285
      %v288 = vsel %vm274, %v286, 0
      %vm290 = vcmask 1043456
      %v292 = vsel %vm290, %v220, 0
      %294 = vmatprep.subr.bf16.mxu0 0
      %295 = vmatpush1.bf16.msra.mxu0 0
      %296 = vmatprep.subr.bf16.mxu0 0
      %297 = vmatpush1.bf16.msra.mxu0 0
      %298 = vmatprep.subr.bf16.mxu0 0
      %299 = vmatpush1.bf16.msra.mxu0 0
      %300 = vmatprep.subr.bf16.mxu0 0
      %301 = vmatpush1.bf16.msra.mxu0 0
      %302 = vmatprep.subr.bf16.mxu0 0
      %303 = vmatpush1.bf16.msra.mxu0 0
      %304 = vmatprep.subr.bf16.mxu0 0
      %305 = vmatpush1.bf16.msra.mxu0 0
      %306 = vmatprep.subr.bf16.mxu0 0
      %307 = vmatpush1.bf16.msra.mxu0 0
      %308 = vmatprep.subr.bf16.mxu0 0
      %309 = vmatpush1.bf16.msra.mxu0 %v292
      %310 = vmatprep.subr.bf16.mxu0 0
      %311 = vmatpush2.bf16.msra.mxu0 0
      %312 = vmatprep.subr.bf16.mxu0 0
      %313 = vmatpush2.bf16.msra.mxu0 0
      %314 = vmatprep.subr.bf16.mxu0 0
      %315 = vmatpush2.bf16.msra.mxu0 0
      %316 = vmatprep.subr.bf16.mxu0 0
      %317 = vmatpush2.bf16.msra.mxu0 0
      %318 = vmatprep.subr.bf16.mxu0 0
      %319 = vmatpush2.bf16.msra.mxu0 0
      %320 = vmatprep.subr.bf16.mxu0 0
      %321 = vmatpush2.bf16.msra.mxu0 0
      %322 = vmatprep.subr.bf16.mxu0 0
      %323 = vmatpush2.bf16.msra.mxu0 0
      %324 = vmatprep.subr.bf16.mxu0 0
      %325 = vmatpush2.bf16.msra.mxu0 0
      %326 = vmatprep.mubr.bf16.mxu0 0
      %327 = vmatmul.mubr.bf16.gmra.mxu0 %v288
      %v328 = vpop.f32.mrf.mxu0
      %v329 = vadd.f32 0.0, %v328
      %v330 = vpop.f32.mrf.mxu0
      %v331 = vpop.f32.mrf.mxu0
      %v332 = vpop.f32.mrf.mxu0
      %333 = vdwg.mxu0
      %v335 = vunpack.c.l.b16 %v218
      %v336 = vpack.c.b16 %v335, %v335
      %337 = vrot.lane.b32.xlu0 %v336, 96
      %v338 = vpop.permute.xlu0 %337
      %v340 = vunpack.c.l.b16 %v219
      %v341 = vpack.c.b16 %v340, %v340
      %342 = vrot.lane.b32.xlu0 %v341, 96
      %v343 = vpop.permute.xlu0 %342
      %v345 = vsel %vm226, %v338, 0
      %v348 = vsel %vm226, %v343, 0
      %350 = vmatprep.subr.bf16.mxu0 0
      %351 = vmatpush1.bf16.xpose.msra.mxu0 0
      %352 = vmatprep.subr.bf16.mxu0 0
      %353 = vmatpush1.bf16.xpose.msra.mxu0 0
      %354 = vmatprep.subr.bf16.mxu0 0
      %355 = vmatpush1.bf16.xpose.msra.mxu0 0
      %356 = vmatprep.subr.bf16.mxu0 0
      %357 = vmatpush1.bf16.xpose.msra.mxu0 0
      %358 = vmatprep.subr.bf16.mxu0 0
      %359 = vmatpush1.bf16.xpose.msra.mxu0 0
      %360 = vmatprep.subr.bf16.mxu0 0
      %361 = vmatpush1.bf16.xpose.msra.mxu0 0
      %362 = vmatprep.subr.bf16.mxu0 0
      %363 = vmatpush1.bf16.xpose.msra.mxu0 0
      %364 = vmatprep.subr.bf16.mxu0 0
      %365 = vmatpush1.bf16.xpose.msra.mxu0 %v348
      %366 = vmatprep.subr.bf16.mxu0 0
      %367 = vmatpush2.bf16.xpose.msra.mxu0 0
      %368 = vmatprep.subr.bf16.mxu0 0
      %369 = vmatpush2.bf16.xpose.msra.mxu0 0
      %370 = vmatprep.subr.bf16.mxu0 0
      %371 = vmatpush2.bf16.xpose.msra.mxu0 0
      %372 = vmatprep.subr.bf16.mxu0 0
      %373 = vmatpush2.bf16.xpose.msra.mxu0 0
      %374 = vmatprep.subr.bf16.mxu0 0
      %375 = vmatpush2.bf16.xpose.msra.mxu0 0
      %376 = vmatprep.subr.bf16.mxu0 0
      %377 = vmatpush2.bf16.xpose.msra.mxu0 0
      %378 = vmatprep.subr.bf16.mxu0 0
      %379 = vmatpush2.bf16.xpose.msra.mxu0 0
      %380 = vmatprep.subr.bf16.mxu0 0
      %381 = vmatpush2.bf16.xpose.msra.mxu0 0
      %382 = vmatprep.mubr.bf16.mxu0 0
      %383 = vmatmul.mubr.bf16.gmra.mxu0 %v345
      %v384 = vpop.f32.mrf.mxu0
      %v385 = vadd.f32 0.0, %v384
      %v386 = vpop.f32.mrf.mxu0
      %v387 = vpop.f32.mrf.mxu0
      %v388 = vpop.f32.mrf.mxu0
      %389 = vdwg.mxu0
      %v390 = vsel %vm225, %v385, -1e+30
      %v391 = vsel %vm274, %v390, -inf
      %392 = vmax.xlane.f32.xlu0 %v391
      %v393 = vpop.xlane.xlu0 %392
      %v394 = vsub.f32 %v390, %v393
      %v395 = vmul.f32 %v394, 1.442695
      %v396 = vpow.pop %v395
      %v397 = vsel %vm274, %v396, 0.0
      %398 = vadd.xlane.f32.xlu0 %v397
      %v399 = vpop.xlane.xlu0 %398
      %v400 = vrcp.pop %v399
      %v401 = vmul.f32 %v396, %v400
      %v402 = vpack.c.bf16 %v401, %v401
      %v404 = vunpack.c.l.b16 %v220
      %v405 = vpack.c.b16 %v404, %v404
      %406 = vrot.lane.b32.xlu0 %v405, 96
      %v407 = vpop.permute.xlu0 %406
      %v409 = vsel %vm274, %v402, 0
      %v412 = vsel %vm290, %v407, 0
      %414 = vmatprep.subr.bf16.mxu0 0
      %415 = vmatpush1.bf16.msra.mxu0 0
      %416 = vmatprep.subr.bf16.mxu0 0
      %417 = vmatpush1.bf16.msra.mxu0 0
      %418 = vmatprep.subr.bf16.mxu0 0
      %419 = vmatpush1.bf16.msra.mxu0 0
      %420 = vmatprep.subr.bf16.mxu0 0
      %421 = vmatpush1.bf16.msra.mxu0 0
      %422 = vmatprep.subr.bf16.mxu0 0
      %423 = vmatpush1.bf16.msra.mxu0 0
      %424 = vmatprep.subr.bf16.mxu0 0
      %425 = vmatpush1.bf16.msra.mxu0 0
      %426 = vmatprep.subr.bf16.mxu0 0
      %427 = vmatpush1.bf16.msra.mxu0 0
      %428 = vmatprep.subr.bf16.mxu0 0
      %429 = vmatpush1.bf16.msra.mxu0 %v412
      %430 = vmatprep.subr.bf16.mxu0 0
      %431 = vmatpush2.bf16.msra.mxu0 0
      %432 = vmatprep.subr.bf16.mxu0 0
      %433 = vmatpush2.bf16.msra.mxu0 0
      %434 = vmatprep.subr.bf16.mxu0 0
      %435 = vmatpush2.bf16.msra.mxu0 0
      %436 = vmatprep.subr.bf16.mxu0 0
      %437 = vmatpush2.bf16.msra.mxu0 0
      %438 = vmatprep.subr.bf16.mxu0 0
      %439 = vmatpush2.bf16.msra.mxu0 0
      %440 = vmatprep.subr.bf16.mxu0 0
      %441 = vmatpush2.bf16.msra.mxu0 0
      %442 = vmatprep.subr.bf16.mxu0 0
      %443 = vmatpush2.bf16.msra.mxu0 0
      %444 = vmatprep.subr.bf16.mxu0 0
      %445 = vmatpush2.bf16.msra.mxu0 0
      %446 = vmatprep.mubr.bf16.mxu0 0
      %447 = vmatmul.mubr.bf16.gmra.mxu0 %v409
      %v448 = vpop.f32.mrf.mxu0
      %v449 = vadd.f32 0.0, %v448
      %v450 = vpop.f32.mrf.mxu0
      %v451 = vpop.f32.mrf.mxu0
      %v452 = vpop.f32.mrf.mxu0
      %453 = vdwg.mxu0
      %454 = vrot.lane.b32.xlu0 %v336, 64
      %v455 = vpop.permute.xlu0 %454
      %456 = vrot.lane.b32.xlu0 %v341, 64
      %v457 = vpop.permute.xlu0 %456
      %v459 = vsel %vm226, %v455, 0
      %v462 = vsel %vm226, %v457, 0
      %464 = vmatprep.subr.bf16.mxu0 0
      %465 = vmatpush1.bf16.xpose.msra.mxu0 0
      %466 = vmatprep.subr.bf16.mxu0 0
      %467 = vmatpush1.bf16.xpose.msra.mxu0 0
      %468 = vmatprep.subr.bf16.mxu0 0
      %469 = vmatpush1.bf16.xpose.msra.mxu0 0
      %470 = vmatprep.subr.bf16.mxu0 0
      %471 = vmatpush1.bf16.xpose.msra.mxu0 0
      %472 = vmatprep.subr.bf16.mxu0 0
      %473 = vmatpush1.bf16.xpose.msra.mxu0 0
      %474 = vmatprep.subr.bf16.mxu0 0
      %475 = vmatpush1.bf16.xpose.msra.mxu0 0
      %476 = vmatprep.subr.bf16.mxu0 0
      %477 = vmatpush1.bf16.xpose.msra.mxu0 0
      %478 = vmatprep.subr.bf16.mxu0 0
      %479 = vmatpush1.bf16.xpose.msra.mxu0 %v462
      %480 = vmatprep.subr.bf16.mxu0 0
      %481 = vmatpush2.bf16.xpose.msra.mxu0 0
      %482 = vmatprep.subr.bf16.mxu0 0
      %483 = vmatpush2.bf16.xpose.msra.mxu0 0
      %484 = vmatprep.subr.bf16.mxu0 0
      %485 = vmatpush2.bf16.xpose.msra.mxu0 0
      %486 = vmatprep.subr.bf16.mxu0 0
      %487 = vmatpush2.bf16.xpose.msra.mxu0 0
      %488 = vmatprep.subr.bf16.mxu0 0
      %489 = vmatpush2.bf16.xpose.msra.mxu0 0
      %490 = vmatprep.subr.bf16.mxu0 0
      %491 = vmatpush2.bf16.xpose.msra.mxu0 0
      %492 = vmatprep.subr.bf16.mxu0 0
      %493 = vmatpush2.bf16.xpose.msra.mxu0 0
      %494 = vmatprep.subr.bf16.mxu0 0
      %495 = vmatpush2.bf16.xpose.msra.mxu0 0
      %496 = vmatprep.mubr.bf16.mxu0 0
      %497 = vmatmul.mubr.bf16.gmra.mxu0 %v459
      %v498 = vpop.f32.mrf.mxu0
      %v499 = vadd.f32 0.0, %v498
      %v500 = vpop.f32.mrf.mxu0
      %v501 = vpop.f32.mrf.mxu0
      %v502 = vpop.f32.mrf.mxu0
      %503 = vdwg.mxu0
      %v504 = vsel %vm225, %v499, -1e+30
      %v505 = vsel %vm274, %v504, -inf
      %506 = vmax.xlane.f32.xlu0 %v505
      %v507 = vpop.xlane.xlu0 %506
      %v508 = vsub.f32 %v504, %v507
      %v509 = vmul.f32 %v508, 1.442695
      %v510 = vpow.pop %v509
      %v511 = vsel %vm274, %v510, 0.0
      %512 = vadd.xlane.f32.xlu0 %v511
      %v513 = vpop.xlane.xlu0 %512
      %v514 = vrcp.pop %v513
      %v515 = vmul.f32 %v510, %v514
      %v516 = vpack.c.bf16 %v515, %v515
      %517 = vrot.lane.b32.xlu0 %v405, 64
      %v518 = vpop.permute.xlu0 %517
      %v520 = vsel %vm274, %v516, 0
      %v523 = vsel %vm290, %v518, 0
      %525 = vmatprep.subr.bf16.mxu0 0
      %526 = vmatpush1.bf16.msra.mxu0 0
      %527 = vmatprep.subr.bf16.mxu0 0
      %528 = vmatpush1.bf16.msra.mxu0 0
      %529 = vmatprep.subr.bf16.mxu0 0
      %530 = vmatpush1.bf16.msra.mxu0 0
      %531 = vmatprep.subr.bf16.mxu0 0
      %532 = vmatpush1.bf16.msra.mxu0 0
      %533 = vmatprep.subr.bf16.mxu0 0
      %534 = vmatpush1.bf16.msra.mxu0 0
      %535 = vmatprep.subr.bf16.mxu0 0
      %536 = vmatpush1.bf16.msra.mxu0 0
      %537 = vmatprep.subr.bf16.mxu0 0
      %538 = vmatpush1.bf16.msra.mxu0 0
      %539 = vmatprep.subr.bf16.mxu0 0
      %540 = vmatpush1.bf16.msra.mxu0 %v523
      %541 = vmatprep.subr.bf16.mxu0 0
      %542 = vmatpush2.bf16.msra.mxu0 0
      %543 = vmatprep.subr.bf16.mxu0 0
      %544 = vmatpush2.bf16.msra.mxu0 0
      %545 = vmatprep.subr.bf16.mxu0 0
      %546 = vmatpush2.bf16.msra.mxu0 0
      %547 = vmatprep.subr.bf16.mxu0 0
      %548 = vmatpush2.bf16.msra.mxu0 0
      %549 = vmatprep.subr.bf16.mxu0 0
      %550 = vmatpush2.bf16.msra.mxu0 0
      %551 = vmatprep.subr.bf16.mxu0 0
      %552 = vmatpush2.bf16.msra.mxu0 0
      %553 = vmatprep.subr.bf16.mxu0 0
      %554 = vmatpush2.bf16.msra.mxu0 0
      %555 = vmatprep.subr.bf16.mxu0 0
      %556 = vmatpush2.bf16.msra.mxu0 0
      %557 = vmatprep.mubr.bf16.mxu0 0
      %558 = vmatmul.mubr.bf16.gmra.mxu0 %v520
      %v559 = vpop.f32.mrf.mxu0
      %v560 = vadd.f32 0.0, %v559
      %v561 = vpop.f32.mrf.mxu0
      %v562 = vpop.f32.mrf.mxu0
      %v563 = vpop.f32.mrf.mxu0
      %564 = vdwg.mxu0
      %565 = vrot.lane.b32.xlu0 %v336, 32
      %v566 = vpop.permute.xlu0 %565
      %567 = vrot.lane.b32.xlu0 %v341, 32
      %v568 = vpop.permute.xlu0 %567
      %v570 = vsel %vm226, %v566, 0
      %v573 = vsel %vm226, %v568, 0
      %575 = vmatprep.subr.bf16.mxu0 0
      %576 = vmatpush1.bf16.xpose.msra.mxu0 0
      %577 = vmatprep.subr.bf16.mxu0 0
      %578 = vmatpush1.bf16.xpose.msra.mxu0 0
      %579 = vmatprep.subr.bf16.mxu0 0
      %580 = vmatpush1.bf16.xpose.msra.mxu0 0
      %581 = vmatprep.subr.bf16.mxu0 0
      %582 = vmatpush1.bf16.xpose.msra.mxu0 0
      %583 = vmatprep.subr.bf16.mxu0 0
      %584 = vmatpush1.bf16.xpose.msra.mxu0 0
      %585 = vmatprep.subr.bf16.mxu0 0
      %586 = vmatpush1.bf16.xpose.msra.mxu0 0
      %587 = vmatprep.subr.bf16.mxu0 0
      %588 = vmatpush1.bf16.xpose.msra.mxu0 0
      %589 = vmatprep.subr.bf16.mxu0 0
      %590 = vmatpush1.bf16.xpose.msra.mxu0 %v573
      %591 = vmatprep.subr.bf16.mxu0 0
      %592 = vmatpush2.bf16.xpose.msra.mxu0 0
      %593 = vmatprep.subr.bf16.mxu0 0
      %594 = vmatpush2.bf16.xpose.msra.mxu0 0
      %595 = vmatprep.subr.bf16.mxu0 0
      %596 = vmatpush2.bf16.xpose.msra.mxu0 0
      %597 = vmatprep.subr.bf16.mxu0 0
      %598 = vmatpush2.bf16.xpose.msra.mxu0 0
      %599 = vmatprep.subr.bf16.mxu0 0
      %600 = vmatpush2.bf16.xpose.msra.mxu0 0
      %601 = vmatprep.subr.bf16.mxu0 0
      %602 = vmatpush2.bf16.xpose.msra.mxu0 0
      %603 = vmatprep.subr.bf16.mxu0 0
      %604 = vmatpush2.bf16.xpose.msra.mxu0 0
      %605 = vmatprep.subr.bf16.mxu0 0
      %606 = vmatpush2.bf16.xpose.msra.mxu0 0
      %607 = vmatprep.mubr.bf16.mxu0 0
      %608 = vmatmul.mubr.bf16.gmra.mxu0 %v570
      %v609 = vpop.f32.mrf.mxu0
      %v610 = vadd.f32 0.0, %v609
      %v611 = vpop.f32.mrf.mxu0
      %v612 = vpop.f32.mrf.mxu0
      %v613 = vpop.f32.mrf.mxu0
      %614 = vdwg.mxu0
      %v615 = vsel %vm225, %v610, -1e+30
      %v616 = vsel %vm274, %v615, -inf
      %617 = vmax.xlane.f32.xlu0 %v616
      %v618 = vpop.xlane.xlu0 %617
      %v619 = vsub.f32 %v615, %v618
      %v620 = vmul.f32 %v619, 1.442695
      %v621 = vpow.pop %v620
      %v622 = vsel %vm274, %v621, 0.0
      %623 = vadd.xlane.f32.xlu0 %v622
      %v624 = vpop.xlane.xlu0 %623
      %v625 = vrcp.pop %v624
      %v626 = vmul.f32 %v621, %v625
      %v627 = vpack.c.bf16 %v626, %v626
      %628 = vrot.lane.b32.xlu0 %v405, 32
      %v629 = vpop.permute.xlu0 %628
      %v631 = vsel %vm274, %v627, 0
      %v634 = vsel %vm290, %v629, 0
      %636 = vmatprep.subr.bf16.mxu0 0
      %637 = vmatpush1.bf16.msra.mxu0 0
      %638 = vmatprep.subr.bf16.mxu0 0
      %639 = vmatpush1.bf16.msra.mxu0 0
      %640 = vmatprep.subr.bf16.mxu0 0
      %641 = vmatpush1.bf16.msra.mxu0 0
      %642 = vmatprep.subr.bf16.mxu0 0
      %643 = vmatpush1.bf16.msra.mxu0 0
      %644 = vmatprep.subr.bf16.mxu0 0
      %645 = vmatpush1.bf16.msra.mxu0 0
      %646 = vmatprep.subr.bf16.mxu0 0
      %647 = vmatpush1.bf16.msra.mxu0 0
      %648 = vmatprep.subr.bf16.mxu0 0
      %649 = vmatpush1.bf16.msra.mxu0 0
      %650 = vmatprep.subr.bf16.mxu0 0
      %651 = vmatpush1.bf16.msra.mxu0 %v634
      %652 = vmatprep.subr.bf16.mxu0 0
      %653 = vmatpush2.bf16.msra.mxu0 0
      %654 = vmatprep.subr.bf16.mxu0 0
      %655 = vmatpush2.bf16.msra.mxu0 0
      %656 = vmatprep.subr.bf16.mxu0 0
      %657 = vmatpush2.bf16.msra.mxu0 0
      %658 = vmatprep.subr.bf16.mxu0 0
      %659 = vmatpush2.bf16.msra.mxu0 0
      %660 = vmatprep.subr.bf16.mxu0 0
      %661 = vmatpush2.bf16.msra.mxu0 0
      %662 = vmatprep.subr.bf16.mxu0 0
      %663 = vmatpush2.bf16.msra.mxu0 0
      %664 = vmatprep.subr.bf16.mxu0 0
      %665 = vmatpush2.bf16.msra.mxu0 0
      %666 = vmatprep.subr.bf16.mxu0 0
      %667 = vmatpush2.bf16.msra.mxu0 0
      %668 = vmatprep.mubr.bf16.mxu0 0
      %669 = vmatmul.mubr.bf16.gmra.mxu0 %v631
      %v670 = vpop.f32.mrf.mxu0
      %v671 = vadd.f32 0.0, %v670
      %v672 = vpop.f32.mrf.mxu0
      %v673 = vpop.f32.mrf.mxu0
      %v674 = vpop.f32.mrf.mxu0
      %675 = vdwg.mxu0
      %677 = vrot.lane.b32.xlu0 %v449, 32
      %v678 = vpop.permute.xlu0 %677
      %681 = vrot.lane.b32.xlu0 %v560, 64
      %v682 = vpop.permute.xlu0 %681
      %685 = vrot.lane.b32.xlu0 %v671, 96
      %v686 = vpop.permute.xlu0 %685
      %v688 = vsel %vm226, %v329, %v678
      %vm689 = vcmask 523264
      %v690 = vsel %vm689, %v688, %v682
      %vm691 = vcmask 785408
      %v692 = vsel %vm691, %v690, %v686
      %v693 = vpack.c.bf16 %v692, %v692
      %694 = vst [vmem:[%s214] sm:$0xf] %v693
      %p695 = scmp.lt.s32.totalorder %s14, 1
      %s696 = scalar_select %p695, %s14, 1
      %s697 = smul.addr %s696, 4
      %s698 = scalar_lea.vmem %s3, %s697
      // Predicated region
      $region33: #{decoder_forward.20} parent=31 // pred_check
        %p699 = pneg %p110
      $region34: #{decoder_forward.20} parent=31 // pred_check_branch
        %701 = sbr.rel (%p699) target = $region36
      $region35: #{decoder_forward.20} parent=31 // pred_region
        _
      $region36: #{decoder_forward.20} parent=31 // pred_fallthru
        _
    $region32: #{decoder_forward.20} parent=5 // pred_fallthru
      _
    %p702 = scmp.le.s32.totalorder 2, %s9
    // Predicated region
    $region37: #{decoder_forward.20} parent=5 // pred_check
      %p703 = pneg %p702
    $region38: #{decoder_forward.20} parent=5 // pred_check_branch
      %705 = sbr.rel (%p703) target = $region40
    $region39: #{decoder_forward.20} parent=5 // pred_region
      %s706 = ssub.s32 %s9, 2
      // Predicated region
      $region41: #{decoder_forward.20} parent=39 // pred_check
        %p707 = pneg %p116
      $region42: #{decoder_forward.20} parent=39 // pred_check_branch
        %709 = sbr.rel (%p707) target = $region44
      $region43: #{decoder_forward.20} parent=39 // pred_region
        %p710 = scmp.lt.s32.totalorder %s15, 1
        %s711 = scalar_select %p710, %s15, 1
        %s712 = smul.addr %s711, 4
        %s713 = scalar_lea.vmem %s3, %s712
      $region44: #{decoder_forward.20} parent=39 // pred_fallthru
        _
    $region40: #{decoder_forward.20} parent=5 // pred_fallthru
      _
  $region6: #{decoder_forward.20} parent=0 // loop_footer
    %s13 = sadd.s32 1, %s9
  $region7: #{decoder_forward.20} parent=0 // loop_footer_branch
    %8 = sbr.rel target = $region3
  $region8: #{decoder_forward.20} parent=0 // loop_exit
    _

// kernel: decoder_forward.18
$region0: #{decoder_forward.18}
  #allocation0 [shape = 'u32[]', space=smem, size = 0x4, offset = 0x4, fixed_abs, tag = 'smem constant byte address 0x4 - core index']
  #allocation1 [shape = 'u32[144,128]{1,0:T(1,128)}', space=vmem, size = 0x12000, scoped, tag = 'internal scratch']
  #allocation2 [shape = 's32[1]{0}', space=sflag, size = 0x4, scoped, tag = 'scoped memory for decoder_forward.18']
  #allocation3 [shape = 'u8[512]{0}', space=smem, size = 0x200, scoped, tag = 'prefetched SMEM operand 0']
  %s0 = inlined_call_operand.vmem [shape: s32[2], index: 0, kind: input, shape index: {}]
  %s1 = inlined_call_operand.vmem [shape: f32[2,8,128], index: 1, kind: input, shape index: {}]
  %s2 = inlined_call_operand.vmem [shape: f32[2,8,128], index: 2, kind: output, shape index: {}]
  %s3 = sld [smem:[#allocation0]]
  $region37: #{decoder_forward.18} parent=0
    _
  %s5 = ssub.s32 1, %s3
  %s6 = scalar_select 0, %s5, %s3
  %s7 = sshll.u32 %s0, 4
  %s8 = int_to_ptr.vmem [resolvable:$true] %s7
  %10 = dma.vmem_to_smem %s8, 16, [#allocation3], [#allocation2]
  %11 = dma.done [#allocation2], 16
  %12 = sfence
  loop: start=0, step=1, limit=4
  $region2: #{decoder_forward.18} parent=0 // loop_pre_header
    _
  $region3: #{decoder_forward.18} parent=0 // loop_header
    %s14 = sphi 0, %s18
    %p15 = scmp.ge.s32.totalorder %s14, 4
    %s24 = sphi 0, %s26
    %s27 = sphi 0, %s24
    %s28 = sphi 0, %s27
    %s44 = sphi 0, %s28
    %s50 = sphi 0, %s52
    %s53 = sphi 0, %s50
    %s54 = sphi 0, %s53
    %s70 = sphi 0, %s54
  $region4: #{decoder_forward.18} parent=0 // loop_header_branch
    %17 = sbr.rel (%p15) target = $region8
  $region5: #{decoder_forward.18} parent=0 // loop_body
    %s19 = ssub.s32 %s14, 1
    %s20 = ssub.s32 %s14, 2
    %s21 = sadd.s32 %s14, 1
    %s22 = ssub.s32 %s14, %s21
    %p23 = scmp.eq.s32.totalorder %s22, 0
    %s25 = sadd.s32 %s24, 1
    %s26 = scalar_select %p23, %s24, %s25
    %p29 = pneg %p23
    %p30 = scmp.eq.s32.totalorder %s14, 1
    %p31 = por %p29, %p30
    %p32 = scmp.ne.s32.totalorder %s24, %s27
    %p33 = scmp.eq.s32.totalorder %s14, 0
    %p34 = por %p32, %p33
    %p35 = scmp.ne.s32.totalorder %s24, %s27
    %p36 = scmp.eq.s32.totalorder %s19, 1
    %p37 = por %p35, %p36
    %p38 = scmp.ne.s32.totalorder %s27, %s28
    %p39 = scmp.eq.s32.totalorder %s19, 0
    %p40 = por %p38, %p39
    %p41 = scmp.ne.s32.totalorder %s27, %s28
    %p42 = scmp.eq.s32.totalorder %s20, 1
    %p43 = por %p41, %p42
    %p45 = scmp.ne.s32.totalorder %s28, %s44
    %p46 = scmp.eq.s32.totalorder %s20, 0
    %p47 = por %p45, %p46
    %s48 = ssub.s32 %s14, %s21
    %p49 = scmp.eq.s32.totalorder %s48, 0
    %s51 = sadd.s32 %s50, 1
    %s52 = scalar_select %p49, %s50, %s51
    %p55 = pneg %p49
    %p56 = scmp.eq.s32.totalorder %s14, 1
    %p57 = por %p55, %p56
    %p58 = scmp.ne.s32.totalorder %s50, %s53
    %p59 = scmp.eq.s32.totalorder %s14, 0
    %p60 = por %p58, %p59
    %p61 = scmp.ne.s32.totalorder %s50, %s53
    %p62 = scmp.eq.s32.totalorder %s19, 1
    %p63 = por %p61, %p62
    %p64 = scmp.ne.s32.totalorder %s53, %s54
    %p65 = scmp.eq.s32.totalorder %s19, 0
    %p66 = por %p64, %p65
    %p67 = scmp.ne.s32.totalorder %s53, %s54
    %p68 = scmp.eq.s32.totalorder %s20, 1
    %p69 = por %p67, %p68
    %p71 = scmp.ne.s32.totalorder %s54, %s70
    %p72 = scmp.eq.s32.totalorder %s20, 0
    %p73 = por %p71, %p72
    %p74 = scmp.le.s32.totalorder 1, %s14
    %p75 = scmp.lt.s32.totalorder %s14, 3
    %p76 = pnand %p74, %p75
    %p77 = pneg %p76
    // Predicated region
    $region9: #{decoder_forward.18} parent=5 // pred_check
      _
    $region10: #{decoder_forward.18} parent=5 // pred_check_branch
      %79 = sbr.rel (%p76) target = $region12
    $region11: #{decoder_forward.18} parent=5 // pred_region
      %s80 = ssub.s32 %s14, 1
    $region12: #{decoder_forward.18} parent=5 // pred_fallthru
      _
    %p81 = scmp.lt.s32.totalorder %s14, 2
    // Predicated region
    $region13: #{decoder_forward.18} parent=5 // pred_check
      %p82 = pneg %p81
    $region14: #{decoder_forward.18} parent=5 // pred_check_branch
      %84 = sbr.rel (%p82) target = $region16
    $region15: #{decoder_forward.18} parent=5 // pred_region
      // Predicated region
      $region17: #{decoder_forward.18} parent=15 // pred_check
        %p85 = pneg %p34
      $region18: #{decoder_forward.18} parent=15 // pred_check_branch
        %87 = sbr.rel (%p85) target = $region20
      $region19: #{decoder_forward.18} parent=15 // pred_region
        %p88 = scmp.lt.s32.totalorder %s14, 1
        %s89 = scalar_select %p88, %s14, 1
        %s90 = smul.addr %s89, 8
        %s91 = scalar_lea.vmem %s1, %s90
      $region20: #{decoder_forward.18} parent=15 // pred_fallthru
        _
    $region16: #{decoder_forward.18} parent=5 // pred_fallthru
      _
    %p92 = scmp.le.s32.totalorder 1, %s14
    %p93 = scmp.lt.s32.totalorder %s14, 3
    %p94 = pnand %p92, %p93
    %p95 = pneg %p94
    // Predicated region
    $region21: #{decoder_forward.18} parent=5 // pred_check
      _
    $region22: #{decoder_forward.18} parent=5 // pred_check_branch
      %97 = sbr.rel (%p94) target = $region24
    $region23: #{decoder_forward.18} parent=5 // pred_region
      %s98 = ssub.s32 %s14, 1
      %p99 = scmp.lt.s32.totalorder %s19, 1
      %s100 = scalar_select %p99, %s19, 1
      %s101 = smul.addr %s100, 8
      %s102 = scalar_lea.vmem %s1, %s101
      %p103 = pneg %p40
      %p104 = pneg %p37
      %p105 = pneg %p66
      %p106 = pneg %p63
      %p107 = scmp.lt.s32.totalorder %s19, 1
      %s108 = scalar_select %p107, %s19, 1
      %s109 = smul.addr %s108, 8
      %s110 = scalar_lea.vmem %s2, %s109
      %p111 = scmp.lt.s32.totalorder %s19, 1
      %s112 = scalar_select %p111, %s19, 1
      %s113 = smul.addr %s112, 8
      %s114 = scalar_lea.vmem %s1, %s113
      %p115 = scmp.lt.s32.totalorder %s19, 1
      %s116 = scalar_select %p115, %s19, 1
      %s117 = smul.addr %s116, 8
      %s118 = scalar_lea.vmem %s2, %s117
      %v119 = vlaneseq
      %v120 = vshrl.u32 %v119, 7
      %s121 = sld [smem:[#allocation3 + %s19]]
      %v122 = vstv %s121
      %vm123 = vcmp.lt.s32.totalorder %v120, %v122
      %v124 = vld [vmem:[%s114] sm:$0xff]
      %v125 = vsel %vm123, %v124, 0.0
      %126 = vst [vmem:[%s118] sm:$0xff] %v125
      %p127 = scmp.lt.s32.totalorder %s19, 1
      %s128 = scalar_select %p127, %s19, 1
      %s129 = smul.addr %s128, 8
      %s130 = scalar_lea.vmem %s2, %s129
      // Predicated region
      $region25: #{decoder_forward.18} parent=23 // pred_check
        %p131 = pneg %p63
      $region26: #{decoder_forward.18} parent=23 // pred_check_branch
        %133 = sbr.rel (%p131) target = $region28
      $region27: #{decoder_forward.18} parent=23 // pred_region
        _
      $region28: #{decoder_forward.18} parent=23 // pred_fallthru
        _
    $region24: #{decoder_forward.18} parent=5 // pred_fallthru
      _
    %p134 = scmp.le.s32.totalorder 2, %s14
    // Predicated region
    $region29: #{decoder_forward.18} parent=5 // pred_check
      %p135 = pneg %p134
    $region30: #{decoder_forward.18} parent=5 // pred_check_branch
      %137 = sbr.rel (%p135) target = $region32
    $region31: #{decoder_forward.18} parent=5 // pred_region
      %s138 = ssub.s32 %s14, 2
      // Predicated region
      $region33: #{decoder_forward.18} parent=31 // pred_check
        %p139 = pneg %p69
      $region34: #{decoder_forward.18} parent=31 // pred_check_branch
        %141 = sbr.rel (%p139) target = $region36
      $region35: #{decoder_forward.18} parent=31 // pred_region
        %p142 = scmp.lt.s32.totalorder %s20, 1
        %s143 = scalar_select %p142, %s20, 1
        %s144 = smul.addr %s143, 8
        %s145 = scalar_lea.vmem %s2, %s144
      $region36: #{decoder_forward.18} parent=31 // pred_fallthru
        _
    $region32: #{decoder_forward.18} parent=5 // pred_fallthru
      _
  $region6: #{decoder_forward.18} parent=0 // loop_footer
    %s18 = sadd.s32 1, %s14
  $region7: #{decoder_forward.18} parent=0 // loop_footer_branch
    %13 = sbr.rel target = $region3
  $region8: #{decoder_forward.18} parent=0 // loop_exit
    _

// kernel: decoder_forward.23
$region0: #{decoder_forward.23}
  #allocation0 [shape = 'u32[]', space=smem, size = 0x4, offset = 0x4, fixed_abs, tag = 'smem constant byte address 0x4 - core index']
  #allocation1 [shape = 'u32[144,128]{1,0:T(1,128)}', space=vmem, size = 0x12000, scoped, tag = 'internal scratch']
  #allocation2 [shape = 'f32[16,256]{1,0:T(8,128)}', space=vmem, size = 0x4000, scoped, tag = 'scratch operand']
  %s0 = inlined_call_operand.vmem [shape: f32[16,128], index: 0, kind: input, shape index: {}]
  %s1 = inlined_call_operand.vmem [shape: bf16[128,256], index: 1, kind: input, shape index: {}]
  %s2 = inlined_call_operand.vmem [shape: f32[1,256], index: 2, kind: input, shape index: {}]
  %s3 = inlined_call_operand.vmem [shape: bf16[16,256], index: 3, kind: output, shape index: {}]
  %s4 = sld [smem:[#allocation0]]
  $region30: #{decoder_forward.23} parent=0
    _
  %s6 = ssub.s32 1, %s4
  %s7 = scalar_select 0, %s6, %s4
  // Predicated region
  $region2: #{decoder_forward.23} parent=0 // pred_check
    _
  $region3: #{decoder_forward.23} parent=0 // pred_check_branch
    %9 = sbr.rel (0) target = $region5
  $region4: #{decoder_forward.23} parent=0 // pred_region
    _
  $region5: #{decoder_forward.23} parent=0 // pred_fallthru
    _
  // Predicated region
  $region6: #{decoder_forward.23} parent=0 // pred_check
    _
  $region7: #{decoder_forward.23} parent=0 // pred_check_branch
    %11 = sbr.rel (0) target = $region9
  $region8: #{decoder_forward.23} parent=0 // pred_region
    _
  $region9: #{decoder_forward.23} parent=0 // pred_fallthru
    _
  // Predicated region
  $region10: #{decoder_forward.23} parent=0 // pred_check
    _
  $region11: #{decoder_forward.23} parent=0 // pred_check_branch
    %13 = sbr.rel (0) target = $region13
  $region12: #{decoder_forward.23} parent=0 // pred_region
    _
  $region13: #{decoder_forward.23} parent=0 // pred_fallthru
    _
  %p15 = scmp.eq.s32.totalorder 0, 0
  // Predicated region
  $region14: #{decoder_forward.23} parent=0 // pred_check
    %p16 = pneg %p15
  $region15: #{decoder_forward.23} parent=0 // pred_check_branch
    %18 = sbr.rel (%p16) target = $region17
  $region16: #{decoder_forward.23} parent=0 // pred_region
    %19 = vst [vmem:[#allocation2] sm:$0xff] 0.0
    %20 = vst [vmem:[#allocation2 + $0x8] sm:$0xff] 0.0
    %21 = vst [vmem:[#allocation2 + $0x10] sm:$0xff] 0.0
    %22 = vst [vmem:[#allocation2 + $0x18] sm:$0xff] 0.0
  $region17: #{decoder_forward.23} parent=0 // pred_fallthru
    _
  %v23 = vld [vmem:[#allocation2] sm:$0xff]
  %v24 = vld [vmem:[#allocation2 + $0x8] sm:$0xff]
  %v25 = vld [vmem:[#allocation2 + $0x10] sm:$0xff]
  %v26 = vld [vmem:[#allocation2 + $0x18] sm:$0xff]
  %v27 = vld [vmem:[%s0] sm:$0xff]
  %v28 = vld [vmem:[%s0 + $0x8] sm:$0xff]
  %v29 = vpack.c.bf16 %v28, %v27
  %v30 = vld [vmem:[%s1] sm:$0xff]
  %v31 = vld [vmem:[%s1 + $0x8] sm:$0xff]
  %v32 = vld [vmem:[%s1 + $0x10] sm:$0xff]
  %v33 = vld [vmem:[%s1 + $0x18] sm:$0xff]
  %v34 = vld [vmem:[%s1 + $0x20] sm:$0xff]
  %v35 = vld [vmem:[%s1 + $0x28] sm:$0xff]
  %v36 = vld [vmem:[%s1 + $0x30] sm:$0xff]
  %v37 = vld [vmem:[%s1 + $0x38] sm:$0xff]
  %v38 = vld [vmem:[%s1 + $0x40] sm:$0xff]
  %v39 = vld [vmem:[%s1 + $0x48] sm:$0xff]
  %v40 = vld [vmem:[%s1 + $0x50] sm:$0xff]
  %v41 = vld [vmem:[%s1 + $0x58] sm:$0xff]
  %v42 = vld [vmem:[%s1 + $0x60] sm:$0xff]
  %v43 = vld [vmem:[%s1 + $0x68] sm:$0xff]
  %v44 = vld [vmem:[%s1 + $0x70] sm:$0xff]
  %v45 = vld [vmem:[%s1 + $0x78] sm:$0xff]
  %v62 = vunpack.c.l.b16 %v30
  %v63 = vunpack.c.h.b16 %v30
  %v64 = vunpack.c.l.b16 %v31
  %v65 = vunpack.c.h.b16 %v31
  %v66 = vunpack.c.l.b16 %v32
  %v67 = vunpack.c.h.b16 %v32
  %v68 = vunpack.c.l.b16 %v33
  %v69 = vunpack.c.h.b16 %v33
  %v70 = vunpack.c.l.b16 %v34
  %v71 = vunpack.c.h.b16 %v34
  %v72 = vunpack.c.l.b16 %v35
  %v73 = vunpack.c.h.b16 %v35
  %v74 = vunpack.c.l.b16 %v36
  %v75 = vunpack.c.h.b16 %v36
  %v76 = vunpack.c.l.b16 %v37
  %v77 = vunpack.c.h.b16 %v37
  %v78 = vunpack.c.l.b16 %v38
  %v79 = vunpack.c.h.b16 %v38
  %v80 = vunpack.c.l.b16 %v39
  %v81 = vunpack.c.h.b16 %v39
  %v82 = vunpack.c.l.b16 %v40
  %v83 = vunpack.c.h.b16 %v40
  %v84 = vunpack.c.l.b16 %v41
  %v85 = vunpack.c.h.b16 %v41
  %v86 = vunpack.c.l.b16 %v42
  %v87 = vunpack.c.h.b16 %v42
  %v88 = vunpack.c.l.b16 %v43
  %v89 = vunpack.c.h.b16 %v43
  %v90 = vunpack.c.l.b16 %v44
  %v91 = vunpack.c.h.b16 %v44
  %v92 = vunpack.c.l.b16 %v45
  %v93 = vunpack.c.h.b16 %v45
  %v94 = vpack.c.b16 %v64, %v62
  %v95 = vpack.c.b16 %v65, %v63
  %v96 = vpack.c.b16 %v68, %v66
  %v97 = vpack.c.b16 %v69, %v67
  %v98 = vpack.c.b16 %v72, %v70
  %v99 = vpack.c.b16 %v73, %v71
  %v100 = vpack.c.b16 %v76, %v74
  %v101 = vpack.c.b16 %v77, %v75
  %v102 = vpack.c.b16 %v80, %v78
  %v103 = vpack.c.b16 %v81, %v79
  %v104 = vpack.c.b16 %v84, %v82
  %v105 = vpack.c.b16 %v85, %v83
  %v106 = vpack.c.b16 %v88, %v86
  %v107 = vpack.c.b16 %v89, %v87
  %v108 = vpack.c.b16 %v92, %v90
  %v109 = vpack.c.b16 %v93, %v91
  %126 = vmatprep.subr.bf16.mxu0 %v109
  %127 = vmatpush1.bf16.msra.mxu0 %v108
  %128 = vmatprep.subr.bf16.mxu0 %v107
  %129 = vmatpush1.bf16.msra.mxu0 %v106
  %130 = vmatprep.subr.bf16.mxu0 %v105
  %131 = vmatpush1.bf16.msra.mxu0 %v104
  %132 = vmatprep.subr.bf16.mxu0 %v103
  %133 = vmatpush1.bf16.msra.mxu0 %v102
  %134 = vmatprep.subr.bf16.mxu0 %v101
  %135 = vmatpush1.bf16.msra.mxu0 %v100
  %136 = vmatprep.subr.bf16.mxu0 %v99
  %137 = vmatpush1.bf16.msra.mxu0 %v98
  %138 = vmatprep.subr.bf16.mxu0 %v97
  %139 = vmatpush1.bf16.msra.mxu0 %v96
  %140 = vmatprep.subr.bf16.mxu0 %v95
  %141 = vmatpush1.bf16.msra.mxu0 %v94
  %142 = vmatprep.subr.bf16.mxu0 0
  %143 = vmatpush2.bf16.msra.mxu0 0
  %144 = vmatprep.subr.bf16.mxu0 0
  %145 = vmatpush2.bf16.msra.mxu0 0
  %146 = vmatprep.subr.bf16.mxu0 0
  %147 = vmatpush2.bf16.msra.mxu0 0
  %148 = vmatprep.subr.bf16.mxu0 0
  %149 = vmatpush2.bf16.msra.mxu0 0
  %150 = vmatprep.subr.bf16.mxu0 0
  %151 = vmatpush2.bf16.msra.mxu0 0
  %152 = vmatprep.subr.bf16.mxu0 0
  %153 = vmatpush2.bf16.msra.mxu0 0
  %154 = vmatprep.subr.bf16.mxu0 0
  %155 = vmatpush2.bf16.msra.mxu0 0
  %156 = vmatprep.subr.bf16.mxu0 0
  %157 = vmatpush2.bf16.msra.mxu0 0
  %158 = vmatprep.mubr.bf16.mxu0 0
  %159 = vmatmul.mubr.bf16.gmra.mxu0 %v29
  %v160 = vpop.f32.mrf.mxu0
  %v161 = vadd.f32 0.0, %v160
  %v162 = vpop.f32.mrf.mxu0
  %v163 = vadd.f32 0.0, %v162
  %v164 = vpop.f32.mrf.mxu0
  %v165 = vadd.f32 0.0, %v164
  %v166 = vpop.f32.mrf.mxu0
  %v167 = vadd.f32 0.0, %v166
  %168 = vdwg.mxu0
  %v169 = vadd.f32 %v23, %v161
  %v170 = vadd.f32 %v24, %v163
  %v171 = vadd.f32 %v25, %v165
  %v172 = vadd.f32 %v26, %v167
  %173 = vst [vmem:[#allocation2] sm:$0xff] %v169
  %174 = vst [vmem:[#allocation2 + $0x8] sm:$0xff] %v170
  %175 = vst [vmem:[#allocation2 + $0x10] sm:$0xff] %v171
  %176 = vst [vmem:[#allocation2 + $0x18] sm:$0xff] %v172
  // Predicated region
  $region18: #{decoder_forward.23} parent=0 // pred_check
    %p177 = pneg %p15
  $region19: #{decoder_forward.23} parent=0 // pred_check_branch
    %179 = sbr.rel (%p177) target = $region21
  $region20: #{decoder_forward.23} parent=0 // pred_region
    %v180 = vld [vmem:[#allocation2] sm:$0xff]
    %v181 = vld [vmem:[#allocation2 + $0x8] sm:$0xff]
    %v182 = vld [vmem:[#allocation2 + $0x10] sm:$0xff]
    %v183 = vld [vmem:[#allocation2 + $0x18] sm:$0xff]
    %v184 = vld [vmem:[%s2] sm:$0x3]
    %v186 = vlaneseq
    %v187 = vshrl.u32 %v186, 7
    %v188 = vsub.s32 0, %v187
    %v189 = vrot.slane %v184, %v188
    %v190 = vlaneseq
    %v191 = vshrl.u32 %v190, 7
    %v192 = vsub.s32 1, %v191
    %v193 = vrot.slane %v184, %v192
    %v196 = vadd.f32 %v180, %v189
    %v197 = vadd.f32 %v181, %v193
    %v198 = vadd.f32 %v182, %v189
    %v199 = vadd.f32 %v183, %v193
    %v200 = vpack.c.bf16 %v198, %v196
    %v201 = vpack.c.bf16 %v199, %v197
    %v204 = vunpack.c.l.b16 %v200
    %v205 = vunpack.c.l.b16 %v201
    %v206 = vunpack.c.h.b16 %v200
    %v207 = vunpack.c.h.b16 %v201
    %v208 = vpack.c.b16 %v205, %v204
    %v209 = vpack.c.b16 %v207, %v206
    %212 = vst [vmem:[%s3] sm:$0xff] %v208
    %213 = vst [vmem:[%s3 + $0x8] sm:$0xff] %v209
  $region21: #{decoder_forward.23} parent=0 // pred_fallthru
    _
  // Predicated region
  $region22: #{decoder_forward.23} parent=0 // pred_check
    _
  $region23: #{decoder_forward.23} parent=0 // pred_check_branch
    %215 = sbr.rel (0) target = $region25
  $region24: #{decoder_forward.23} parent=0 // pred_region
    _
  $region25: #{decoder_forward.23} parent=0 // pred_fallthru
    _
  // Predicated region
  $region26: #{decoder_forward.23} parent=0 // pred_check
    _
  $region27: #{decoder_forward.23} parent=0 // pred_check_branch
    %217 = sbr.rel (0) target = $region29
  $region28: #{decoder_forward.23} parent=0 // pred_region
    _
  $region29: #{decoder_forward.23} parent=0 // pred_fallthru
    _

// kernel: decoder_forward.24
$region0: #{decoder_forward.24}
  #allocation0 [shape = 'u32[]', space=smem, size = 0x4, offset = 0x4, fixed_abs, tag = 'smem constant byte address 0x4 - core index']
  #allocation1 [shape = 'u32[144,128]{1,0:T(1,128)}', space=vmem, size = 0x12000, scoped, tag = 'internal scratch']
  %s0 = inlined_call_operand.vmem [shape: bf16[2,8,128], index: 0, kind: input, shape index: {}]
  %s1 = inlined_call_operand.vmem [shape: bf16[2,8,256], index: 1, kind: input, shape index: {}, may-alias: {1,2}]
  %s2 = inlined_call_operand.vmem [shape: bf16[2,8,256], index: 2, kind: input, shape index: {}, may-alias: {1,2}]
  %s3 = inlined_call_operand.vmem [shape: bf16[2,8,128], index: 3, kind: output, shape index: {}]
  %s4 = sld [smem:[#allocation0]]
  $region45: #{decoder_forward.24} parent=0
    _
  %s6 = ssub.s32 1, %s4
  %s7 = scalar_select 0, %s6, %s4
  loop: start=0, step=1, limit=4
  $region2: #{decoder_forward.24} parent=0 // loop_pre_header
    _
  $region3: #{decoder_forward.24} parent=0 // loop_header
    %s9 = sphi 0, %s13
    %p10 = scmp.ge.s32.totalorder %s9, 4
    %s19 = sphi 0, %s21
    %s22 = sphi 0, %s19
    %s23 = sphi 0, %s22
    %s39 = sphi 0, %s23
    %s45 = sphi 0, %s47
    %s48 = sphi 0, %s45
    %s49 = sphi 0, %s48
    %s65 = sphi 0, %s49
    %s71 = sphi 0, %s73
    %s74 = sphi 0, %s71
    %s75 = sphi 0, %s74
    %s91 = sphi 0, %s75
    %s97 = sphi 0, %s99
    %s100 = sphi 0, %s97
    %s101 = sphi 0, %s100
    %s117 = sphi 0, %s101
  $region4: #{decoder_forward.24} parent=0 // loop_header_branch
    %12 = sbr.rel (%p10) target = $region8
  $region5: #{decoder_forward.24} parent=0 // loop_body
    %s14 = ssub.s32 %s9, 1
    %s15 = ssub.s32 %s9, 2
    %s16 = sadd.s32 %s9, 1
    %s17 = ssub.s32 %s9, %s16
    %p18 = scmp.eq.s32.totalorder %s17, 0
    %s20 = sadd.s32 %s19, 1
    %s21 = scalar_select %p18, %s19, %s20
    %p24 = pneg %p18
    %p25 = scmp.eq.s32.totalorder %s9, 1
    %p26 = por %p24, %p25
    %p27 = scmp.ne.s32.totalorder %s19, %s22
    %p28 = scmp.eq.s32.totalorder %s9, 0
    %p29 = por %p27, %p28
    %p30 = scmp.ne.s32.totalorder %s19, %s22
    %p31 = scmp.eq.s32.totalorder %s14, 1
    %p32 = por %p30, %p31
    %p33 = scmp.ne.s32.totalorder %s22, %s23
    %p34 = scmp.eq.s32.totalorder %s14, 0
    %p35 = por %p33, %p34
    %p36 = scmp.ne.s32.totalorder %s22, %s23
    %p37 = scmp.eq.s32.totalorder %s15, 1
    %p38 = por %p36, %p37
    %p40 = scmp.ne.s32.totalorder %s23, %s39
    %p41 = scmp.eq.s32.totalorder %s15, 0
    %p42 = por %p40, %p41
    %s43 = ssub.s32 %s9, %s16
    %p44 = scmp.eq.s32.totalorder %s43, 0
    %s46 = sadd.s32 %s45, 1
    %s47 = scalar_select %p44, %s45, %s46
    %p50 = pneg %p44
    %p51 = scmp.eq.s32.totalorder %s9, 1
    %p52 = por %p50, %p51
    %p53 = scmp.ne.s32.totalorder %s45, %s48
    %p54 = scmp.eq.s32.totalorder %s9, 0
    %p55 = por %p53, %p54
    %p56 = scmp.ne.s32.totalorder %s45, %s48
    %p57 = scmp.eq.s32.totalorder %s14, 1
    %p58 = por %p56, %p57
    %p59 = scmp.ne.s32.totalorder %s48, %s49
    %p60 = scmp.eq.s32.totalorder %s14, 0
    %p61 = por %p59, %p60
    %p62 = scmp.ne.s32.totalorder %s48, %s49
    %p63 = scmp.eq.s32.totalorder %s15, 1
    %p64 = por %p62, %p63
    %p66 = scmp.ne.s32.totalorder %s49, %s65
    %p67 = scmp.eq.s32.totalorder %s15, 0
    %p68 = por %p66, %p67
    %s69 = ssub.s32 %s9, %s16
    %p70 = scmp.eq.s32.totalorder %s69, 0
    %s72 = sadd.s32 %s71, 1
    %s73 = scalar_select %p70, %s71, %s72
    %p76 = pneg %p70
    %p77 = scmp.eq.s32.totalorder %s9, 1
    %p78 = por %p76, %p77
    %p79 = scmp.ne.s32.totalorder %s71, %s74
    %p80 = scmp.eq.s32.totalorder %s9, 0
    %p81 = por %p79, %p80
    %p82 = scmp.ne.s32.totalorder %s71, %s74
    %p83 = scmp.eq.s32.totalorder %s14, 1
    %p84 = por %p82, %p83
    %p85 = scmp.ne.s32.totalorder %s74, %s75
    %p86 = scmp.eq.s32.totalorder %s14, 0
    %p87 = por %p85, %p86
    %p88 = scmp.ne.s32.totalorder %s74, %s75
    %p89 = scmp.eq.s32.totalorder %s15, 1
    %p90 = por %p88, %p89
    %p92 = scmp.ne.s32.totalorder %s75, %s91
    %p93 = scmp.eq.s32.totalorder %s15, 0
    %p94 = por %p92, %p93
    %s95 = ssub.s32 %s9, %s16
    %p96 = scmp.eq.s32.totalorder %s95, 0
    %s98 = sadd.s32 %s97, 1
    %s99 = scalar_select %p96, %s97, %s98
    %p102 = pneg %p96
    %p103 = scmp.eq.s32.totalorder %s9, 1
    %p104 = por %p102, %p103
    %p105 = scmp.ne.s32.totalorder %s97, %s100
    %p106 = scmp.eq.s32.totalorder %s9, 0
    %p107 = por %p105, %p106
    %p108 = scmp.ne.s32.totalorder %s97, %s100
    %p109 = scmp.eq.s32.totalorder %s14, 1
    %p110 = por %p108, %p109
    %p111 = scmp.ne.s32.totalorder %s100, %s101
    %p112 = scmp.eq.s32.totalorder %s14, 0
    %p113 = por %p111, %p112
    %p114 = scmp.ne.s32.totalorder %s100, %s101
    %p115 = scmp.eq.s32.totalorder %s15, 1
    %p116 = por %p114, %p115
    %p118 = scmp.ne.s32.totalorder %s101, %s117
    %p119 = scmp.eq.s32.totalorder %s15, 0
    %p120 = por %p118, %p119
    %p121 = scmp.le.s32.totalorder 1, %s9
    %p122 = scmp.lt.s32.totalorder %s9, 3
    %p123 = pnand %p121, %p122
    %p124 = pneg %p123
    // Predicated region
    $region9: #{decoder_forward.24} parent=5 // pred_check
      _
    $region10: #{decoder_forward.24} parent=5 // pred_check_branch
      %126 = sbr.rel (%p123) target = $region12
    $region11: #{decoder_forward.24} parent=5 // pred_region
      %s127 = ssub.s32 %s9, 1
    $region12: #{decoder_forward.24} parent=5 // pred_fallthru
      _
    %p128 = scmp.lt.s32.totalorder %s9, 2
    // Predicated region
    $region13: #{decoder_forward.24} parent=5 // pred_check
      %p129 = pneg %p128
    $region14: #{decoder_forward.24} parent=5 // pred_check_branch
      %131 = sbr.rel (%p129) target = $region16
    $region15: #{decoder_forward.24} parent=5 // pred_region
      // Predicated region
      $region17: #{decoder_forward.24} parent=15 // pred_check
        %p132 = pneg %p29
      $region18: #{decoder_forward.24} parent=15 // pred_check_branch
        %134 = sbr.rel (%p132) target = $region20
      $region19: #{decoder_forward.24} parent=15 // pred_region
        %p135 = scmp.lt.s32.totalorder %s9, 1
        %s136 = scalar_select %p135, %s9, 1
        %s137 = smul.addr %s136, 4
        %s138 = scalar_lea.vmem %s0, %s137
      $region20: #{decoder_forward.24} parent=15 // pred_fallthru
        _
      // Predicated region
      $region21: #{decoder_forward.24} parent=15 // pred_check
        %p139 = pneg %p55
      $region22: #{decoder_forward.24} parent=15 // pred_check_branch
        %141 = sbr.rel (%p139) target = $region24
      $region23: #{decoder_forward.24} parent=15 // pred_region
        %p142 = scmp.lt.s32.totalorder %s9, 1
        %s143 = scalar_select %p142, %s9, 1
        %s144 = smul.addr %s143, 2
        %s145 = smul.addr %s144, 4
        %s146 = scalar_lea.vmem %s1, %s145
      $region24: #{decoder_forward.24} parent=15 // pred_fallthru
        _
      // Predicated region
      $region25: #{decoder_forward.24} parent=15 // pred_check
        %p147 = pneg %p81
      $region26: #{decoder_forward.24} parent=15 // pred_check_branch
        %149 = sbr.rel (%p147) target = $region28
      $region27: #{decoder_forward.24} parent=15 // pred_region
        %p150 = scmp.lt.s32.totalorder %s9, 1
        %s151 = scalar_select %p150, %s9, 1
        %s152 = smul.addr %s151, 2
        %s153 = sadd.s32 1, %s152
        %s154 = smul.addr %s153, 4
        %s155 = scalar_lea.vmem %s2, %s154
      $region28: #{decoder_forward.24} parent=15 // pred_fallthru
        _
    $region16: #{decoder_forward.24} parent=5 // pred_fallthru
      _
    %p156 = scmp.le.s32.totalorder 1, %s9
    %p157 = scmp.lt.s32.totalorder %s9, 3
    %p158 = pnand %p156, %p157
    %p159 = pneg %p158
    // Predicated region
    $region29: #{decoder_forward.24} parent=5 // pred_check
      _
    $region30: #{decoder_forward.24} parent=5 // pred_check_branch
      %161 = sbr.rel (%p158) target = $region32
    $region31: #{decoder_forward.24} parent=5 // pred_region
      %s162 = ssub.s32 %s9, 1
      %p163 = scmp.lt.s32.totalorder %s14, 1
      %s164 = scalar_select %p163, %s14, 1
      %s165 = smul.addr %s164, 4
      %s166 = scalar_lea.vmem %s0, %s165
      %p167 = pneg %p35
      %p168 = pneg %p32
      %p169 = scmp.lt.s32.totalorder %s14, 1
      %s170 = scalar_select %p169, %s14, 1
      %s171 = smul.addr %s170, 2
      %s172 = smul.addr %s171, 4
      %s173 = scalar_lea.vmem %s1, %s172
      %p174 = pneg %p61
      %p175 = pneg %p58
      %p176 = scmp.lt.s32.totalorder %s14, 1
      %s177 = scalar_select %p176, %s14, 1
      %s178 = smul.addr %s177, 2
      %s179 = sadd.s32 1, %s178
      %s180 = smul.addr %s179, 4
      %s181 = scalar_lea.vmem %s2, %s180
      %p182 = pneg %p87
      %p183 = pneg %p84
      %p184 = pneg %p113
      %p185 = pneg %p110
      %p186 = scmp.lt.s32.totalorder %s14, 1
      %s187 = scalar_select %p186, %s14, 1
      %s188 = smul.addr %s187, 4
      %s189 = scalar_lea.vmem %s3, %s188
      %p190 = scmp.lt.s32.totalorder %s14, 1
      %s191 = scalar_select %p190, %s14, 1
      %s192 = smul.addr %s191, 4
      %s193 = scalar_lea.vmem %s0, %s192
      %p194 = scmp.lt.s32.totalorder %s14, 1
      %s195 = scalar_select %p194, %s14, 1
      %s196 = smul.addr %s195, 2
      %s197 = smul.addr %s196, 4
      %s198 = scalar_lea.vmem %s1, %s197
      %p199 = scmp.lt.s32.totalorder %s14, 1
      %s200 = scalar_select %p199, %s14, 1
      %s201 = smul.addr %s200, 2
      %s202 = sadd.s32 1, %s201
      %s203 = smul.addr %s202, 4
      %s204 = scalar_lea.vmem %s2, %s203
      %p205 = scmp.lt.s32.totalorder %s14, 1
      %s206 = scalar_select %p205, %s14, 1
      %s207 = smul.addr %s206, 4
      %s208 = scalar_lea.vmem %s3, %s207
      %v211 = vld [vmem:[%s193] sm:$0xf]
      %v212 = vmul.bf16 %v211, 1043676725
      %v213 = vld [vmem:[%s198] sm:$0xf]
      %v214 = vld [vmem:[%s204] sm:$0xf]
      %vm215 = vcmask 261120
      %v217 = vsel %vm215, %v212, 0
      %v220 = vsel %vm215, %v213, 0
      %222 = vmatprep.subr.bf16.mxu0 0
      %223 = vmatpush1.bf16.xpose.msra.mxu0 0
      %224 = vmatprep.subr.bf16.mxu0 0
      %225 = vmatpush1.bf16.xpose.msra.mxu0 0
      %226 = vmatprep.subr.bf16.mxu0 0
      %227 = vmatpush1.bf16.xpose.msra.mxu0 0
      %228 = vmatprep.subr.bf16.mxu0 0
      %229 = vmatpush1.bf16.xpose.msra.mxu0 0
      %230 = vmatprep.subr.bf16.mxu0 0
      %231 = vmatpush1.bf16.xpose.msra.mxu0 0
      %232 = vmatprep.subr.bf16.mxu0 0
      %233 = vmatpush1.bf16.xpose.msra.mxu0 0
      %234 = vmatprep.subr.bf16.mxu0 0
      %235 = vmatpush1.bf16.xpose.msra.mxu0 0
      %236 = vmatprep.subr.bf16.mxu0 0
      %237 = vmatpush1.bf16.xpose.msra.mxu0 %v220
      %238 = vmatprep.subr.bf16.mxu0 0
      %239 = vmatpush2.bf16.xpose.msra.mxu0 0
      %240 = vmatprep.subr.bf16.mxu0 0
      %241 = vmatpush2.bf16.xpose.msra.mxu0 0
      %242 = vmatprep.subr.bf16.mxu0 0
      %243 = vmatpush2.bf16.xpose.msra.mxu0 0
      %244 = vmatprep.subr.bf16.mxu0 0
      %245 = vmatpush2.bf16.xpose.msra.mxu0 0
      %246 = vmatprep.subr.bf16.mxu0 0
      %247 = vmatpush2.bf16.xpose.msra.mxu0 0
      %248 = vmatprep.subr.bf16.mxu0 0
      %249 = vmatpush2.bf16.xpose.msra.mxu0 0
      %250 = vmatprep.subr.bf16.mxu0 0
      %251 = vmatpush2.bf16.xpose.msra.mxu0 0
      %252 = vmatprep.subr.bf16.mxu0 0
      %253 = vmatpush2.bf16.xpose.msra.mxu0 0
      %254 = vmatprep.mubr.bf16.mxu0 0
      %255 = vmatmul.mubr.bf16.gmra.mxu0 %v217
      %v256 = vpop.f32.mrf.mxu0
      %v257 = vadd.f32 0.0, %v256
      %v258 = vpop.f32.mrf.mxu0
      %v259 = vpop.f32.mrf.mxu0
      %v260 = vpop.f32.mrf.mxu0
      %261 = vdwg.mxu0
      %vm262 = vcmask 64512
      %v263 = vsel %vm262, %v257, -inf
      %264 = vmax.xlane.f32.xlu0 %v263
      %v265 = vpop.xlane.xlu0 %264
      %v266 = vsub.f32 %v257, %v265
      %v267 = vmul.f32 %v266, 1.442695
      %v268 = vpow.pop %v267
      %v269 = vsel %vm262, %v268, 0.0
      %270 = vadd.xlane.f32.xlu0 %v269
      %v271 = vpop.xlane.xlu0 %270
      %v272 = vrcp.pop %v271
      %v273 = vmul.f32 %v268, %v272
      %v274 = vpack.c.bf16 %v273, %v273
      %v276 = vsel %vm262, %v274, 0
      %vm278 = vcmask 1043456
      %v280 = vsel %vm278, %v214, 0
      %282 = vmatprep.subr.bf16.mxu0 0
      %283 = vmatpush1.bf16.msra.mxu0 0
      %284 = vmatprep.subr.bf16.mxu0 0
      %285 = vmatpush1.bf16.msra.mxu0 0
      %286 = vmatprep.subr.bf16.mxu0 0
      %287 = vmatpush1.bf16.msra.mxu0 0
      %288 = vmatprep.subr.bf16.mxu0 0
      %289 = vmatpush1.bf16.msra.mxu0 0
      %290 = vmatprep.subr.bf16.mxu0 0
      %291 = vmatpush1.bf16.msra.mxu0 0
      %292 = vmatprep.subr.bf16.mxu0 0
      %293 = vmatpush1.bf16.msra.mxu0 0
      %294 = vmatprep.subr.bf16.mxu0 0
      %295 = vmatpush1.bf16.msra.mxu0 0
      %296 = vmatprep.subr.bf16.mxu0 0
      %297 = vmatpush1.bf16.msra.mxu0 %v280
      %298 = vmatprep.subr.bf16.mxu0 0
      %299 = vmatpush2.bf16.msra.mxu0 0
      %300 = vmatprep.subr.bf16.mxu0 0
      %301 = vmatpush2.bf16.msra.mxu0 0
      %302 = vmatprep.subr.bf16.mxu0 0
      %303 = vmatpush2.bf16.msra.mxu0 0
      %304 = vmatprep.subr.bf16.mxu0 0
      %305 = vmatpush2.bf16.msra.mxu0 0
      %306 = vmatprep.subr.bf16.mxu0 0
      %307 = vmatpush2.bf16.msra.mxu0 0
      %308 = vmatprep.subr.bf16.mxu0 0
      %309 = vmatpush2.bf16.msra.mxu0 0
      %310 = vmatprep.subr.bf16.mxu0 0
      %311 = vmatpush2.bf16.msra.mxu0 0
      %312 = vmatprep.subr.bf16.mxu0 0
      %313 = vmatpush2.bf16.msra.mxu0 0
      %314 = vmatprep.mubr.bf16.mxu0 0
      %315 = vmatmul.mubr.bf16.gmra.mxu0 %v276
      %v316 = vpop.f32.mrf.mxu0
      %v317 = vadd.f32 0.0, %v316
      %v318 = vpop.f32.mrf.mxu0
      %v319 = vpop.f32.mrf.mxu0
      %v320 = vpop.f32.mrf.mxu0
      %321 = vdwg.mxu0
      %v323 = vunpack.c.l.b16 %v212
      %v324 = vpack.c.b16 %v323, %v323
      %325 = vrot.lane.b32.xlu0 %v324, 96
      %v326 = vpop.permute.xlu0 %325
      %v328 = vunpack.c.l.b16 %v213
      %v329 = vpack.c.b16 %v328, %v328
      %330 = vrot.lane.b32.xlu0 %v329, 96
      %v331 = vpop.permute.xlu0 %330
      %v333 = vsel %vm215, %v326, 0
      %v336 = vsel %vm215, %v331, 0
      %338 = vmatprep.subr.bf16.mxu0 0
      %339 = vmatpush1.bf16.xpose.msra.mxu0 0
      %340 = vmatprep.subr.bf16.mxu0 0
      %341 = vmatpush1.bf16.xpose.msra.mxu0 0
      %342 = vmatprep.subr.bf16.mxu0 0
      %343 = vmatpush1.bf16.xpose.msra.mxu0 0
      %344 = vmatprep.subr.bf16.mxu0 0
      %345 = vmatpush1.bf16.xpose.msra.mxu0 0
      %346 = vmatprep.subr.bf16.mxu0 0
      %347 = vmatpush1.bf16.xpose.msra.mxu0 0
      %348 = vmatprep.subr.bf16.mxu0 0
      %349 = vmatpush1.bf16.xpose.msra.mxu0 0
      %350 = vmatprep.subr.bf16.mxu0 0
      %351 = vmatpush1.bf16.xpose.msra.mxu0 0
      %352 = vmatprep.subr.bf16.mxu0 0
      %353 = vmatpush1.bf16.xpose.msra.mxu0 %v336
      %354 = vmatprep.subr.bf16.mxu0 0
      %355 = vmatpush2.bf16.xpose.msra.mxu0 0
      %356 = vmatprep.subr.bf16.mxu0 0
      %357 = vmatpush2.bf16.xpose.msra.mxu0 0
      %358 = vmatprep.subr.bf16.mxu0 0
      %359 = vmatpush2.bf16.xpose.msra.mxu0 0
      %360 = vmatprep.subr.bf16.mxu0 0
      %361 = vmatpush2.bf16.xpose.msra.mxu0 0
      %362 = vmatprep.subr.bf16.mxu0 0
      %363 = vmatpush2.bf16.xpose.msra.mxu0 0
      %364 = vmatprep.subr.bf16.mxu0 0
      %365 = vmatpush2.bf16.xpose.msra.mxu0 0
      %366 = vmatprep.subr.bf16.mxu0 0
      %367 = vmatpush2.bf16.xpose.msra.mxu0 0
      %368 = vmatprep.subr.bf16.mxu0 0
      %369 = vmatpush2.bf16.xpose.msra.mxu0 0
      %370 = vmatprep.mubr.bf16.mxu0 0
      %371 = vmatmul.mubr.bf16.gmra.mxu0 %v333
      %v372 = vpop.f32.mrf.mxu0
      %v373 = vadd.f32 0.0, %v372
      %v374 = vpop.f32.mrf.mxu0
      %v375 = vpop.f32.mrf.mxu0
      %v376 = vpop.f32.mrf.mxu0
      %377 = vdwg.mxu0
      %v378 = vsel %vm262, %v373, -inf
      %379 = vmax.xlane.f32.xlu0 %v378
      %v380 = vpop.xlane.xlu0 %379
      %v381 = vsub.f32 %v373, %v380
      %v382 = vmul.f32 %v381, 1.442695
      %v383 = vpow.pop %v382
      %v384 = vsel %vm262, %v383, 0.0
      %385 = vadd.xlane.f32.xlu0 %v384
      %v386 = vpop.xlane.xlu0 %385
      %v387 = vrcp.pop %v386
      %v388 = vmul.f32 %v383, %v387
      %v389 = vpack.c.bf16 %v388, %v388
      %v391 = vunpack.c.l.b16 %v214
      %v392 = vpack.c.b16 %v391, %v391
      %393 = vrot.lane.b32.xlu0 %v392, 96
      %v394 = vpop.permute.xlu0 %393
      %v396 = vsel %vm262, %v389, 0
      %v399 = vsel %vm278, %v394, 0
      %401 = vmatprep.subr.bf16.mxu0 0
      %402 = vmatpush1.bf16.msra.mxu0 0
      %403 = vmatprep.subr.bf16.mxu0 0
      %404 = vmatpush1.bf16.msra.mxu0 0
      %405 = vmatprep.subr.bf16.mxu0 0
      %406 = vmatpush1.bf16.msra.mxu0 0
      %407 = vmatprep.subr.bf16.mxu0 0
      %408 = vmatpush1.bf16.msra.mxu0 0
      %409 = vmatprep.subr.bf16.mxu0 0
      %410 = vmatpush1.bf16.msra.mxu0 0
      %411 = vmatprep.subr.bf16.mxu0 0
      %412 = vmatpush1.bf16.msra.mxu0 0
      %413 = vmatprep.subr.bf16.mxu0 0
      %414 = vmatpush1.bf16.msra.mxu0 0
      %415 = vmatprep.subr.bf16.mxu0 0
      %416 = vmatpush1.bf16.msra.mxu0 %v399
      %417 = vmatprep.subr.bf16.mxu0 0
      %418 = vmatpush2.bf16.msra.mxu0 0
      %419 = vmatprep.subr.bf16.mxu0 0
      %420 = vmatpush2.bf16.msra.mxu0 0
      %421 = vmatprep.subr.bf16.mxu0 0
      %422 = vmatpush2.bf16.msra.mxu0 0
      %423 = vmatprep.subr.bf16.mxu0 0
      %424 = vmatpush2.bf16.msra.mxu0 0
      %425 = vmatprep.subr.bf16.mxu0 0
      %426 = vmatpush2.bf16.msra.mxu0 0
      %427 = vmatprep.subr.bf16.mxu0 0
      %428 = vmatpush2.bf16.msra.mxu0 0
      %429 = vmatprep.subr.bf16.mxu0 0
      %430 = vmatpush2.bf16.msra.mxu0 0
      %431 = vmatprep.subr.bf16.mxu0 0
      %432 = vmatpush2.bf16.msra.mxu0 0
      %433 = vmatprep.mubr.bf16.mxu0 0
      %434 = vmatmul.mubr.bf16.gmra.mxu0 %v396
      %v435 = vpop.f32.mrf.mxu0
      %v436 = vadd.f32 0.0, %v435
      %v437 = vpop.f32.mrf.mxu0
      %v438 = vpop.f32.mrf.mxu0
      %v439 = vpop.f32.mrf.mxu0
      %440 = vdwg.mxu0
      %441 = vrot.lane.b32.xlu0 %v324, 64
      %v442 = vpop.permute.xlu0 %441
      %443 = vrot.lane.b32.xlu0 %v329, 64
      %v444 = vpop.permute.xlu0 %443
      %v446 = vsel %vm215, %v442, 0
      %v449 = vsel %vm215, %v444, 0
      %451 = vmatprep.subr.bf16.mxu0 0
      %452 = vmatpush1.bf16.xpose.msra.mxu0 0
      %453 = vmatprep.subr.bf16.mxu0 0
      %454 = vmatpush1.bf16.xpose.msra.mxu0 0
      %455 = vmatprep.subr.bf16.mxu0 0
      %456 = vmatpush1.bf16.xpose.msra.mxu0 0
      %457 = vmatprep.subr.bf16.mxu0 0
      %458 = vmatpush1.bf16.xpose.msra.mxu0 0
      %459 = vmatprep.subr.bf16.mxu0 0
      %460 = vmatpush1.bf16.xpose.msra.mxu0 0
      %461 = vmatprep.subr.bf16.mxu0 0
      %462 = vmatpush1.bf16.xpose.msra.mxu0 0
      %463 = vmatprep.subr.bf16.mxu0 0
      %464 = vmatpush1.bf16.xpose.msra.mxu0 0
      %465 = vmatprep.subr.bf16.mxu0 0
      %466 = vmatpush1.bf16.xpose.msra.mxu0 %v449
      %467 = vmatprep.subr.bf16.mxu0 0
      %468 = vmatpush2.bf16.xpose.msra.mxu0 0
      %469 = vmatprep.subr.bf16.mxu0 0
      %470 = vmatpush2.bf16.xpose.msra.mxu0 0
      %471 = vmatprep.subr.bf16.mxu0 0
      %472 = vmatpush2.bf16.xpose.msra.mxu0 0
      %473 = vmatprep.subr.bf16.mxu0 0
      %474 = vmatpush2.bf16.xpose.msra.mxu0 0
      %475 = vmatprep.subr.bf16.mxu0 0
      %476 = vmatpush2.bf16.xpose.msra.mxu0 0
      %477 = vmatprep.subr.bf16.mxu0 0
      %478 = vmatpush2.bf16.xpose.msra.mxu0 0
      %479 = vmatprep.subr.bf16.mxu0 0
      %480 = vmatpush2.bf16.xpose.msra.mxu0 0
      %481 = vmatprep.subr.bf16.mxu0 0
      %482 = vmatpush2.bf16.xpose.msra.mxu0 0
      %483 = vmatprep.mubr.bf16.mxu0 0
      %484 = vmatmul.mubr.bf16.gmra.mxu0 %v446
      %v485 = vpop.f32.mrf.mxu0
      %v486 = vadd.f32 0.0, %v485
      %v487 = vpop.f32.mrf.mxu0
      %v488 = vpop.f32.mrf.mxu0
      %v489 = vpop.f32.mrf.mxu0
      %490 = vdwg.mxu0
      %v491 = vsel %vm262, %v486, -inf
      %492 = vmax.xlane.f32.xlu0 %v491
      %v493 = vpop.xlane.xlu0 %492
      %v494 = vsub.f32 %v486, %v493
      %v495 = vmul.f32 %v494, 1.442695
      %v496 = vpow.pop %v495
      %v497 = vsel %vm262, %v496, 0.0
      %498 = vadd.xlane.f32.xlu0 %v497
      %v499 = vpop.xlane.xlu0 %498
      %v500 = vrcp.pop %v499
      %v501 = vmul.f32 %v496, %v500
      %v502 = vpack.c.bf16 %v501, %v501
      %503 = vrot.lane.b32.xlu0 %v392, 64
      %v504 = vpop.permute.xlu0 %503
      %v506 = vsel %vm262, %v502, 0
      %v509 = vsel %vm278, %v504, 0
      %511 = vmatprep.subr.bf16.mxu0 0
      %512 = vmatpush1.bf16.msra.mxu0 0
      %513 = vmatprep.subr.bf16.mxu0 0
      %514 = vmatpush1.bf16.msra.mxu0 0
      %515 = vmatprep.subr.bf16.mxu0 0
      %516 = vmatpush1.bf16.msra.mxu0 0
      %517 = vmatprep.subr.bf16.mxu0 0
      %518 = vmatpush1.bf16.msra.mxu0 0
      %519 = vmatprep.subr.bf16.mxu0 0
      %520 = vmatpush1.bf16.msra.mxu0 0
      %521 = vmatprep.subr.bf16.mxu0 0
      %522 = vmatpush1.bf16.msra.mxu0 0
      %523 = vmatprep.subr.bf16.mxu0 0
      %524 = vmatpush1.bf16.msra.mxu0 0
      %525 = vmatprep.subr.bf16.mxu0 0
      %526 = vmatpush1.bf16.msra.mxu0 %v509
      %527 = vmatprep.subr.bf16.mxu0 0
      %528 = vmatpush2.bf16.msra.mxu0 0
      %529 = vmatprep.subr.bf16.mxu0 0
      %530 = vmatpush2.bf16.msra.mxu0 0
      %531 = vmatprep.subr.bf16.mxu0 0
      %532 = vmatpush2.bf16.msra.mxu0 0
      %533 = vmatprep.subr.bf16.mxu0 0
      %534 = vmatpush2.bf16.msra.mxu0 0
      %535 = vmatprep.subr.bf16.mxu0 0
      %536 = vmatpush2.bf16.msra.mxu0 0
      %537 = vmatprep.subr.bf16.mxu0 0
      %538 = vmatpush2.bf16.msra.mxu0 0
      %539 = vmatprep.subr.bf16.mxu0 0
      %540 = vmatpush2.bf16.msra.mxu0 0
      %541 = vmatprep.subr.bf16.mxu0 0
      %542 = vmatpush2.bf16.msra.mxu0 0
      %543 = vmatprep.mubr.bf16.mxu0 0
      %544 = vmatmul.mubr.bf16.gmra.mxu0 %v506
      %v545 = vpop.f32.mrf.mxu0
      %v546 = vadd.f32 0.0, %v545
      %v547 = vpop.f32.mrf.mxu0
      %v548 = vpop.f32.mrf.mxu0
      %v549 = vpop.f32.mrf.mxu0
      %550 = vdwg.mxu0
      %551 = vrot.lane.b32.xlu0 %v324, 32
      %v552 = vpop.permute.xlu0 %551
      %553 = vrot.lane.b32.xlu0 %v329, 32
      %v554 = vpop.permute.xlu0 %553
      %v556 = vsel %vm215, %v552, 0
      %v559 = vsel %vm215, %v554, 0
      %561 = vmatprep.subr.bf16.mxu0 0
      %562 = vmatpush1.bf16.xpose.msra.mxu0 0
      %563 = vmatprep.subr.bf16.mxu0 0
      %564 = vmatpush1.bf16.xpose.msra.mxu0 0
      %565 = vmatprep.subr.bf16.mxu0 0
      %566 = vmatpush1.bf16.xpose.msra.mxu0 0
      %567 = vmatprep.subr.bf16.mxu0 0
      %568 = vmatpush1.bf16.xpose.msra.mxu0 0
      %569 = vmatprep.subr.bf16.mxu0 0
      %570 = vmatpush1.bf16.xpose.msra.mxu0 0
      %571 = vmatprep.subr.bf16.mxu0 0
      %572 = vmatpush1.bf16.xpose.msra.mxu0 0
      %573 = vmatprep.subr.bf16.mxu0 0
      %574 = vmatpush1.bf16.xpose.msra.mxu0 0
      %575 = vmatprep.subr.bf16.mxu0 0
      %576 = vmatpush1.bf16.xpose.msra.mxu0 %v559
      %577 = vmatprep.subr.bf16.mxu0 0
      %578 = vmatpush2.bf16.xpose.msra.mxu0 0
      %579 = vmatprep.subr.bf16.mxu0 0
      %580 = vmatpush2.bf16.xpose.msra.mxu0 0
      %581 = vmatprep.subr.bf16.mxu0 0
      %582 = vmatpush2.bf16.xpose.msra.mxu0 0
      %583 = vmatprep.subr.bf16.mxu0 0
      %584 = vmatpush2.bf16.xpose.msra.mxu0 0
      %585 = vmatprep.subr.bf16.mxu0 0
      %586 = vmatpush2.bf16.xpose.msra.mxu0 0
      %587 = vmatprep.subr.bf16.mxu0 0
      %588 = vmatpush2.bf16.xpose.msra.mxu0 0
      %589 = vmatprep.subr.bf16.mxu0 0
      %590 = vmatpush2.bf16.xpose.msra.mxu0 0
      %591 = vmatprep.subr.bf16.mxu0 0
      %592 = vmatpush2.bf16.xpose.msra.mxu0 0
      %593 = vmatprep.mubr.bf16.mxu0 0
      %594 = vmatmul.mubr.bf16.gmra.mxu0 %v556
      %v595 = vpop.f32.mrf.mxu0
      %v596 = vadd.f32 0.0, %v595
      %v597 = vpop.f32.mrf.mxu0
      %v598 = vpop.f32.mrf.mxu0
      %v599 = vpop.f32.mrf.mxu0
      %600 = vdwg.mxu0
      %v601 = vsel %vm262, %v596, -inf
      %602 = vmax.xlane.f32.xlu0 %v601
      %v603 = vpop.xlane.xlu0 %602
      %v604 = vsub.f32 %v596, %v603
      %v605 = vmul.f32 %v604, 1.442695
      %v606 = vpow.pop %v605
      %v607 = vsel %vm262, %v606, 0.0
      %608 = vadd.xlane.f32.xlu0 %v607
      %v609 = vpop.xlane.xlu0 %608
      %v610 = vrcp.pop %v609
      %v611 = vmul.f32 %v606, %v610
      %v612 = vpack.c.bf16 %v611, %v611
      %613 = vrot.lane.b32.xlu0 %v392, 32
      %v614 = vpop.permute.xlu0 %613
      %v616 = vsel %vm262, %v612, 0
      %v619 = vsel %vm278, %v614, 0
      %621 = vmatprep.subr.bf16.mxu0 0
      %622 = vmatpush1.bf16.msra.mxu0 0
      %623 = vmatprep.subr.bf16.mxu0 0
      %624 = vmatpush1.bf16.msra.mxu0 0
      %625 = vmatprep.subr.bf16.mxu0 0
      %626 = vmatpush1.bf16.msra.mxu0 0
      %627 = vmatprep.subr.bf16.mxu0 0
      %628 = vmatpush1.bf16.msra.mxu0 0
      %629 = vmatprep.subr.bf16.mxu0 0
      %630 = vmatpush1.bf16.msra.mxu0 0
      %631 = vmatprep.subr.bf16.mxu0 0
      %632 = vmatpush1.bf16.msra.mxu0 0
      %633 = vmatprep.subr.bf16.mxu0 0
      %634 = vmatpush1.bf16.msra.mxu0 0
      %635 = vmatprep.subr.bf16.mxu0 0
      %636 = vmatpush1.bf16.msra.mxu0 %v619
      %637 = vmatprep.subr.bf16.mxu0 0
      %638 = vmatpush2.bf16.msra.mxu0 0
      %639 = vmatprep.subr.bf16.mxu0 0
      %640 = vmatpush2.bf16.msra.mxu0 0
      %641 = vmatprep.subr.bf16.mxu0 0
      %642 = vmatpush2.bf16.msra.mxu0 0
      %643 = vmatprep.subr.bf16.mxu0 0
      %644 = vmatpush2.bf16.msra.mxu0 0
      %645 = vmatprep.subr.bf16.mxu0 0
      %646 = vmatpush2.bf16.msra.mxu0 0
      %647 = vmatprep.subr.bf16.mxu0 0
      %648 = vmatpush2.bf16.msra.mxu0 0
      %649 = vmatprep.subr.bf16.mxu0 0
      %650 = vmatpush2.bf16.msra.mxu0 0
      %651 = vmatprep.subr.bf16.mxu0 0
      %652 = vmatpush2.bf16.msra.mxu0 0
      %653 = vmatprep.mubr.bf16.mxu0 0
      %654 = vmatmul.mubr.bf16.gmra.mxu0 %v616
      %v655 = vpop.f32.mrf.mxu0
      %v656 = vadd.f32 0.0, %v655
      %v657 = vpop.f32.mrf.mxu0
      %v658 = vpop.f32.mrf.mxu0
      %v659 = vpop.f32.mrf.mxu0
      %660 = vdwg.mxu0
      %662 = vrot.lane.b32.xlu0 %v436, 32
      %v663 = vpop.permute.xlu0 %662
      %666 = vrot.lane.b32.xlu0 %v546, 64
      %v667 = vpop.permute.xlu0 %666
      %670 = vrot.lane.b32.xlu0 %v656, 96
      %v671 = vpop.permute.xlu0 %670
      %v673 = vsel %vm215, %v317, %v663
      %vm674 = vcmask 523264
      %v675 = vsel %vm674, %v673, %v667
      %vm676 = vcmask 785408
      %v677 = vsel %vm676, %v675, %v671
      %v678 = vpack.c.bf16 %v677, %v677
      %679 = vst [vmem:[%s208] sm:$0xf] %v678
      %p680 = scmp.lt.s32.totalorder %s14, 1
      %s681 = scalar_select %p680, %s14, 1
      %s682 = smul.addr %s681, 4
      %s683 = scalar_lea.vmem %s3, %s682
      // Predicated region
      $region33: #{decoder_forward.24} parent=31 // pred_check
        %p684 = pneg %p110
      $region34: #{decoder_forward.24} parent=31 // pred_check_branch
        %686 = sbr.rel (%p684) target = $region36
      $region35: #{decoder_forward.24} parent=31 // pred_region
        _
      $region36: #{decoder_forward.24} parent=31 // pred_fallthru
        _
    $region32: #{decoder_forward.24} parent=5 // pred_fallthru
      _
    %p687 = scmp.le.s32.totalorder 2, %s9
    // Predicated region
    $region37: #{decoder_forward.24} parent=5 // pred_check
      %p688 = pneg %p687
    $region38: #{decoder_forward.24} parent=5 // pred_check_branch
      %690 = sbr.rel (%p688) target = $region40
    $region39: #{decoder_forward.24} parent=5 // pred_region
      %s691 = ssub.s32 %s9, 2
      // Predicated region
      $region41: #{decoder_forward.24} parent=39 // pred_check
        %p692 = pneg %p116
      $region42: #{decoder_forward.24} parent=39 // pred_check_branch
        %694 = sbr.rel (%p692) target = $region44
      $region43: #{decoder_forward.24} parent=39 // pred_region
        %p695 = scmp.lt.s32.totalorder %s15, 1
        %s696 = scalar_select %p695, %s15, 1
        %s697 = smul.addr %s696, 4
        %s698 = scalar_lea.vmem %s3, %s697
      $region44: #{decoder_forward.24} parent=39 // pred_fallthru
        _
    $region40: #{decoder_forward.24} parent=5 // pred_fallthru
      _
  $region6: #{decoder_forward.24} parent=0 // loop_footer
    %s13 = sadd.s32 1, %s9
  $region7: #{decoder_forward.24} parent=0 // loop_footer_branch
    %8 = sbr.rel target = $region3
  $region8: #{decoder_forward.24} parent=0 // loop_exit
    _

// kernel: decoder_forward.35
$region0: #{decoder_forward.35}
  #allocation0 [shape = 'u32[]', space=smem, size = 0x4, offset = 0x4, fixed_abs, tag = 'smem constant byte address 0x4 - core index']
  #allocation1 [shape = 'u32[144,128]{1,0:T(1,128)}', space=vmem, size = 0x12000, scoped, tag = 'internal scratch']
  #allocation2 [shape = 'f32[16,256]{1,0:T(8,128)}', space=vmem, size = 0x4000, scoped, tag = 'scratch operand']
  %s0 = inlined_call_operand.vmem [shape: f32[16,128], index: 0, kind: input, shape index: {}]
  %s1 = inlined_call_operand.vmem [shape: bf16[128,256], index: 1, kind: input, shape index: {}]
  %s2 = inlined_call_operand.vmem [shape: f32[1,256], index: 2, kind: input, shape index: {}]
  %s3 = inlined_call_operand.hbm [shape: f32[16,256], index: 3, kind: output, shape index: {}]
  %s4 = sld [smem:[#allocation0]]
  $region30: #{decoder_forward.35} parent=0
    _
  %s6 = ssub.s32 1, %s4
  %s7 = scalar_select 0, %s6, %s4
  $region1: #{decoder_forward.35} parent=0
    #allocation3 [shape = 'u8[16384]{0}', space=vmem, size = 0x4000, scoped, tag = 'output window, operand 0, single buffered']
    #allocation4 [shape = 's32[1]{0}', space=sflag, size = 0x4, scoped, tag = 'scoped memory for decoder_forward.35']
    %8 = vsyncpa [#allocation4], 0
    // Predicated region
    $region2: #{decoder_forward.35} parent=1 // pred_check
      _
    $region3: #{decoder_forward.35} parent=1 // pred_check_branch
      %10 = sbr.rel (0) target = $region5
    $region4: #{decoder_forward.35} parent=1 // pred_region
      _
    $region5: #{decoder_forward.35} parent=1 // pred_fallthru
      _
    // Predicated region
    $region6: #{decoder_forward.35} parent=1 // pred_check
      _
    $region7: #{decoder_forward.35} parent=1 // pred_check_branch
      %12 = sbr.rel (0) target = $region9
    $region8: #{decoder_forward.35} parent=1 // pred_region
      _
    $region9: #{decoder_forward.35} parent=1 // pred_fallthru
      _
    // Predicated region
    $region10: #{decoder_forward.35} parent=1 // pred_check
      _
    $region11: #{decoder_forward.35} parent=1 // pred_check_branch
      %14 = sbr.rel (0) target = $region13
    $region12: #{decoder_forward.35} parent=1 // pred_region
      _
    $region13: #{decoder_forward.35} parent=1 // pred_fallthru
      _
    %p16 = scmp.eq.s32.totalorder 0, 0
    // Predicated region
    $region14: #{decoder_forward.35} parent=1 // pred_check
      %p17 = pneg %p16
    $region15: #{decoder_forward.35} parent=1 // pred_check_branch
      %19 = sbr.rel (%p17) target = $region17
    $region16: #{decoder_forward.35} parent=1 // pred_region
      %20 = vst [vmem:[#allocation2] sm:$0xff] 0.0
      %21 = vst [vmem:[#allocation2 + $0x8] sm:$0xff] 0.0
      %22 = vst [vmem:[#allocation2 + $0x10] sm:$0xff] 0.0
      %23 = vst [vmem:[#allocation2 + $0x18] sm:$0xff] 0.0
    $region17: #{decoder_forward.35} parent=1 // pred_fallthru
      _
    %v24 = vld [vmem:[#allocation2] sm:$0xff]
    %v25 = vld [vmem:[#allocation2 + $0x8] sm:$0xff]
    %v26 = vld [vmem:[#allocation2 + $0x10] sm:$0xff]
    %v27 = vld [vmem:[#allocation2 + $0x18] sm:$0xff]
    %v28 = vld [vmem:[%s0] sm:$0xff]
    %v29 = vld [vmem:[%s0 + $0x8] sm:$0xff]
    %v30 = vpack.c.bf16 %v29, %v28
    %v31 = vld [vmem:[%s1] sm:$0xff]
    %v32 = vld [vmem:[%s1 + $0x8] sm:$0xff]
    %v33 = vld [vmem:[%s1 + $0x10] sm:$0xff]
    %v34 = vld [vmem:[%s1 + $0x18] sm:$0xff]
    %v35 = vld [vmem:[%s1 + $0x20] sm:$0xff]
    %v36 = vld [vmem:[%s1 + $0x28] sm:$0xff]
    %v37 = vld [vmem:[%s1 + $0x30] sm:$0xff]
    %v38 = vld [vmem:[%s1 + $0x38] sm:$0xff]
    %v39 = vld [vmem:[%s1 + $0x40] sm:$0xff]
    %v40 = vld [vmem:[%s1 + $0x48] sm:$0xff]
    %v41 = vld [vmem:[%s1 + $0x50] sm:$0xff]
    %v42 = vld [vmem:[%s1 + $0x58] sm:$0xff]
    %v43 = vld [vmem:[%s1 + $0x60] sm:$0xff]
    %v44 = vld [vmem:[%s1 + $0x68] sm:$0xff]
    %v45 = vld [vmem:[%s1 + $0x70] sm:$0xff]
    %v46 = vld [vmem:[%s1 + $0x78] sm:$0xff]
    %v63 = vunpack.c.l.b16 %v31
    %v64 = vunpack.c.h.b16 %v31
    %v65 = vunpack.c.l.b16 %v32
    %v66 = vunpack.c.h.b16 %v32
    %v67 = vunpack.c.l.b16 %v33
    %v68 = vunpack.c.h.b16 %v33
    %v69 = vunpack.c.l.b16 %v34
    %v70 = vunpack.c.h.b16 %v34
    %v71 = vunpack.c.l.b16 %v35
    %v72 = vunpack.c.h.b16 %v35
    %v73 = vunpack.c.l.b16 %v36
    %v74 = vunpack.c.h.b16 %v36
    %v75 = vunpack.c.l.b16 %v37
    %v76 = vunpack.c.h.b16 %v37
    %v77 = vunpack.c.l.b16 %v38
    %v78 = vunpack.c.h.b16 %v38
    %v79 = vunpack.c.l.b16 %v39
    %v80 = vunpack.c.h.b16 %v39
    %v81 = vunpack.c.l.b16 %v40
    %v82 = vunpack.c.h.b16 %v40
    %v83 = vunpack.c.l.b16 %v41
    %v84 = vunpack.c.h.b16 %v41
    %v85 = vunpack.c.l.b16 %v42
    %v86 = vunpack.c.h.b16 %v42
    %v87 = vunpack.c.l.b16 %v43
    %v88 = vunpack.c.h.b16 %v43
    %v89 = vunpack.c.l.b16 %v44
    %v90 = vunpack.c.h.b16 %v44
    %v91 = vunpack.c.l.b16 %v45
    %v92 = vunpack.c.h.b16 %v45
    %v93 = vunpack.c.l.b16 %v46
    %v94 = vunpack.c.h.b16 %v46
    %v95 = vpack.c.b16 %v65, %v63
    %v96 = vpack.c.b16 %v66, %v64
    %v97 = vpack.c.b16 %v69, %v67
    %v98 = vpack.c.b16 %v70, %v68
    %v99 = vpack.c.b16 %v73, %v71
    %v100 = vpack.c.b16 %v74, %v72
    %v101 = vpack.c.b16 %v77, %v75
    %v102 = vpack.c.b16 %v78, %v76
    %v103 = vpack.c.b16 %v81, %v79
    %v104 = vpack.c.b16 %v82, %v80
    %v105 = vpack.c.b16 %v85, %v83
    %v106 = vpack.c.b16 %v86, %v84
    %v107 = vpack.c.b16 %v89, %v87
    %v108 = vpack.c.b16 %v90, %v88
    %v109 = vpack.c.b16 %v93, %v91
    %v110 = vpack.c.b16 %v94, %v92
    %127 = vmatprep.subr.bf16.mxu0 %v110
    %128 = vmatpush1.bf16.msra.mxu0 %v109
    %129 = vmatprep.subr.bf16.mxu0 %v108
    %130 = vmatpush1.bf16.msra.mxu0 %v107
    %131 = vmatprep.subr.bf16.mxu0 %v106
    %132 = vmatpush1.bf16.msra.mxu0 %v105
    %133 = vmatprep.subr.bf16.mxu0 %v104
    %134 = vmatpush1.bf16.msra.mxu0 %v103
    %135 = vmatprep.subr.bf16.mxu0 %v102
    %136 = vmatpush1.bf16.msra.mxu0 %v101
    %137 = vmatprep.subr.bf16.mxu0 %v100
    %138 = vmatpush1.bf16.msra.mxu0 %v99
    %139 = vmatprep.subr.bf16.mxu0 %v98
    %140 = vmatpush1.bf16.msra.mxu0 %v97
    %141 = vmatprep.subr.bf16.mxu0 %v96
    %142 = vmatpush1.bf16.msra.mxu0 %v95
    %143 = vmatprep.subr.bf16.mxu0 0
    %144 = vmatpush2.bf16.msra.mxu0 0
    %145 = vmatprep.subr.bf16.mxu0 0
    %146 = vmatpush2.bf16.msra.mxu0 0
    %147 = vmatprep.subr.bf16.mxu0 0
    %148 = vmatpush2.bf16.msra.mxu0 0
    %149 = vmatprep.subr.bf16.mxu0 0
    %150 = vmatpush2.bf16.msra.mxu0 0
    %151 = vmatprep.subr.bf16.mxu0 0
    %152 = vmatpush2.bf16.msra.mxu0 0
    %153 = vmatprep.subr.bf16.mxu0 0
    %154 = vmatpush2.bf16.msra.mxu0 0
    %155 = vmatprep.subr.bf16.mxu0 0
    %156 = vmatpush2.bf16.msra.mxu0 0
    %157 = vmatprep.subr.bf16.mxu0 0
    %158 = vmatpush2.bf16.msra.mxu0 0
    %159 = vmatprep.mubr.bf16.mxu0 0
    %160 = vmatmul.mubr.bf16.gmra.mxu0 %v30
    %v161 = vpop.f32.mrf.mxu0
    %v162 = vadd.f32 0.0, %v161
    %v163 = vpop.f32.mrf.mxu0
    %v164 = vadd.f32 0.0, %v163
    %v165 = vpop.f32.mrf.mxu0
    %v166 = vadd.f32 0.0, %v165
    %v167 = vpop.f32.mrf.mxu0
    %v168 = vadd.f32 0.0, %v167
    %169 = vdwg.mxu0
    %v170 = vadd.f32 %v24, %v162
    %v171 = vadd.f32 %v25, %v164
    %v172 = vadd.f32 %v26, %v166
    %v173 = vadd.f32 %v27, %v168
    %174 = vst [vmem:[#allocation2] sm:$0xff] %v170
    %175 = vst [vmem:[#allocation2 + $0x8] sm:$0xff] %v171
    %176 = vst [vmem:[#allocation2 + $0x10] sm:$0xff] %v172
    %177 = vst [vmem:[#allocation2 + $0x18] sm:$0xff] %v173
    // Predicated region
    $region18: #{decoder_forward.35} parent=1 // pred_check
      %p178 = pneg %p16
    $region19: #{decoder_forward.35} parent=1 // pred_check_branch
      %180 = sbr.rel (%p178) target = $region21
    $region20: #{decoder_forward.35} parent=1 // pred_region
      %v181 = vld [vmem:[#allocation2] sm:$0xff]
      %v182 = vld [vmem:[#allocation2 + $0x8] sm:$0xff]
      %v183 = vld [vmem:[#allocation2 + $0x10] sm:$0xff]
      %v184 = vld [vmem:[#allocation2 + $0x18] sm:$0xff]
      %v185 = vld [vmem:[%s2] sm:$0x3]
      %v187 = vlaneseq
      %v188 = vshrl.u32 %v187, 7
      %v189 = vsub.s32 0, %v188
      %v190 = vrot.slane %v185, %v189
      %v191 = vlaneseq
      %v192 = vshrl.u32 %v191, 7
      %v193 = vsub.s32 1, %v192
      %v194 = vrot.slane %v185, %v193
      %v197 = vadd.f32 %v181, %v190
      %v198 = vadd.f32 %v182, %v194
      %v199 = vadd.f32 %v183, %v190
      %v200 = vadd.f32 %v184, %v194
      %201 = vst [vmem:[#allocation3] sm:$0xff] %v197
      %202 = vst [vmem:[#allocation3 + $0x8] sm:$0xff] %v198
      %203 = vst [vmem:[#allocation3 + $0x10] sm:$0xff] %v199
      %204 = vst [vmem:[#allocation3 + $0x18] sm:$0xff] %v200
    $region21: #{decoder_forward.35} parent=1 // pred_fallthru
      _
    // Predicated region
    $region22: #{decoder_forward.35} parent=1 // pred_check
      _
    $region23: #{decoder_forward.35} parent=1 // pred_check_branch
      %206 = sbr.rel (0) target = $region25
    $region24: #{decoder_forward.35} parent=1 // pred_region
      %s208 = ssub.s32 512, 512
      %209 = vsyncadd [#allocation4], %s208
      %s210 = sshll.u32 [#allocation3], 4
      %s211 = int_to_ptr.vmem [resolvable:$true] %s210
      %216 = dma.vmem_to_hbm [thread:$0]  %s211, 512, %s3, [#allocation4], 256, 256, 16
    $region25: #{decoder_forward.35} parent=1 // pred_fallthru
      _
    // Predicated region
    $region26: #{decoder_forward.35} parent=1 // pred_check
      _
    $region27: #{decoder_forward.35} parent=1 // pred_check_branch
      %218 = sbr.rel (0) target = $region29
    $region28: #{decoder_forward.35} parent=1 // pred_region
      %219 = dma.done [#allocation4], 512
    $region29: #{decoder_forward.35} parent=1 // pred_fallthru
      _
    %220 = vsyncpa [#allocation4], 1

// kernel: decoder_forward.26
$region0: #{decoder_forward.26}
  #allocation0 [shape = 'u32[]', space=smem, size = 0x4, offset = 0x4, fixed_abs, tag = 'smem constant byte address 0x4 - core index']
  #allocation1 [shape = 'u32[144,128]{1,0:T(1,128)}', space=vmem, size = 0x12000, scoped, tag = 'internal scratch']
  %s0 = inlined_call_operand.vmem [shape: f32[16,128], index: 0, kind: input, shape index: {}]
  %s1 = inlined_call_operand.vmem [shape: bf16[128,512], index: 1, kind: input, shape index: {}]
  %s2 = inlined_call_operand.vmem [shape: f32[1,512], index: 2, kind: input, shape index: {}]
  %s3 = inlined_call_operand.vmem [shape: bf16[512,128], index: 3, kind: input, shape index: {}]
  %s4 = inlined_call_operand.vmem [shape: f32[1,128], index: 4, kind: input, shape index: {}]
  %s5 = inlined_call_operand.vmem [shape: f32[1,128], index: 5, kind: input, shape index: {}]
  %s6 = inlined_call_operand.vmem [shape: f32[1,128], index: 6, kind: input, shape index: {}]
  %s7 = inlined_call_operand.vmem [shape: f32[16,128], index: 7, kind: output, shape index: {}]
  %s8 = sld [smem:[#allocation0]]
  $region38: #{decoder_forward.26} parent=0
    _
  %s10 = ssub.s32 1, %s8
  %s11 = scalar_select 0, %s10, %s8
  // Predicated region
  $region2: #{decoder_forward.26} parent=0 // pred_check
    _
  $region3: #{decoder_forward.26} parent=0 // pred_check_branch
    %13 = sbr.rel (0) target = $region5
  $region4: #{decoder_forward.26} parent=0 // pred_region
    _
  $region5: #{decoder_forward.26} parent=0 // pred_fallthru
    _
  // Predicated region
  $region6: #{decoder_forward.26} parent=0 // pred_check
    _
  $region7: #{decoder_forward.26} parent=0 // pred_check_branch
    %15 = sbr.rel (0) target = $region9
  $region8: #{decoder_forward.26} parent=0 // pred_region
    _
  $region9: #{decoder_forward.26} parent=0 // pred_fallthru
    _
  // Predicated region
  $region10: #{decoder_forward.26} parent=0 // pred_check
    _
  $region11: #{decoder_forward.26} parent=0 // pred_check_branch
    %17 = sbr.rel (0) target = $region13
  $region12: #{decoder_forward.26} parent=0 // pred_region
    _
  $region13: #{decoder_forward.26} parent=0 // pred_fallthru
    _
  // Predicated region
  $region14: #{decoder_forward.26} parent=0 // pred_check
    _
  $region15: #{decoder_forward.26} parent=0 // pred_check_branch
    %19 = sbr.rel (0) target = $region17
  $region16: #{decoder_forward.26} parent=0 // pred_region
    _
  $region17: #{decoder_forward.26} parent=0 // pred_fallthru
    _
  // Predicated region
  $region18: #{decoder_forward.26} parent=0 // pred_check
    _
  $region19: #{decoder_forward.26} parent=0 // pred_check_branch
    %21 = sbr.rel (0) target = $region21
  $region20: #{decoder_forward.26} parent=0 // pred_region
    _
  $region21: #{decoder_forward.26} parent=0 // pred_fallthru
    _
  // Predicated region
  $region22: #{decoder_forward.26} parent=0 // pred_check
    _
  $region23: #{decoder_forward.26} parent=0 // pred_check_branch
    %23 = sbr.rel (0) target = $region25
  $region24: #{decoder_forward.26} parent=0 // pred_region
    _
  $region25: #{decoder_forward.26} parent=0 // pred_fallthru
    _
  // Predicated region
  $region26: #{decoder_forward.26} parent=0 // pred_check
    _
  $region27: #{decoder_forward.26} parent=0 // pred_check_branch
    %25 = sbr.rel (0) target = $region29
  $region28: #{decoder_forward.26} parent=0 // pred_region
    _
  $region29: #{decoder_forward.26} parent=0 // pred_fallthru
    _
  %v27 = vld [vmem:[%s0] sm:$0xff]
  %v28 = vld [vmem:[%s0 + $0x8] sm:$0xff]
  %v29 = vpack.c.bf16 %v28, %v27
  %v30 = vld [vmem:[%s1] sm:$0xff]
  %v31 = vld [vmem:[%s1 + $0x8] sm:$0xff]
  %v32 = vld [vmem:[%s1 + $0x10] sm:$0xff]
  %v33 = vld [vmem:[%s1 + $0x18] sm:$0xff]
  %v34 = vld [vmem:[%s1 + $0x20] sm:$0xff]
  %v35 = vld [vmem:[%s1 + $0x28] sm:$0xff]
  %v36 = vld [vmem:[%s1 + $0x30] sm:$0xff]
  %v37 = vld [vmem:[%s1 + $0x38] sm:$0xff]
  %v38 = vld [vmem:[%s1 + $0x40] sm:$0xff]
  %v39 = vld [vmem:[%s1 + $0x48] sm:$0xff]
  %v40 = vld [vmem:[%s1 + $0x50] sm:$0xff]
  %v41 = vld [vmem:[%s1 + $0x58] sm:$0xff]
  %v42 = vld [vmem:[%s1 + $0x60] sm:$0xff]
  %v43 = vld [vmem:[%s1 + $0x68] sm:$0xff]
  %v44 = vld [vmem:[%s1 + $0x70] sm:$0xff]
  %v45 = vld [vmem:[%s1 + $0x78] sm:$0xff]
  %v46 = vld [vmem:[%s1 + $0x80] sm:$0xff]
  %v47 = vld [vmem:[%s1 + $0x88] sm:$0xff]
  %v48 = vld [vmem:[%s1 + $0x90] sm:$0xff]
  %v49 = vld [vmem:[%s1 + $0x98] sm:$0xff]
  %v50 = vld [vmem:[%s1 + $0xa0] sm:$0xff]
  %v51 = vld [vmem:[%s1 + $0xa8] sm:$0xff]
  %v52 = vld [vmem:[%s1 + $0xb0] sm:$0xff]
  %v53 = vld [vmem:[%s1 + $0xb8] sm:$0xff]
  %v54 = vld [vmem:[%s1 + $0xc0] sm:$0xff]
  %v55 = vld [vmem:[%s1 + $0xc8] sm:$0xff]
  %v56 = vld [vmem:[%s1 + $0xd0] sm:$0xff]
  %v57 = vld [vmem:[%s1 + $0xd8] sm:$0xff]
  %v58 = vld [vmem:[%s1 + $0xe0] sm:$0xff]
  %v59 = vld [vmem:[%s1 + $0xe8] sm:$0xff]
  %v60 = vld [vmem:[%s1 + $0xf0] sm:$0xff]
  %v61 = vld [vmem:[%s1 + $0xf8] sm:$0xff]
  %v62 = vld [vmem:[%s2] sm:$0xf]
  %v64 = vlaneseq
  %v65 = vshrl.u32 %v64, 7
  %v66 = vsub.s32 0, %v65
  %v67 = vrot.slane %v62, %v66
  %v68 = vlaneseq
  %v69 = vshrl.u32 %v68, 7
  %v70 = vsub.s32 1, %v69
  %v71 = vrot.slane %v62, %v70
  %v72 = vlaneseq
  %v73 = vshrl.u32 %v72, 7
  %v74 = vsub.s32 2, %v73
  %v75 = vrot.slane %v62, %v74
  %v76 = vlaneseq
  %v77 = vshrl.u32 %v76, 7
  %v78 = vsub.s32 3, %v77
  %v79 = vrot.slane %v62, %v78
  %v116 = vunpack.c.l.b16 %v30
  %v117 = vunpack.c.h.b16 %v30
  %v118 = vunpack.c.l.b16 %v31
  %v119 = vunpack.c.h.b16 %v31
  %v120 = vunpack.c.l.b16 %v32
  %v121 = vunpack.c.h.b16 %v32
  %v122 = vunpack.c.l.b16 %v33
  %v123 = vunpack.c.h.b16 %v33
  %v124 = vunpack.c.l.b16 %v34
  %v125 = vunpack.c.h.b16 %v34
  %v126 = vunpack.c.l.b16 %v35
  %v127 = vunpack.c.h.b16 %v35
  %v128 = vunpack.c.l.b16 %v36
  %v129 = vunpack.c.h.b16 %v36
  %v130 = vunpack.c.l.b16 %v37
  %v131 = vunpack.c.h.b16 %v37
  %v132 = vunpack.c.l.b16 %v38
  %v133 = vunpack.c.h.b16 %v38
  %v134 = vunpack.c.l.b16 %v39
  %v135 = vunpack.c.h.b16 %v39
  %v136 = vunpack.c.l.b16 %v40
  %v137 = vunpack.c.h.b16 %v40
  %v138 = vunpack.c.l.b16 %v41
  %v139 = vunpack.c.h.b16 %v41
  %v140 = vunpack.c.l.b16 %v42
  %v141 = vunpack.c.h.b16 %v42
  %v142 = vunpack.c.l.b16 %v43
  %v143 = vunpack.c.h.b16 %v43
  %v144 = vunpack.c.l.b16 %v44
  %v145 = vunpack.c.h.b16 %v44
  %v146 = vunpack.c.l.b16 %v45
  %v147 = vunpack.c.h.b16 %v45
  %v148 = vunpack.c.l.b16 %v46
  %v149 = vunpack.c.h.b16 %v46
  %v150 = vunpack.c.l.b16 %v47
  %v151 = vunpack.c.h.b16 %v47
  %v152 = vunpack.c.l.b16 %v48
  %v153 = vunpack.c.h.b16 %v48
  %v154 = vunpack.c.l.b16 %v49
  %v155 = vunpack.c.h.b16 %v49
  %v156 = vunpack.c.l.b16 %v50
  %v157 = vunpack.c.h.b16 %v50
  %v158 = vunpack.c.l.b16 %v51
  %v159 = vunpack.c.h.b16 %v51
  %v160 = vunpack.c.l.b16 %v52
  %v161 = vunpack.c.h.b16 %v52
  %v162 = vunpack.c.l.b16 %v53
  %v163 = vunpack.c.h.b16 %v53
  %v164 = vunpack.c.l.b16 %v54
  %v165 = vunpack.c.h.b16 %v54
  %v166 = vunpack.c.l.b16 %v55
  %v167 = vunpack.c.h.b16 %v55
  %v168 = vunpack.c.l.b16 %v56
  %v169 = vunpack.c.h.b16 %v56
  %v170 = vunpack.c.l.b16 %v57
  %v171 = vunpack.c.h.b16 %v57
  %v172 = vunpack.c.l.b16 %v58
  %v173 = vunpack.c.h.b16 %v58
  %v174 = vunpack.c.l.b16 %v59
  %v175 = vunpack.c.h.b16 %v59
  %v176 = vunpack.c.l.b16 %v60
  %v177 = vunpack.c.h.b16 %v60
  %v178 = vunpack.c.l.b16 %v61
  %v179 = vunpack.c.h.b16 %v61
  %v180 = vpack.c.b16 %v120, %v116
  %v181 = vpack.c.b16 %v121, %v117
  %v182 = vpack.c.b16 %v122, %v118
  %v183 = vpack.c.b16 %v123, %v119
  %v184 = vpack.c.b16 %v128, %v124
  %v185 = vpack.c.b16 %v129, %v125
  %v186 = vpack.c.b16 %v130, %v126
  %v187 = vpack.c.b16 %v131, %v127
  %v188 = vpack.c.b16 %v136, %v132
  %v189 = vpack.c.b16 %v137, %v133
  %v190 = vpack.c.b16 %v138, %v134
  %v191 = vpack.c.b16 %v139, %v135
  %v192 = vpack.c.b16 %v144, %v140
  %v193 = vpack.c.b16 %v145, %v141
  %v194 = vpack.c.b16 %v146, %v142
  %v195 = vpack.c.b16 %v147, %v143
  %v196 = vpack.c.b16 %v152, %v148
  %v197 = vpack.c.b16 %v153, %v149
  %v198 = vpack.c.b16 %v154, %v150
  %v199 = vpack.c.b16 %v155, %v151
  %v200 = vpack.c.b16 %v160, %v156
  %v201 = vpack.c.b16 %v161, %v157
  %v202 = vpack.c.b16 %v162, %v158
  %v203 = vpack.c.b16 %v163, %v159
  %v204 = vpack.c.b16 %v168, %v164
  %v205 = vpack.c.b16 %v169, %v165
  %v206 = vpack.c.b16 %v170, %v166
  %v207 = vpack.c.b16 %v171, %v167
  %v208 = vpack.c.b16 %v176, %v172
  %v209 = vpack.c.b16 %v177, %v173
  %v210 = vpack.c.b16 %v178, %v174
  %v211 = vpack.c.b16 %v179, %v175
  %244 = vmatprep.subr.bf16.mxu0 %v209
  %245 = vmatpush1.bf16.msra.mxu0 %v208
  %246 = vmatprep.subr.bf16.mxu0 %v205
  %247 = vmatpush1.bf16.msra.mxu0 %v204
  %248 = vmatprep.subr.bf16.mxu0 %v201
  %249 = vmatpush1.bf16.msra.mxu0 %v200
  %250 = vmatprep.subr.bf16.mxu0 %v197
  %251 = vmatpush1.bf16.msra.mxu0 %v196
  %252 = vmatprep.subr.bf16.mxu0 %v193
  %253 = vmatpush1.bf16.msra.mxu0 %v192
  %254 = vmatprep.subr.bf16.mxu0 %v189
  %255 = vmatpush1.bf16.msra.mxu0 %v188
  %256 = vmatprep.subr.bf16.mxu0 %v185
  %257 = vmatpush1.bf16.msra.mxu0 %v184
  %258 = vmatprep.subr.bf16.mxu0 %v181
  %259 = vmatpush1.bf16.msra.mxu0 %v180
  %260 = vmatprep.subr.bf16.mxu0 0
  %261 = vmatpush2.bf16.msra.mxu0 0
  %262 = vmatprep.subr.bf16.mxu0 0
  %263 = vmatpush2.bf16.msra.mxu0 0
  %264 = vmatprep.subr.bf16.mxu0 0
  %265 = vmatpush2.bf16.msra.mxu0 0
  %266 = vmatprep.subr.bf16.mxu0 0
  %267 = vmatpush2.bf16.msra.mxu0 0
  %268 = vmatprep.subr.bf16.mxu0 0
  %269 = vmatpush2.bf16.msra.mxu0 0
  %270 = vmatprep.subr.bf16.mxu0 0
  %271 = vmatpush2.bf16.msra.mxu0 0
  %272 = vmatprep.subr.bf16.mxu0 0
  %273 = vmatpush2.bf16.msra.mxu0 0
  %274 = vmatprep.subr.bf16.mxu0 0
  %275 = vmatpush2.bf16.msra.mxu0 0
  %276 = vmatprep.mubr.bf16.mxu0 0
  %277 = vmatmul.mubr.bf16.gmra.mxu0 %v29
  %v278 = vpop.f32.mrf.mxu0
  %v279 = vadd.f32 %v67, %v278
  %v280 = vpop.f32.mrf.mxu0
  %v281 = vadd.f32 %v71, %v280
  %v282 = vpop.f32.mrf.mxu0
  %v283 = vadd.f32 %v67, %v282
  %v284 = vpop.f32.mrf.mxu0
  %v285 = vadd.f32 %v71, %v284
  %286 = vdwg.mxu0
  %287 = vmatprep.subr.bf16.mxu0 %v211
  %288 = vmatpush1.bf16.msra.mxu0 %v210
  %289 = vmatprep.subr.bf16.mxu0 %v207
  %290 = vmatpush1.bf16.msra.mxu0 %v206
  %291 = vmatprep.subr.bf16.mxu0 %v203
  %292 = vmatpush1.bf16.msra.mxu0 %v202
  %293 = vmatprep.subr.bf16.mxu0 %v199
  %294 = vmatpush1.bf16.msra.mxu0 %v198
  %295 = vmatprep.subr.bf16.mxu0 %v195
  %296 = vmatpush1.bf16.msra.mxu0 %v194
  %297 = vmatprep.subr.bf16.mxu0 %v191
  %298 = vmatpush1.bf16.msra.mxu0 %v190
  %299 = vmatprep.subr.bf16.mxu0 %v187
  %300 = vmatpush1.bf16.msra.mxu0 %v186
  %301 = vmatprep.subr.bf16.mxu0 %v183
  %302 = vmatpush1.bf16.msra.mxu0 %v182
  %303 = vmatprep.subr.bf16.mxu0 0
  %304 = vmatpush2.bf16.msra.mxu0 0
  %305 = vmatprep.subr.bf16.mxu0 0
  %306 = vmatpush2.bf16.msra.mxu0 0
  %307 = vmatprep.subr.bf16.mxu0 0
  %308 = vmatpush2.bf16.msra.mxu0 0
  %309 = vmatprep.subr.bf16.mxu0 0
  %310 = vmatpush2.bf16.msra.mxu0 0
  %311 = vmatprep.subr.bf16.mxu0 0
  %312 = vmatpush2.bf16.msra.mxu0 0
  %313 = vmatprep.subr.bf16.mxu0 0
  %314 = vmatpush2.bf16.msra.mxu0 0
  %315 = vmatprep.subr.bf16.mxu0 0
  %316 = vmatpush2.bf16.msra.mxu0 0
  %317 = vmatprep.subr.bf16.mxu0 0
  %318 = vmatpush2.bf16.msra.mxu0 0
  %319 = vmatprep.mubr.bf16.mxu0 0
  %320 = vmatmul.mubr.bf16.gmra.mxu0 %v29
  %v321 = vpop.f32.mrf.mxu0
  %v322 = vadd.f32 %v75, %v321
  %v323 = vpop.f32.mrf.mxu0
  %v324 = vadd.f32 %v79, %v323
  %v325 = vpop.f32.mrf.mxu0
  %v326 = vadd.f32 %v75, %v325
  %v327 = vpop.f32.mrf.mxu0
  %v328 = vadd.f32 %v79, %v327
  %329 = vdwg.mxu0
  %v330 = vmax.f32 %v279, 0.0
  %v331 = vmax.f32 %v281, 0.0
  %v332 = vmax.f32 %v322, 0.0
  %v333 = vmax.f32 %v324, 0.0
  %v334 = vmax.f32 %v283, 0.0
  %v335 = vmax.f32 %v285, 0.0
  %v336 = vmax.f32 %v326, 0.0
  %v337 = vmax.f32 %v328, 0.0
  %v338 = vpack.c.bf16 %v334, %v330
  %v339 = vpack.c.bf16 %v335, %v331
  %v340 = vpack.c.bf16 %v336, %v332
  %v341 = vpack.c.bf16 %v337, %v333
  %v342 = vld [vmem:[%s3] sm:$0xf]
  %v343 = vld [vmem:[%s3 + $0x4] sm:$0xf]
  %v344 = vld [vmem:[%s3 + $0x8] sm:$0xf]
  %v345 = vld [vmem:[%s3 + $0xc] sm:$0xf]
  %v346 = vld [vmem:[%s3 + $0x10] sm:$0xf]
  %v347 = vld [vmem:[%s3 + $0x14] sm:$0xf]
  %v348 = vld [vmem:[%s3 + $0x18] sm:$0xf]
  %v349 = vld [vmem:[%s3 + $0x1c] sm:$0xf]
  %v350 = vld [vmem:[%s3 + $0x20] sm:$0xf]
  %v351 = vld [vmem:[%s3 + $0x24] sm:$0xf]
  %v352 = vld [vmem:[%s3 + $0x28] sm:$0xf]
  %v353 = vld [vmem:[%s3 + $0x2c] sm:$0xf]
  %v354 = vld [vmem:[%s3 + $0x30] sm:$0xf]
  %v355 = vld [vmem:[%s3 + $0x34] sm:$0xf]
  %v356 = vld [vmem:[%s3 + $0x38] sm:$0xf]
  %v357 = vld [vmem:[%s3 + $0x3c] sm:$0xf]
  %v358 = vld [vmem:[%s3 + $0x40] sm:$0xf]
  %v359 = vld [vmem:[%s3 + $0x44] sm:$0xf]
  %v360 = vld [vmem:[%s3 + $0x48] sm:$0xf]
  %v361 = vld [vmem:[%s3 + $0x4c] sm:$0xf]
  %v362 = vld [vmem:[%s3 + $0x50] sm:$0xf]
  %v363 = vld [vmem:[%s3 + $0x54] sm:$0xf]
  %v364 = vld [vmem:[%s3 + $0x58] sm:$0xf]
  %v365 = vld [vmem:[%s3 + $0x5c] sm:$0xf]
  %v366 = vld [vmem:[%s3 + $0x60] sm:$0xf]
  %v367 = vld [vmem:[%s3 + $0x64] sm:$0xf]
  %v368 = vld [vmem:[%s3 + $0x68] sm:$0xf]
  %v369 = vld [vmem:[%s3 + $0x6c] sm:$0xf]
  %v370 = vld [vmem:[%s3 + $0x70] sm:$0xf]
  %v371 = vld [vmem:[%s3 + $0x74] sm:$0xf]
  %v372 = vld [vmem:[%s3 + $0x78] sm:$0xf]
  %v373 = vld [vmem:[%s3 + $0x7c] sm:$0xf]
  %v374 = vld [vmem:[%s3 + $0x80] sm:$0xf]
  %v375 = vld [vmem:[%s3 + $0x84] sm:$0xf]
  %v376 = vld [vmem:[%s3 + $0x88] sm:$0xf]
  %v377 = vld [vmem:[%s3 + $0x8c] sm:$0xf]
  %v378 = vld [vmem:[%s3 + $0x90] sm:$0xf]
  %v379 = vld [vmem:[%s3 + $0x94] sm:$0xf]
  %v380 = vld [vmem:[%s3 + $0x98] sm:$0xf]
  %v381 = vld [vmem:[%s3 + $0x9c] sm:$0xf]
  %v382 = vld [vmem:[%s3 + $0xa0] sm:$0xf]
  %v383 = vld [vmem:[%s3 + $0xa4] sm:$0xf]
  %v384 = vld [vmem:[%s3 + $0xa8] sm:$0xf]
  %v385 = vld [vmem:[%s3 + $0xac] sm:$0xf]
  %v386 = vld [vmem:[%s3 + $0xb0] sm:$0xf]
  %v387 = vld [vmem:[%s3 + $0xb4] sm:$0xf]
  %v388 = vld [vmem:[%s3 + $0xb8] sm:$0xf]
  %v389 = vld [vmem:[%s3 + $0xbc] sm:$0xf]
  %v390 = vld [vmem:[%s3 + $0xc0] sm:$0xf]
  %v391 = vld [vmem:[%s3 + $0xc4] sm:$0xf]
  %v392 = vld [vmem:[%s3 + $0xc8] sm:$0xf]
  %v393 = vld [vmem:[%s3 + $0xcc] sm:$0xf]
  %v394 = vld [vmem:[%s3 + $0xd0] sm:$0xf]
  %v395 = vld [vmem:[%s3 + $0xd4] sm:$0xf]
  %v396 = vld [vmem:[%s3 + $0xd8] sm:$0xf]
  %v397 = vld [vmem:[%s3 + $0xdc] sm:$0xf]
  %v398 = vld [vmem:[%s3 + $0xe0] sm:$0xf]
  %v399 = vld [vmem:[%s3 + $0xe4] sm:$0xf]
  %v400 = vld [vmem:[%s3 + $0xe8] sm:$0xf]
  %v401 = vld [vmem:[%s3 + $0xec] sm:$0xf]
  %v402 = vld [vmem:[%s3 + $0xf0] sm:$0xf]
  %v403 = vld [vmem:[%s3 + $0xf4] sm:$0xf]
  %v404 = vld [vmem:[%s3 + $0xf8] sm:$0xf]
  %v405 = vld [vmem:[%s3 + $0xfc] sm:$0xf]
  %v406 = vld [vmem:[%s4] sm:$0x1]
  %v408 = vlaneseq
  %v409 = vshrl.u32 %v408, 7
  %v410 = vsub.s32 0, %v409
  %v411 = vrot.slane %v406, %v410
  %v477 = vunpack.c.l.b16 %v342
  %v478 = vunpack.c.l.b16 %v343
  %v479 = vunpack.c.l.b16 %v344
  %v480 = vunpack.c.l.b16 %v345
  %v481 = vunpack.c.l.b16 %v346
  %v482 = vunpack.c.l.b16 %v347
  %v483 = vunpack.c.l.b16 %v348
  %v484 = vunpack.c.l.b16 %v349
  %v485 = vunpack.c.l.b16 %v350
  %v486 = vunpack.c.l.b16 %v351
  %v487 = vunpack.c.l.b16 %v352
  %v488 = vunpack.c.l.b16 %v353
  %v489 = vunpack.c.l.b16 %v354
  %v490 = vunpack.c.l.b16 %v355
  %v491 = vunpack.c.l.b16 %v356
  %v492 = vunpack.c.l.b16 %v357
  %v493 = vunpack.c.l.b16 %v358
  %v494 = vunpack.c.l.b16 %v359
  %v495 = vunpack.c.l.b16 %v360
  %v496 = vunpack.c.l.b16 %v361
  %v497 = vunpack.c.l.b16 %v362
  %v498 = vunpack.c.l.b16 %v363
  %v499 = vunpack.c.l.b16 %v364
  %v500 = vunpack.c.l.b16 %v365
  %v501 = vunpack.c.l.b16 %v366
  %v502 = vunpack.c.l.b16 %v367
  %v503 = vunpack.c.l.b16 %v368
  %v504 = vunpack.c.l.b16 %v369
  %v505 = vunpack.c.l.b16 %v370
  %v506 = vunpack.c.l.b16 %v371
  %v507 = vunpack.c.l.b16 %v372
  %v508 = vunpack.c.l.b16 %v373
  %v509 = vunpack.c.l.b16 %v374
  %v510 = vunpack.c.l.b16 %v375
  %v511 = vunpack.c.l.b16 %v376
  %v512 = vunpack.c.l.b16 %v377
  %v513 = vunpack.c.l.b16 %v378
  %v514 = vunpack.c.l.b16 %v379
  %v515 = vunpack.c.l.b16 %v380
  %v516 = vunpack.c.l.b16 %v381
  %v517 = vunpack.c.l.b16 %v382
  %v518 = vunpack.c.l.b16 %v383
  %v519 = vunpack.c.l.b16 %v384
  %v520 = vunpack.c.l.b16 %v385
  %v521 = vunpack.c.l.b16 %v386
  %v522 = vunpack.c.l.b16 %v387
  %v523 = vunpack.c.l.b16 %v388
  %v524 = vunpack.c.l.b16 %v389
  %v525 = vunpack.c.l.b16 %v390
  %v526 = vunpack.c.l.b16 %v391
  %v527 = vunpack.c.l.b16 %v392
  %v528 = vunpack.c.l.b16 %v393
  %v529 = vunpack.c.l.b16 %v394
  %v530 = vunpack.c.l.b16 %v395
  %v531 = vunpack.c.l.b16 %v396
  %v532 = vunpack.c.l.b16 %v397
  %v533 = vunpack.c.l.b16 %v398
  %v534 = vunpack.c.l.b16 %v399
  %v535 = vunpack.c.l.b16 %v400
  %v536 = vunpack.c.l.b16 %v401
  %v537 = vunpack.c.l.b16 %v402
  %v538 = vunpack.c.l.b16 %v403
  %v539 = vunpack.c.l.b16 %v404
  %v540 = vunpack.c.l.b16 %v405
  %v541 = vpack.c.b16 %v478, %v477
  %v542 = vpack.c.b16 %v480, %v479
  %v543 = vpack.c.b16 %v482, %v481
  %v544 = vpack.c.b16 %v484, %v483
  %v545 = vpack.c.b16 %v486, %v485
  %v546 = vpack.c.b16 %v488, %v487
  %v547 = vpack.c.b16 %v490, %v489
  %v548 = vpack.c.b16 %v492, %v491
  %v549 = vpack.c.b16 %v494, %v493
  %v550 = vpack.c.b16 %v496, %v495
  %v551 = vpack.c.b16 %v498, %v497
  %v552 = vpack.c.b16 %v500, %v499
  %v553 = vpack.c.b16 %v502, %v501
  %v554 = vpack.c.b16 %v504, %v503
  %v555 = vpack.c.b16 %v506, %v505
  %v556 = vpack.c.b16 %v508, %v507
  %v557 = vpack.c.b16 %v510, %v509
  %v558 = vpack.c.b16 %v512, %v511
  %v559 = vpack.c.b16 %v514, %v513
  %v560 = vpack.c.b16 %v516, %v515
  %v561 = vpack.c.b16 %v518, %v517
  %v562 = vpack.c.b16 %v520, %v519
  %v563 = vpack.c.b16 %v522, %v521
  %v564 = vpack.c.b16 %v524, %v523
  %v565 = vpack.c.b16 %v526, %v525
  %v566 = vpack.c.b16 %v528, %v527
  %v567 = vpack.c.b16 %v530, %v529
  %v568 = vpack.c.b16 %v532, %v531
  %v569 = vpack.c.b16 %v534, %v533
  %v570 = vpack.c.b16 %v536, %v535
  %v571 = vpack.c.b16 %v538, %v537
  %v572 = vpack.c.b16 %v540, %v539
  %605 = vmatprep.subr.bf16.mxu0 0
  %606 = vmatpush1.bf16.msra.mxu0 %v548
  %607 = vmatprep.subr.bf16.mxu0 0
  %608 = vmatpush1.bf16.msra.mxu0 %v547
  %609 = vmatprep.subr.bf16.mxu0 0
  %610 = vmatpush1.bf16.msra.mxu0 %v546
  %611 = vmatprep.subr.bf16.mxu0 0
  %612 = vmatpush1.bf16.msra.mxu0 %v545
  %613 = vmatprep.subr.bf16.mxu0 0
  %614 = vmatpush1.bf16.msra.mxu0 %v544
  %615 = vmatprep.subr.bf16.mxu0 0
  %616 = vmatpush1.bf16.msra.mxu0 %v543
  %617 = vmatprep.subr.bf16.mxu0 0
  %618 = vmatpush1.bf16.msra.mxu0 %v542
  %619 = vmatprep.subr.bf16.mxu0 0
  %620 = vmatpush1.bf16.msra.mxu0 %v541
  %621 = vmatprep.subr.bf16.mxu0 0
  %622 = vmatpush2.bf16.msra.mxu0 %v556
  %623 = vmatprep.subr.bf16.mxu0 0
  %624 = vmatpush2.bf16.msra.mxu0 %v555
  %625 = vmatprep.subr.bf16.mxu0 0
  %626 = vmatpush2.bf16.msra.mxu0 %v554
  %627 = vmatprep.subr.bf16.mxu0 0
  %628 = vmatpush2.bf16.msra.mxu0 %v553
  %629 = vmatprep.subr.bf16.mxu0 0
  %630 = vmatpush2.bf16.msra.mxu0 %v552
  %631 = vmatprep.subr.bf16.mxu0 0
  %632 = vmatpush2.bf16.msra.mxu0 %v551
  %633 = vmatprep.subr.bf16.mxu0 0
  %634 = vmatpush2.bf16.msra.mxu0 %v550
  %635 = vmatprep.subr.bf16.mxu0 0
  %636 = vmatpush2.bf16.msra.mxu0 %v549
  %637 = vmatprep.mubr.bf16.mxu0 %v339
  %638 = vmatmul.mubr.bf16.gmra.mxu0 %v338
  %v639 = vpop.f32.mrf.mxu0
  %v640 = vadd.f32 %v411, %v639
  %v641 = vpop.f32.mrf.mxu0
  %v642 = vpop.f32.mrf.mxu0
  %v643 = vadd.f32 %v411, %v642
  %v644 = vpop.f32.mrf.mxu0
  %645 = vdwg.mxu0
  %646 = vmatprep.subr.bf16.mxu0 0
  %647 = vmatpush1.bf16.msra.mxu0 %v564
  %648 = vmatprep.subr.bf16.mxu0 0
  %649 = vmatpush1.bf16.msra.mxu0 %v563
  %650 = vmatprep.subr.bf16.mxu0 0
  %651 = vmatpush1.bf16.msra.mxu0 %v562
  %652 = vmatprep.subr.bf16.mxu0 0
  %653 = vmatpush1.bf16.msra.mxu0 %v561
  %654 = vmatprep.subr.bf16.mxu0 0
  %655 = vmatpush1.bf16.msra.mxu0 %v560
  %656 = vmatprep.subr.bf16.mxu0 0
  %657 = vmatpush1.bf16.msra.mxu0 %v559
  %658 = vmatprep.subr.bf16.mxu0 0
  %659 = vmatpush1.bf16.msra.mxu0 %v558
  %660 = vmatprep.subr.bf16.mxu0 0
  %661 = vmatpush1.bf16.msra.mxu0 %v557
  %662 = vmatprep.subr.bf16.mxu0 0
  %663 = vmatpush2.bf16.msra.mxu0 %v572
  %664 = vmatprep.subr.bf16.mxu0 0
  %665 = vmatpush2.bf16.msra.mxu0 %v571
  %666 = vmatprep.subr.bf16.mxu0 0
  %667 = vmatpush2.bf16.msra.mxu0 %v570
  %668 = vmatprep.subr.bf16.mxu0 0
  %669 = vmatpush2.bf16.msra.mxu0 %v569
  %670 = vmatprep.subr.bf16.mxu0 0
  %671 = vmatpush2.bf16.msra.mxu0 %v568
  %672 = vmatprep.subr.bf16.mxu0 0
  %673 = vmatpush2.bf16.msra.mxu0 %v567
  %674 = vmatprep.subr.bf16.mxu0 0
  %675 = vmatpush2.bf16.msra.mxu0 %v566
  %676 = vmatprep.subr.bf16.mxu0 0
  %677 = vmatpush2.bf16.msra.mxu0 %v565
  %678 = vmatprep.mubr.bf16.mxu0 %v341
  %679 = vmatmul.mubr.bf16.gmra.mxu0 %v340
  %v680 = vpop.f32.mrf.mxu0
  %v681 = vadd.f32 %v640, %v680
  %v682 = vpop.f32.mrf.mxu0
  %v683 = vpop.f32.mrf.mxu0
  %v684 = vadd.f32 %v643, %v683
  %v685 = vpop.f32.mrf.mxu0
  %686 = vdwg.mxu0
  %v687 = vadd.f32 %v27, %v681
  %v688 = vadd.f32 %v28, %v684
  %689 = vadd.xlane.f32.xlu0 %v687
  %v690 = vpop.xlane.xlu0 %689
  %691 = vadd.xlane.f32.xlu0 %v688
  %v692 = vpop.xlane.xlu0 %691
  %v693 = vrcp.pop 128.0
  %v694 = vmul.f32 %v690, %v693
  %v695 = vmul.f32 %v692, %v693
  %v696 = vsub.f32 %v687, %v694
  %v697 = vsub.f32 %v688, %v695
  %v698 = vmul.f32 %v696, %v696
  %v699 = vmul.f32 %v697, %v697
  %700 = vadd.xlane.f32.xlu0 %v698
  %v701 = vpop.xlane.xlu0 %700
  %702 = vadd.xlane.f32.xlu0 %v699
  %v703 = vpop.xlane.xlu0 %702
  %v704 = vmul.f32 %v701, %v693
  %v705 = vmul.f32 %v703, %v693
  %v706 = vadd.f32 %v704, 1e-05
  %v707 = vadd.f32 %v705, 1e-05
  %v708 = vrsqrt.pop %v706
  %v709 = vrsqrt.pop %v707
  %v710 = vmul.f32 %v696, %v708
  %v711 = vmul.f32 %v697, %v709
  %v712 = vld [vmem:[%s5] sm:$0x1]
  %v714 = vlaneseq
  %v715 = vshrl.u32 %v714, 7
  %v716 = vsub.s32 0, %v715
  %v717 = vrot.slane %v712, %v716
  %v719 = vmul.f32 %v710, %v717
  %v720 = vmul.f32 %v711, %v717
  %v721 = vld [vmem:[%s6] sm:$0x1]
  %v723 = vlaneseq
  %v724 = vshrl.u32 %v723, 7
  %v725 = vsub.s32 0, %v724
  %v726 = vrot.slane %v721, %v725
  %v728 = vadd.f32 %v719, %v726
  %v729 = vadd.f32 %v720, %v726
  %730 = vst [vmem:[%s7] sm:$0xff] %v728
  %731 = vst [vmem:[%s7 + $0x8] sm:$0xff] %v729
  // Predicated region
  $region30: #{decoder_forward.26} parent=0 // pred_check
    _
  $region31: #{decoder_forward.26} parent=0 // pred_check_branch
    %733 = sbr.rel (0) target = $region33
  $region32: #{decoder_forward.26} parent=0 // pred_region
    _
  $region33: #{decoder_forward.26} parent=0 // pred_fallthru
    _
  // Predicated region
  $region34: #{decoder_forward.26} parent=0 // pred_check
    _
  $region35: #{decoder_forward.26} parent=0 // pred_check_branch
    %735 = sbr.rel (0) target = $region37
  $region36: #{decoder_forward.26} parent=0 // pred_region
    _
  $region37: #{decoder_forward.26} parent=0 // pred_fallthru
    _

</llo_original>
